<compile_context>
chip_gen: v7x
topology: tpu7x:2x2x1
jax: 0.10.0
libtpu: 0.0.40
codegen_flags: <defaults>
</compile_context>

<pallas_src>
import functools

import jax
import jax.numpy as jnp
from jax.experimental import pallas as pl
from jax.experimental.pallas import tpu as pltpu


def _round_up(x, m):
    return (x + m - 1) // m * m


def _linkpred_kernel(xi_ref, xj_ref,
                     w1_ref, b1_ref, w2_ref, b2_ref, w3t_ref, b3_ref,
                     o_ref):
    # Elementwise product of the two endpoint embeddings.  Up-cast to f32 so
    # the VPU/EUP ops are valid on v5e as well (inputs may be bf16 in HBM).
    x = xi_ref[...].astype(jnp.float32) * xj_ref[...].astype(jnp.float32)

    # Layer 1: Linear -> ReLU   (MXU matmul, f32 accumulate)
    h = jnp.dot(x, w1_ref[...], preferred_element_type=jnp.float32) + b1_ref[...]
    h = jnp.maximum(h, 0.0)

    # Layer 2: Linear -> ReLU
    h = jnp.dot(h, w2_ref[...], preferred_element_type=jnp.float32) + b2_ref[...]
    h = jnp.maximum(h, 0.0)

    # Output layer computed transposed so the result is lane-major:
    #   zT[o, t] = sum_k w3t[o, k] * h[t, k]        -> shape (c_out, tile)
    # (rhs-contracted-on-last-dim == the standard q @ k.T MXU pattern.)
    zT = jax.lax.dot_general(
        w3t_ref[...], h,
        dimension_numbers=(((1,), (1,)), ((), ())),
        preferred_element_type=jnp.float32) + b3_ref[...]

    # Sigmoid (EUP exp) + lane-dense store.
    o_ref[...] = jax.nn.sigmoid(zT).astype(o_ref.dtype)


@functools.partial(jax.jit, static_argnames=("tm",))
def link_predictor(x_i, x_j, params, *, tm=1024):
    """Pallas LinkPredictor forward (num_layers=3, eval mode).

    x_i, x_j : (N, in_channels), any float dtype (bf16 recommended for HBM
               streaming); params in natural layout: w (fan_in, fan_out),
               b (fan_out,).  Returns (N, out_channels) float32 probabilities.
    """
    w1, b1, w2, b2, w3, b3 = params
    n, c_in = x_i.shape
    hid = w1.shape[1]
    c_out = w3.shape[1]

    # Tiny constant-size layout massaging (free).
    b1r = b1.reshape(1, hid)
    b2r = b2.reshape(1, hid)
    w3t = w3.T                    # (c_out, hid) -- PyTorch Linear.weight layout
    b3r = b3.reshape(c_out, 1)

    # Row tile: multiple of 128 so the transposed output block stays lane-dense.
    tile = min(tm, _round_up(n, 128))
    tile = _round_up(tile, 128)
    n_pad = _round_up(n, tile)
    if n_pad // tile == 1 and tile >= 256:
        tile //= 2                # keep >= 2 grid steps (both v7x TCs busy)
    n_pad = _round_up(n, tile)
    grid = (n_pad // tile,)

    if n_pad != n:
        # NOTE: this pad copies the inputs once; pass a tile-multiple N to
        # avoid it on the hot path.
        x_i = jnp.pad(x_i, ((0, n_pad - n), (0, 0)))
        x_j = jnp.pad(x_j, ((0, n_pad - n), (0, 0)))

    row_spec = pl.BlockSpec((tile, c_in), lambda i: (i, 0))
    # Constant (0,0) index_map: fetched once, no per-step re-DMA.
    rep_spec = lambda shape: pl.BlockSpec(shape, lambda i: (0, 0))

    out2d = pl.pallas_call(
        _linkpred_kernel,
        out_shape=jax.ShapeDtypeStruct((c_out, n_pad), jnp.float32),
        grid_spec=pltpu.PrefetchScalarGridSpec(
            num_scalar_prefetch=0,
            grid=grid,
            in_specs=[
                row_spec,                      # x_i  (tile, c_in)
                row_spec,                      # x_j  (tile, c_in)
                rep_spec((c_in, hid)),         # w1
                rep_spec((1, hid)),            # b1
                rep_spec((hid, hid)),          # w2
                rep_spec((1, hid)),            # b2
                rep_spec((c_out, hid)),        # w3^T
                rep_spec((c_out, 1)),          # b3
            ],
            out_specs=pl.BlockSpec((c_out, tile), lambda i: (0, i)),
        ),
        compiler_params=pltpu.CompilerParams(
            dimension_semantics=("parallel",)),
    )(x_i, x_j, w1, b1r, w2, b2r, w3t, b3r)

    # (c_out, n_pad) -> (n, c_out).  Output is tiny; this is free plumbing.
    return out2d[:, :n].T


def _ref_forward(x_i, x_j, params):
    """Pure-JAX reference for correctness check (f32 compute)."""
    w1, b1, w2, b2, w3, b3 = params
    x = x_i.astype(jnp.float32) * x_j.astype(jnp.float32)
    x = jnp.maximum(x @ w1 + b1, 0.0)
    x = jnp.maximum(x @ w2 + b2, 0.0)
    return jax.nn.sigmoid(x @ w3 + b3)


def _init_params(key, in_channels, hidden_channels, out_channels):
    """Deterministic init matching torch.nn.Linear (Kaiming-uniform-ish)."""
    ks = jax.random.split(key, 6)

    def lin(kw, kb, fan_in, fan_out):
        bound = 1.0 / jnp.sqrt(jnp.float32(fan_in))
        w = jax.random.uniform(kw, (fan_in, fan_out), jnp.float32, -bound, bound)
        b = jax.random.uniform(kb, (fan_out,), jnp.float32, -bound, bound)
        return w, b

    w1, b1 = lin(ks[0], ks[1], in_channels, hidden_channels)
    w2, b2 = lin(ks[2], ks[3], hidden_channels, hidden_channels)
    w3, b3 = lin(ks[4], ks[5], hidden_channels, out_channels)
    return (w1, b1, w2, b2, w3, b3)


if __name__ == "__main__":
    # num_layers=3, in=32, hidden=32, out=1; N=4096 edge pairs (grid of 4
    # lane-dense 1024-row tiles; weights f32, activations streamed as bf16).
    in_channels, hidden_channels, out_channels = 32, 32, 1
    n_edges = 4096

    key = jax.random.PRNGKey(0)
    k_xi, k_xj, k_p = jax.random.split(key, 3)
    x_i = jax.random.normal(k_xi, (n_edges, in_channels), jnp.float32).astype(jnp.bfloat16)
    x_j = jax.random.normal(k_xj, (n_edges, in_channels), jnp.float32).astype(jnp.bfloat16)
    params = _init_params(k_p, in_channels, hidden_channels, out_channels)

    out = link_predictor(x_i, x_j, params, tm=1024)
    out = jax.block_until_ready(out)

    ref = _ref_forward(x_i, x_j, params)
    assert out.shape == (n_edges, out_channels)
    assert jnp.allclose(out, ref, atol=1e-3, rtol=1e-3), "mismatch vs reference"

    print("KERNEL_OK")
</pallas_src>

<mosaic_0001>
module attributes {stable_mosaic.version = 11 : i64} {
  func.func @_linkpred_kernel(%arg0: i32, %arg1: memref<1024x32xbf16, #tpu.memory_space<vmem>>, %arg2: memref<1024x32xbf16, #tpu.memory_space<vmem>>, %arg3: memref<32x32xf32, #tpu.memory_space<vmem>>, %arg4: memref<1x32xf32, #tpu.memory_space<vmem>>, %arg5: memref<32x32xf32, #tpu.memory_space<vmem>>, %arg6: memref<1x32xf32, #tpu.memory_space<vmem>>, %arg7: memref<1x32xf32, #tpu.memory_space<vmem>>, %arg8: memref<1x1xf32, #tpu.memory_space<vmem>>, %arg9: memref<1x1024xf32, #tpu.memory_space<vmem>>) attributes {dimension_semantics = [#tpu.dimension_semantics<parallel>], iteration_bounds = array<i64: 4>, scalar_prefetch = 0 : i64, scratch_operands = 0 : i64, tpu.core_type = #tpu.core_type<tc>, window_params = [{transform_indices = @transform_0, window_bounds = array<i64: 1024, 32>}, {transform_indices = @transform_1, window_bounds = array<i64: 1024, 32>}, {pipeline_mode = #tpu.pipeline_mode<synchronous>, transform_indices = @transform_2, window_bounds = array<i64: 32, 32>}, {pipeline_mode = #tpu.pipeline_mode<synchronous>, transform_indices = @transform_3, window_bounds = array<i64: 1, 32>}, {pipeline_mode = #tpu.pipeline_mode<synchronous>, transform_indices = @transform_4, window_bounds = array<i64: 32, 32>}, {pipeline_mode = #tpu.pipeline_mode<synchronous>, transform_indices = @transform_5, window_bounds = array<i64: 1, 32>}, {pipeline_mode = #tpu.pipeline_mode<synchronous>, transform_indices = @transform_6, window_bounds = array<i64: 1, 32>}, {pipeline_mode = #tpu.pipeline_mode<synchronous>, transform_indices = @transform_7, window_bounds = array<i64: 1, 1>}, {transform_indices = @transform_8, window_bounds = array<i64: 1, 1024>}]} {
    %c0 = arith.constant 0 : index
    %c0_0 = arith.constant 0 : index
    %0 = vector.load %arg1[%c0, %c0_0] : memref<1024x32xbf16, #tpu.memory_space<vmem>>, vector<1024x32xbf16>
    %1 = arith.extf %0 : vector<1024x32xbf16> to vector<1024x32xf32>
    %c0_1 = arith.constant 0 : index
    %c0_2 = arith.constant 0 : index
    %2 = vector.load %arg2[%c0_1, %c0_2] : memref<1024x32xbf16, #tpu.memory_space<vmem>>, vector<1024x32xbf16>
    %3 = arith.extf %2 : vector<1024x32xbf16> to vector<1024x32xf32>
    %4 = arith.mulf %1, %3 : vector<1024x32xf32>
    %c0_3 = arith.constant 0 : index
    %c0_4 = arith.constant 0 : index
    %5 = vector.load %arg3[%c0_3, %c0_4] : memref<32x32xf32, #tpu.memory_space<vmem>>, vector<32x32xf32>
    %cst = arith.constant dense<0.000000e+00> : vector<1024x32xf32>
    %6 = tpu.matmul %4, %5, %cst {dimension_numbers = #tpu.dot_dimension_numbers<[1], [0], [0], [1], [0, 0, 1, 1], [], []>} : vector<1024x32xf32>, vector<32x32xf32>, vector<1024x32xf32> -> vector<1024x32xf32>
    %c0_5 = arith.constant 0 : index
    %c0_6 = arith.constant 0 : index
    %7 = vector.load %arg4[%c0_5, %c0_6] : memref<1x32xf32, #tpu.memory_space<vmem>>, vector<1x32xf32>
    %8 = vector.broadcast %7 : vector<1x32xf32> to vector<1024x32xf32>
    %9 = arith.addf %6, %8 : vector<1024x32xf32>
    %cst_7 = arith.constant 0.000000e+00 : f32
    %10 = vector.broadcast %cst_7 : f32 to vector<1024x32xf32>
    %11 = arith.maximumf %9, %10 : vector<1024x32xf32>
    %c0_8 = arith.constant 0 : index
    %c0_9 = arith.constant 0 : index
    %12 = vector.load %arg5[%c0_8, %c0_9] : memref<32x32xf32, #tpu.memory_space<vmem>>, vector<32x32xf32>
    %cst_10 = arith.constant dense<0.000000e+00> : vector<1024x32xf32>
    %13 = tpu.matmul %11, %12, %cst_10 {dimension_numbers = #tpu.dot_dimension_numbers<[1], [0], [0], [1], [0, 0, 1, 1], [], []>} : vector<1024x32xf32>, vector<32x32xf32>, vector<1024x32xf32> -> vector<1024x32xf32>
    %c0_11 = arith.constant 0 : index
    %c0_12 = arith.constant 0 : index
    %14 = vector.load %arg6[%c0_11, %c0_12] : memref<1x32xf32, #tpu.memory_space<vmem>>, vector<1x32xf32>
    %15 = vector.broadcast %14 : vector<1x32xf32> to vector<1024x32xf32>
    %16 = arith.addf %13, %15 : vector<1024x32xf32>
    %cst_13 = arith.constant 0.000000e+00 : f32
    %17 = vector.broadcast %cst_13 : f32 to vector<1024x32xf32>
    %18 = arith.maximumf %16, %17 : vector<1024x32xf32>
    %c0_14 = arith.constant 0 : index
    %c0_15 = arith.constant 0 : index
    %19 = vector.load %arg7[%c0_14, %c0_15] : memref<1x32xf32, #tpu.memory_space<vmem>>, vector<1x32xf32>
    %cst_16 = arith.constant dense<0.000000e+00> : vector<1x1024xf32>
    %20 = tpu.matmul %19, %18, %cst_16 {dimension_numbers = #tpu.dot_dimension_numbers<[1], [1], [0], [0], [0, 0, 1, 0], [], []>} : vector<1x32xf32>, vector<1024x32xf32>, vector<1x1024xf32> -> vector<1x1024xf32>
    %c0_17 = arith.constant 0 : index
    %c0_18 = arith.constant 0 : index
    %21 = vector.load %arg8[%c0_17, %c0_18] : memref<1x1xf32, #tpu.memory_space<vmem>>, vector<1x1xf32>
    %22 = vector.broadcast %21 : vector<1x1xf32> to vector<1x1024xf32>
    %23 = arith.addf %20, %22 : vector<1x1024xf32>
    %24 = arith.negf %23 : vector<1x1024xf32>
    %25 = math.exp %24 : vector<1x1024xf32>
    %cst_19 = arith.constant 1.000000e+00 : f32
    %26 = vector.broadcast %cst_19 : f32 to vector<1x1024xf32>
    %27 = arith.addf %26, %25 : vector<1x1024xf32>
    %28 = arith.divf %26, %27 : vector<1x1024xf32>
    %c0_20 = arith.constant 0 : index
    %c0_21 = arith.constant 0 : index
    %29 = vector.load %arg9[%c0_20, %c0_21] : memref<1x1024xf32, #tpu.memory_space<vmem>>, vector<1x1024xf32>
    tpu.vector_store %arg9[%c0_20, %c0_21], %28 {strides = array<i32>} : memref<1x1024xf32, #tpu.memory_space<vmem>>, vector<1x1024xf32>,
    return
  }
  func.func @transform_0(%arg0: i32) -> (i32, i32) {
    %c0_i32 = arith.constant 0 : i32
    %c0_i32_0 = arith.constant 0 : i32
    return %arg0, %c0_i32 : i32, i32
  }
  func.func @transform_1(%arg0: i32) -> (i32, i32) {
    %c0_i32 = arith.constant 0 : i32
    %c0_i32_0 = arith.constant 0 : i32
    return %arg0, %c0_i32 : i32, i32
  }
  func.func @transform_2(%arg0: i32) -> (i32, i32) {
    %c0_i32 = arith.constant 0 : i32
    %c0_i32_0 = arith.constant 0 : i32
    %c0_i32_1 = arith.constant 0 : i32
    return %c0_i32, %c0_i32_0 : i32, i32
  }
  func.func @transform_3(%arg0: i32) -> (i32, i32) {
    %c0_i32 = arith.constant 0 : i32
    %c0_i32_0 = arith.constant 0 : i32
    %c0_i32_1 = arith.constant 0 : i32
    return %c0_i32, %c0_i32_0 : i32, i32
  }
  func.func @transform_4(%arg0: i32) -> (i32, i32) {
    %c0_i32 = arith.constant 0 : i32
    %c0_i32_0 = arith.constant 0 : i32
    %c0_i32_1 = arith.constant 0 : i32
    return %c0_i32, %c0_i32_0 : i32, i32
  }
  func.func @transform_5(%arg0: i32) -> (i32, i32) {
    %c0_i32 = arith.constant 0 : i32
    %c0_i32_0 = arith.constant 0 : i32
    %c0_i32_1 = arith.constant 0 : i32
    return %c0_i32, %c0_i32_0 : i32, i32
  }
  func.func @transform_6(%arg0: i32) -> (i32, i32) {
    %c0_i32 = arith.constant 0 : i32
    %c0_i32_0 = arith.constant 0 : i32
    %c0_i32_1 = arith.constant 0 : i32
    return %c0_i32, %c0_i32_0 : i32, i32
  }
  func.func @transform_7(%arg0: i32) -> (i32, i32) {
    %c0_i32 = arith.constant 0 : i32
    %c0_i32_0 = arith.constant 0 : i32
    %c0_i32_1 = arith.constant 0 : i32
    return %c0_i32, %c0_i32_0 : i32, i32
  }
  func.func @transform_8(%arg0: i32) -> (i32, i32) {
    %c0_i32 = arith.constant 0 : i32
    %c0_i32_0 = arith.constant 0 : i32
    return %c0_i32, %arg0 : i32, i32
  }
}

</mosaic_0001>

<llo_original>
// kernel: link_predictor.1
$region0: #{link_predictor.1}
  #allocation0 [shape = 'u32[]', space=smem, size = 0x4, offset = 0x4, fixed_abs, tag = 'smem constant byte address 0x4 - core index']
  #allocation1 [shape = 'u32[144,128]{1,0:T(1,128)}', space=vmem, size = 0x12000, scoped, tag = 'internal scratch']
  #allocation2 [shape = 'f32[1,1]{1,0:T(1,128)S(1)}', space=vmem, size = 0x200, scoped, tag = 'scoped memory for link_predictor.1']
  %s0 = inlined_call_operand.vmem [shape: bf16[4096,32], index: 0, kind: input, shape index: {}]
  %s1 = inlined_call_operand.vmem [shape: bf16[4096,32], index: 1, kind: input, shape index: {}]
  %s2 = inlined_call_operand.vmem [shape: f32[32,32], index: 2, kind: input, shape index: {}]
  %s3 = inlined_call_operand.vmem [shape: f32[1,32], index: 3, kind: input, shape index: {}]
  %s4 = inlined_call_operand.vmem [shape: f32[32,32], index: 4, kind: input, shape index: {}]
  %s5 = inlined_call_operand.vmem [shape: f32[1,32], index: 5, kind: input, shape index: {}]
  %s6 = inlined_call_operand.vmem [shape: f32[1,32], index: 6, kind: input, shape index: {}]
  %s7 = inlined_call_operand.<no memory space> [shape: f32[1,1], index: 7, kind: input, shape index: {}]
  %s8 = inlined_call_operand.hbm [shape: f32[1,4096], index: 8, kind: output, shape index: {}]
  %s9 = sld [smem:[#allocation0]]
  $region65: #{link_predictor.1} parent=0
    _
  %s11 = ssub.s32 1, %s9
  %s12 = scalar_select 0, %s11, %s9
  %v13 = vstv %s7
  %14 = vst [vmem:[#allocation2] sm:$0x1] %v13
  $region1: #{link_predictor.1} parent=0
    #allocation3 [shape = 'u8[8192]{0}', space=vmem, size = 0x2000, scoped, tag = 'output window, operand 0']
    #allocation4 [shape = 's32[2]{0}', space=sflag, size = 0x8, scoped, tag = 'scoped memory for link_predictor.1']
    %15 = vsyncpa [#allocation4], 0
    %s16 = scalar_lea.sflag [#allocation4], 1
    %17 = vsyncpa %s16, 0
    loop: start=0, step=1, limit=6
    $region2: #{link_predictor.1} parent=1 // loop_pre_header
      _
    $region3: #{link_predictor.1} parent=1 // loop_header
      %s19 = sphi 0, %s23
      %p20 = scmp.ge.s32.totalorder %s19, 6
      %s29 = sphi 0, %s31
      %s32 = sphi 0, %s29
      %s33 = sphi 0, %s32
      %s49 = sphi 0, %s33
      %s55 = sphi 0, %s57
      %s58 = sphi 0, %s55
      %s59 = sphi 0, %s58
      %s75 = sphi 0, %s59
      %s79 = sphi 0, %s79
      %s81 = sphi 0, %s79
      %s82 = sphi 0, %s81
      %s96 = sphi 0, %s82
      %s100 = sphi 0, %s100
      %s102 = sphi 0, %s100
      %s103 = sphi 0, %s102
      %s117 = sphi 0, %s103
      %s121 = sphi 0, %s121
      %s123 = sphi 0, %s121
      %s124 = sphi 0, %s123
      %s138 = sphi 0, %s124
      %s142 = sphi 0, %s142
      %s144 = sphi 0, %s142
      %s145 = sphi 0, %s144
      %s159 = sphi 0, %s145
      %s163 = sphi 0, %s163
      %s165 = sphi 0, %s163
      %s166 = sphi 0, %s165
      %s180 = sphi 0, %s166
      %s184 = sphi 0, %s184
      %s186 = sphi 0, %s184
      %s187 = sphi 0, %s186
      %s201 = sphi 0, %s187
      %s207 = sphi 0, %s209
      %s210 = sphi 0, %s207
      %s211 = sphi 0, %s210
      %s227 = sphi 0, %s211
    $region4: #{link_predictor.1} parent=1 // loop_header_branch
      %22 = sbr.rel (%p20) target = $region8
    $region5: #{link_predictor.1} parent=1 // loop_body
      %s24 = ssub.s32 %s19, 1
      %s25 = ssub.s32 %s19, 2
      %s26 = sadd.s32 %s19, 1
      %s27 = ssub.s32 %s19, %s26
      %p28 = scmp.eq.s32.totalorder %s27, 0
      %s30 = sadd.s32 %s29, 1
      %s31 = scalar_select %p28, %s29, %s30
      %p34 = pneg %p28
      %p35 = scmp.eq.s32.totalorder %s19, 3
      %p36 = por %p34, %p35
      %p37 = scmp.ne.s32.totalorder %s29, %s32
      %p38 = scmp.eq.s32.totalorder %s19, 0
      %p39 = por %p37, %p38
      %p40 = scmp.ne.s32.totalorder %s29, %s32
      %p41 = scmp.eq.s32.totalorder %s24, 3
      %p42 = por %p40, %p41
      %p43 = scmp.ne.s32.totalorder %s32, %s33
      %p44 = scmp.eq.s32.totalorder %s24, 0
      %p45 = por %p43, %p44
      %p46 = scmp.ne.s32.totalorder %s32, %s33
      %p47 = scmp.eq.s32.totalorder %s25, 3
      %p48 = por %p46, %p47
      %p50 = scmp.ne.s32.totalorder %s33, %s49
      %p51 = scmp.eq.s32.totalorder %s25, 0
      %p52 = por %p50, %p51
      %s53 = ssub.s32 %s19, %s26
      %p54 = scmp.eq.s32.totalorder %s53, 0
      %s56 = sadd.s32 %s55, 1
      %s57 = scalar_select %p54, %s55, %s56
      %p60 = pneg %p54
      %p61 = scmp.eq.s32.totalorder %s19, 3
      %p62 = por %p60, %p61
      %p63 = scmp.ne.s32.totalorder %s55, %s58
      %p64 = scmp.eq.s32.totalorder %s19, 0
      %p65 = por %p63, %p64
      %p66 = scmp.ne.s32.totalorder %s55, %s58
      %p67 = scmp.eq.s32.totalorder %s24, 3
      %p68 = por %p66, %p67
      %p69 = scmp.ne.s32.totalorder %s58, %s59
      %p70 = scmp.eq.s32.totalorder %s24, 0
      %p71 = por %p69, %p70
      %p72 = scmp.ne.s32.totalorder %s58, %s59
      %p73 = scmp.eq.s32.totalorder %s25, 3
      %p74 = por %p72, %p73
      %p76 = scmp.ne.s32.totalorder %s59, %s75
      %p77 = scmp.eq.s32.totalorder %s25, 0
      %p78 = por %p76, %p77
      %s80 = sadd.s32 %s79, 1
      %p83 = scmp.eq.s32.totalorder %s19, 3
      %p84 = scmp.ne.s32.totalorder %s79, %s81
      %p85 = scmp.eq.s32.totalorder %s19, 0
      %p86 = por %p84, %p85
      %p87 = scmp.ne.s32.totalorder %s79, %s81
      %p88 = scmp.eq.s32.totalorder %s24, 3
      %p89 = por %p87, %p88
      %p90 = scmp.ne.s32.totalorder %s81, %s82
      %p91 = scmp.eq.s32.totalorder %s24, 0
      %p92 = por %p90, %p91
      %p93 = scmp.ne.s32.totalorder %s81, %s82
      %p94 = scmp.eq.s32.totalorder %s25, 3
      %p95 = por %p93, %p94
      %p97 = scmp.ne.s32.totalorder %s82, %s96
      %p98 = scmp.eq.s32.totalorder %s25, 0
      %p99 = por %p97, %p98
      %s101 = sadd.s32 %s100, 1
      %p104 = scmp.eq.s32.totalorder %s19, 3
      %p105 = scmp.ne.s32.totalorder %s100, %s102
      %p106 = scmp.eq.s32.totalorder %s19, 0
      %p107 = por %p105, %p106
      %p108 = scmp.ne.s32.totalorder %s100, %s102
      %p109 = scmp.eq.s32.totalorder %s24, 3
      %p110 = por %p108, %p109
      %p111 = scmp.ne.s32.totalorder %s102, %s103
      %p112 = scmp.eq.s32.totalorder %s24, 0
      %p113 = por %p111, %p112
      %p114 = scmp.ne.s32.totalorder %s102, %s103
      %p115 = scmp.eq.s32.totalorder %s25, 3
      %p116 = por %p114, %p115
      %p118 = scmp.ne.s32.totalorder %s103, %s117
      %p119 = scmp.eq.s32.totalorder %s25, 0
      %p120 = por %p118, %p119
      %s122 = sadd.s32 %s121, 1
      %p125 = scmp.eq.s32.totalorder %s19, 3
      %p126 = scmp.ne.s32.totalorder %s121, %s123
      %p127 = scmp.eq.s32.totalorder %s19, 0
      %p128 = por %p126, %p127
      %p129 = scmp.ne.s32.totalorder %s121, %s123
      %p130 = scmp.eq.s32.totalorder %s24, 3
      %p131 = por %p129, %p130
      %p132 = scmp.ne.s32.totalorder %s123, %s124
      %p133 = scmp.eq.s32.totalorder %s24, 0
      %p134 = por %p132, %p133
      %p135 = scmp.ne.s32.totalorder %s123, %s124
      %p136 = scmp.eq.s32.totalorder %s25, 3
      %p137 = por %p135, %p136
      %p139 = scmp.ne.s32.totalorder %s124, %s138
      %p140 = scmp.eq.s32.totalorder %s25, 0
      %p141 = por %p139, %p140
      %s143 = sadd.s32 %s142, 1
      %p146 = scmp.eq.s32.totalorder %s19, 3
      %p147 = scmp.ne.s32.totalorder %s142, %s144
      %p148 = scmp.eq.s32.totalorder %s19, 0
      %p149 = por %p147, %p148
      %p150 = scmp.ne.s32.totalorder %s142, %s144
      %p151 = scmp.eq.s32.totalorder %s24, 3
      %p152 = por %p150, %p151
      %p153 = scmp.ne.s32.totalorder %s144, %s145
      %p154 = scmp.eq.s32.totalorder %s24, 0
      %p155 = por %p153, %p154
      %p156 = scmp.ne.s32.totalorder %s144, %s145
      %p157 = scmp.eq.s32.totalorder %s25, 3
      %p158 = por %p156, %p157
      %p160 = scmp.ne.s32.totalorder %s145, %s159
      %p161 = scmp.eq.s32.totalorder %s25, 0
      %p162 = por %p160, %p161
      %s164 = sadd.s32 %s163, 1
      %p167 = scmp.eq.s32.totalorder %s19, 3
      %p168 = scmp.ne.s32.totalorder %s163, %s165
      %p169 = scmp.eq.s32.totalorder %s19, 0
      %p170 = por %p168, %p169
      %p171 = scmp.ne.s32.totalorder %s163, %s165
      %p172 = scmp.eq.s32.totalorder %s24, 3
      %p173 = por %p171, %p172
      %p174 = scmp.ne.s32.totalorder %s165, %s166
      %p175 = scmp.eq.s32.totalorder %s24, 0
      %p176 = por %p174, %p175
      %p177 = scmp.ne.s32.totalorder %s165, %s166
      %p178 = scmp.eq.s32.totalorder %s25, 3
      %p179 = por %p177, %p178
      %p181 = scmp.ne.s32.totalorder %s166, %s180
      %p182 = scmp.eq.s32.totalorder %s25, 0
      %p183 = por %p181, %p182
      %s185 = sadd.s32 %s184, 1
      %p188 = scmp.eq.s32.totalorder %s19, 3
      %p189 = scmp.ne.s32.totalorder %s184, %s186
      %p190 = scmp.eq.s32.totalorder %s19, 0
      %p191 = por %p189, %p190
      %p192 = scmp.ne.s32.totalorder %s184, %s186
      %p193 = scmp.eq.s32.totalorder %s24, 3
      %p194 = por %p192, %p193
      %p195 = scmp.ne.s32.totalorder %s186, %s187
      %p196 = scmp.eq.s32.totalorder %s24, 0
      %p197 = por %p195, %p196
      %p198 = scmp.ne.s32.totalorder %s186, %s187
      %p199 = scmp.eq.s32.totalorder %s25, 3
      %p200 = por %p198, %p199
      %p202 = scmp.ne.s32.totalorder %s187, %s201
      %p203 = scmp.eq.s32.totalorder %s25, 0
      %p204 = por %p202, %p203
      %s205 = ssub.s32 %s19, %s26
      %p206 = scmp.eq.s32.totalorder %s205, 0
      %s208 = sadd.s32 %s207, 1
      %s209 = scalar_select %p206, %s207, %s208
      %p212 = pneg %p206
      %p213 = scmp.eq.s32.totalorder %s19, 3
      %p214 = por %p212, %p213
      %p215 = scmp.ne.s32.totalorder %s207, %s210
      %p216 = scmp.eq.s32.totalorder %s19, 0
      %p217 = por %p215, %p216
      %p218 = scmp.ne.s32.totalorder %s207, %s210
      %p219 = scmp.eq.s32.totalorder %s24, 3
      %p220 = por %p218, %p219
      %p221 = scmp.ne.s32.totalorder %s210, %s211
      %p222 = scmp.eq.s32.totalorder %s24, 0
      %p223 = por %p221, %p222
      %p224 = scmp.ne.s32.totalorder %s210, %s211
      %p225 = scmp.eq.s32.totalorder %s25, 3
      %p226 = por %p224, %p225
      %p228 = scmp.ne.s32.totalorder %s211, %s227
      %p229 = scmp.eq.s32.totalorder %s25, 0
      %p230 = por %p228, %p229
      %p231 = scmp.le.s32.totalorder 1, %s19
      %p232 = scmp.lt.s32.totalorder %s19, 5
      %p233 = pnand %p231, %p232
      %p234 = pneg %p233
      // Predicated region
      $region9: #{link_predictor.1} parent=5 // pred_check
        _
      $region10: #{link_predictor.1} parent=5 // pred_check_branch
        %236 = sbr.rel (%p233) target = $region12
      $region11: #{link_predictor.1} parent=5 // pred_region
        %s237 = ssub.s32 %s19, 1
        // Predicated region
        $region13: #{link_predictor.1} parent=11 // pred_check
          %p238 = pneg %p92
        $region14: #{link_predictor.1} parent=11 // pred_check_branch
          %240 = sbr.rel (%p238) target = $region16
        $region15: #{link_predictor.1} parent=11 // pred_region
          _
        $region16: #{link_predictor.1} parent=11 // pred_fallthru
          _
        // Predicated region
        $region17: #{link_predictor.1} parent=11 // pred_check
          %p241 = pneg %p113
        $region18: #{link_predictor.1} parent=11 // pred_check_branch
          %243 = sbr.rel (%p241) target = $region20
        $region19: #{link_predictor.1} parent=11 // pred_region
          _
        $region20: #{link_predictor.1} parent=11 // pred_fallthru
          _
        // Predicated region
        $region21: #{link_predictor.1} parent=11 // pred_check
          %p244 = pneg %p134
        $region22: #{link_predictor.1} parent=11 // pred_check_branch
          %246 = sbr.rel (%p244) target = $region24
        $region23: #{link_predictor.1} parent=11 // pred_region
          _
        $region24: #{link_predictor.1} parent=11 // pred_fallthru
          _
        // Predicated region
        $region25: #{link_predictor.1} parent=11 // pred_check
          %p247 = pneg %p155
        $region26: #{link_predictor.1} parent=11 // pred_check_branch
          %249 = sbr.rel (%p247) target = $region28
        $region27: #{link_predictor.1} parent=11 // pred_region
          _
        $region28: #{link_predictor.1} parent=11 // pred_fallthru
          _
        // Predicated region
        $region29: #{link_predictor.1} parent=11 // pred_check
          %p250 = pneg %p176
        $region30: #{link_predictor.1} parent=11 // pred_check_branch
          %252 = sbr.rel (%p250) target = $region32
        $region31: #{link_predictor.1} parent=11 // pred_region
          _
        $region32: #{link_predictor.1} parent=11 // pred_fallthru
          _
        // Predicated region
        $region33: #{link_predictor.1} parent=11 // pred_check
          %p253 = pneg %p197
        $region34: #{link_predictor.1} parent=11 // pred_check_branch
          %255 = sbr.rel (%p253) target = $region36
        $region35: #{link_predictor.1} parent=11 // pred_region
          _
        $region36: #{link_predictor.1} parent=11 // pred_fallthru
          _
      $region12: #{link_predictor.1} parent=5 // pred_fallthru
        _
      %p256 = scmp.lt.s32.totalorder %s19, 4
      // Predicated region
      $region37: #{link_predictor.1} parent=5 // pred_check
        %p257 = pneg %p256
      $region38: #{link_predictor.1} parent=5 // pred_check_branch
        %259 = sbr.rel (%p257) target = $region40
      $region39: #{link_predictor.1} parent=5 // pred_region
        // Predicated region
        $region41: #{link_predictor.1} parent=39 // pred_check
          %p260 = pneg %p39
        $region42: #{link_predictor.1} parent=39 // pred_check_branch
          %262 = sbr.rel (%p260) target = $region44
        $region43: #{link_predictor.1} parent=39 // pred_region
          %s263 = smul.u32 128, %s19
          %p264 = scmp.lt.s32.totalorder %s263, 511
          %s265 = scalar_select %p264, %s263, 511
          %s266 = smul.addr %s265, 4
          %s267 = scalar_lea.vmem %s0, %s266
          %s268 = smul.u32 128, %s19
        $region44: #{link_predictor.1} parent=39 // pred_fallthru
          _
        // Predicated region
        $region45: #{link_predictor.1} parent=39 // pred_check
          %p269 = pneg %p65
        $region46: #{link_predictor.1} parent=39 // pred_check_branch
          %271 = sbr.rel (%p269) target = $region48
        $region47: #{link_predictor.1} parent=39 // pred_region
          %s272 = smul.u32 128, %s19
          %p273 = scmp.lt.s32.totalorder %s272, 511
          %s274 = scalar_select %p273, %s272, 511
          %s275 = smul.addr %s274, 4
          %s276 = scalar_lea.vmem %s1, %s275
          %s277 = smul.u32 128, %s19
        $region48: #{link_predictor.1} parent=39 // pred_fallthru
          _
      $region40: #{link_predictor.1} parent=5 // pred_fallthru
        _
      %p278 = scmp.le.s32.totalorder 1, %s19
      %p279 = scmp.lt.s32.totalorder %s19, 5
      %p280 = pnand %p278, %p279
      %p281 = pneg %p280
      // Predicated region
      $region49: #{link_predictor.1} parent=5 // pred_check
        _
      $region50: #{link_predictor.1} parent=5 // pred_check_branch
        %283 = sbr.rel (%p280) target = $region52
      $region51: #{link_predictor.1} parent=5 // pred_region
        %s284 = ssub.s32 %s19, 1
        %s285 = smul.u32 128, %s24
        %p286 = scmp.lt.s32.totalorder %s285, 511
        %s287 = scalar_select %p286, %s285, 511
        %s288 = smul.addr %s287, 4
        %s289 = scalar_lea.vmem %s0, %s288
        %p290 = pneg %p45
        %p291 = pneg %p42
        %s292 = smul.u32 128, %s24
        %p293 = scmp.lt.s32.totalorder %s292, 511
        %s294 = scalar_select %p293, %s292, 511
        %s295 = smul.addr %s294, 4
        %s296 = scalar_lea.vmem %s1, %s295
        %p297 = pneg %p71
        %p298 = pneg %p68
        %p299 = pneg %p92
        %p300 = pneg %p89
        %p301 = pneg %p113
        %p302 = pneg %p110
        %p303 = pneg %p134
        %p304 = pneg %p131
        %p305 = pneg %p155
        %p306 = pneg %p152
        %p307 = pneg %p176
        %p308 = pneg %p173
        %p309 = pneg %p197
        %p310 = pneg %p194
        %p311 = pneg %p223
        %p312 = pneg %p220
        %s313 = sand.u32 %s210, 1
        %s314 = scalar_lea.sflag [#allocation4], %s313
        %s315 = sand.u32 %s210, 1
        %s316 = smul.addr %s315, 8
        %s317 = scalar_lea.vmem [#allocation3], %s316
        %s318 = smul.u32 128, %s24
        %p319 = scmp.lt.s32.totalorder %s318, 511
        %s320 = scalar_select %p319, %s318, 511
        %s321 = smul.addr %s320, 4
        %s322 = scalar_lea.vmem %s0, %s321
        %s323 = smul.u32 128, %s24
        %s324 = smul.u32 128, %s24
        %p325 = scmp.lt.s32.totalorder %s324, 511
        %s326 = scalar_select %p325, %s324, 511
        %s327 = smul.addr %s326, 4
        %s328 = scalar_lea.vmem %s1, %s327
        %s329 = smul.u32 128, %s24
        %s330 = smul.u32 8, %s24
        %v331 = vld [vmem:[%s322] sm:$0xf]
        %v332 = vld [vmem:[%s322 + $0x4] sm:$0xf]
        %v333 = vld [vmem:[%s322 + $0x8] sm:$0xf]
        %v334 = vld [vmem:[%s322 + $0xc] sm:$0xf]
        %v335 = vld [vmem:[%s322 + $0x10] sm:$0xf]
        %v336 = vld [vmem:[%s322 + $0x14] sm:$0xf]
        %v337 = vld [vmem:[%s322 + $0x18] sm:$0xf]
        %v338 = vld [vmem:[%s322 + $0x1c] sm:$0xf]
        %v339 = vld [vmem:[%s322 + $0x20] sm:$0xf]
        %v340 = vld [vmem:[%s322 + $0x24] sm:$0xf]
        %v341 = vld [vmem:[%s322 + $0x28] sm:$0xf]
        %v342 = vld [vmem:[%s322 + $0x2c] sm:$0xf]
        %v343 = vld [vmem:[%s322 + $0x30] sm:$0xf]
        %v344 = vld [vmem:[%s322 + $0x34] sm:$0xf]
        %v345 = vld [vmem:[%s322 + $0x38] sm:$0xf]
        %v346 = vld [vmem:[%s322 + $0x3c] sm:$0xf]
        %v347 = vld [vmem:[%s322 + $0x40] sm:$0xf]
        %v348 = vld [vmem:[%s322 + $0x44] sm:$0xf]
        %v349 = vld [vmem:[%s322 + $0x48] sm:$0xf]
        %v350 = vld [vmem:[%s322 + $0x4c] sm:$0xf]
        %v351 = vld [vmem:[%s322 + $0x50] sm:$0xf]
        %v352 = vld [vmem:[%s322 + $0x54] sm:$0xf]
        %v353 = vld [vmem:[%s322 + $0x58] sm:$0xf]
        %v354 = vld [vmem:[%s322 + $0x5c] sm:$0xf]
        %v355 = vld [vmem:[%s322 + $0x60] sm:$0xf]
        %v356 = vld [vmem:[%s322 + $0x64] sm:$0xf]
        %v357 = vld [vmem:[%s322 + $0x68] sm:$0xf]
        %v358 = vld [vmem:[%s322 + $0x6c] sm:$0xf]
        %v359 = vld [vmem:[%s322 + $0x70] sm:$0xf]
        %v360 = vld [vmem:[%s322 + $0x74] sm:$0xf]
        %v361 = vld [vmem:[%s322 + $0x78] sm:$0xf]
        %v362 = vld [vmem:[%s322 + $0x7c] sm:$0xf]
        %v363 = vld [vmem:[%s322 + $0x80] sm:$0xf]
        %v364 = vld [vmem:[%s322 + $0x84] sm:$0xf]
        %v365 = vld [vmem:[%s322 + $0x88] sm:$0xf]
        %v366 = vld [vmem:[%s322 + $0x8c] sm:$0xf]
        %v367 = vld [vmem:[%s322 + $0x90] sm:$0xf]
        %v368 = vld [vmem:[%s322 + $0x94] sm:$0xf]
        %v369 = vld [vmem:[%s322 + $0x98] sm:$0xf]
        %v370 = vld [vmem:[%s322 + $0x9c] sm:$0xf]
        %v371 = vld [vmem:[%s322 + $0xa0] sm:$0xf]
        %v372 = vld [vmem:[%s322 + $0xa4] sm:$0xf]
        %v373 = vld [vmem:[%s322 + $0xa8] sm:$0xf]
        %v374 = vld [vmem:[%s322 + $0xac] sm:$0xf]
        %v375 = vld [vmem:[%s322 + $0xb0] sm:$0xf]
        %v376 = vld [vmem:[%s322 + $0xb4] sm:$0xf]
        %v377 = vld [vmem:[%s322 + $0xb8] sm:$0xf]
        %v378 = vld [vmem:[%s322 + $0xbc] sm:$0xf]
        %v379 = vld [vmem:[%s322 + $0xc0] sm:$0xf]
        %v380 = vld [vmem:[%s322 + $0xc4] sm:$0xf]
        %v381 = vld [vmem:[%s322 + $0xc8] sm:$0xf]
        %v382 = vld [vmem:[%s322 + $0xcc] sm:$0xf]
        %v383 = vld [vmem:[%s322 + $0xd0] sm:$0xf]
        %v384 = vld [vmem:[%s322 + $0xd4] sm:$0xf]
        %v385 = vld [vmem:[%s322 + $0xd8] sm:$0xf]
        %v386 = vld [vmem:[%s322 + $0xdc] sm:$0xf]
        %v387 = vld [vmem:[%s322 + $0xe0] sm:$0xf]
        %v388 = vld [vmem:[%s322 + $0xe4] sm:$0xf]
        %v389 = vld [vmem:[%s322 + $0xe8] sm:$0xf]
        %v390 = vld [vmem:[%s322 + $0xec] sm:$0xf]
        %v391 = vld [vmem:[%s322 + $0xf0] sm:$0xf]
        %v392 = vld [vmem:[%s322 + $0xf4] sm:$0xf]
        %v393 = vld [vmem:[%s322 + $0xf8] sm:$0xf]
        %v394 = vld [vmem:[%s322 + $0xfc] sm:$0xf]
        %v395 = vld [vmem:[%s322 + $0x100] sm:$0xf]
        %v396 = vld [vmem:[%s322 + $0x104] sm:$0xf]
        %v397 = vld [vmem:[%s322 + $0x108] sm:$0xf]
        %v398 = vld [vmem:[%s322 + $0x10c] sm:$0xf]
        %v399 = vld [vmem:[%s322 + $0x110] sm:$0xf]
        %v400 = vld [vmem:[%s322 + $0x114] sm:$0xf]
        %v401 = vld [vmem:[%s322 + $0x118] sm:$0xf]
        %v402 = vld [vmem:[%s322 + $0x11c] sm:$0xf]
        %v403 = vld [vmem:[%s322 + $0x120] sm:$0xf]
        %v404 = vld [vmem:[%s322 + $0x124] sm:$0xf]
        %v405 = vld [vmem:[%s322 + $0x128] sm:$0xf]
        %v406 = vld [vmem:[%s322 + $0x12c] sm:$0xf]
        %v407 = vld [vmem:[%s322 + $0x130] sm:$0xf]
        %v408 = vld [vmem:[%s322 + $0x134] sm:$0xf]
        %v409 = vld [vmem:[%s322 + $0x138] sm:$0xf]
        %v410 = vld [vmem:[%s322 + $0x13c] sm:$0xf]
        %v411 = vld [vmem:[%s322 + $0x140] sm:$0xf]
        %v412 = vld [vmem:[%s322 + $0x144] sm:$0xf]
        %v413 = vld [vmem:[%s322 + $0x148] sm:$0xf]
        %v414 = vld [vmem:[%s322 + $0x14c] sm:$0xf]
        %v415 = vld [vmem:[%s322 + $0x150] sm:$0xf]
        %v416 = vld [vmem:[%s322 + $0x154] sm:$0xf]
        %v417 = vld [vmem:[%s322 + $0x158] sm:$0xf]
        %v418 = vld [vmem:[%s322 + $0x15c] sm:$0xf]
        %v419 = vld [vmem:[%s322 + $0x160] sm:$0xf]
        %v420 = vld [vmem:[%s322 + $0x164] sm:$0xf]
        %v421 = vld [vmem:[%s322 + $0x168] sm:$0xf]
        %v422 = vld [vmem:[%s322 + $0x16c] sm:$0xf]
        %v423 = vld [vmem:[%s322 + $0x170] sm:$0xf]
        %v424 = vld [vmem:[%s322 + $0x174] sm:$0xf]
        %v425 = vld [vmem:[%s322 + $0x178] sm:$0xf]
        %v426 = vld [vmem:[%s322 + $0x17c] sm:$0xf]
        %v427 = vld [vmem:[%s322 + $0x180] sm:$0xf]
        %v428 = vld [vmem:[%s322 + $0x184] sm:$0xf]
        %v429 = vld [vmem:[%s322 + $0x188] sm:$0xf]
        %v430 = vld [vmem:[%s322 + $0x18c] sm:$0xf]
        %v431 = vld [vmem:[%s322 + $0x190] sm:$0xf]
        %v432 = vld [vmem:[%s322 + $0x194] sm:$0xf]
        %v433 = vld [vmem:[%s322 + $0x198] sm:$0xf]
        %v434 = vld [vmem:[%s322 + $0x19c] sm:$0xf]
        %v435 = vld [vmem:[%s322 + $0x1a0] sm:$0xf]
        %v436 = vld [vmem:[%s322 + $0x1a4] sm:$0xf]
        %v437 = vld [vmem:[%s322 + $0x1a8] sm:$0xf]
        %v438 = vld [vmem:[%s322 + $0x1ac] sm:$0xf]
        %v439 = vld [vmem:[%s322 + $0x1b0] sm:$0xf]
        %v440 = vld [vmem:[%s322 + $0x1b4] sm:$0xf]
        %v441 = vld [vmem:[%s322 + $0x1b8] sm:$0xf]
        %v442 = vld [vmem:[%s322 + $0x1bc] sm:$0xf]
        %v443 = vld [vmem:[%s322 + $0x1c0] sm:$0xf]
        %v444 = vld [vmem:[%s322 + $0x1c4] sm:$0xf]
        %v445 = vld [vmem:[%s322 + $0x1c8] sm:$0xf]
        %v446 = vld [vmem:[%s322 + $0x1cc] sm:$0xf]
        %v447 = vld [vmem:[%s322 + $0x1d0] sm:$0xf]
        %v448 = vld [vmem:[%s322 + $0x1d4] sm:$0xf]
        %v449 = vld [vmem:[%s322 + $0x1d8] sm:$0xf]
        %v450 = vld [vmem:[%s322 + $0x1dc] sm:$0xf]
        %v451 = vld [vmem:[%s322 + $0x1e0] sm:$0xf]
        %v452 = vld [vmem:[%s322 + $0x1e4] sm:$0xf]
        %v453 = vld [vmem:[%s322 + $0x1e8] sm:$0xf]
        %v454 = vld [vmem:[%s322 + $0x1ec] sm:$0xf]
        %v455 = vld [vmem:[%s322 + $0x1f0] sm:$0xf]
        %v456 = vld [vmem:[%s322 + $0x1f4] sm:$0xf]
        %v457 = vld [vmem:[%s322 + $0x1f8] sm:$0xf]
        %v458 = vld [vmem:[%s322 + $0x1fc] sm:$0xf]
        %v459 = vunpack.c.l.bf16 %v331
        %v460 = vunpack.c.l.bf16 %v332
        %v461 = vunpack.c.l.bf16 %v333
        %v462 = vunpack.c.l.bf16 %v334
        %v463 = vunpack.c.l.bf16 %v335
        %v464 = vunpack.c.l.bf16 %v336
        %v465 = vunpack.c.l.bf16 %v337
        %v466 = vunpack.c.l.bf16 %v338
        %v467 = vunpack.c.l.bf16 %v339
        %v468 = vunpack.c.l.bf16 %v340
        %v469 = vunpack.c.l.bf16 %v341
        %v470 = vunpack.c.l.bf16 %v342
        %v471 = vunpack.c.l.bf16 %v343
        %v472 = vunpack.c.l.bf16 %v344
        %v473 = vunpack.c.l.bf16 %v345
        %v474 = vunpack.c.l.bf16 %v346
        %v475 = vunpack.c.l.bf16 %v347
        %v476 = vunpack.c.l.bf16 %v348
        %v477 = vunpack.c.l.bf16 %v349
        %v478 = vunpack.c.l.bf16 %v350
        %v479 = vunpack.c.l.bf16 %v351
        %v480 = vunpack.c.l.bf16 %v352
        %v481 = vunpack.c.l.bf16 %v353
        %v482 = vunpack.c.l.bf16 %v354
        %v483 = vunpack.c.l.bf16 %v355
        %v484 = vunpack.c.l.bf16 %v356
        %v485 = vunpack.c.l.bf16 %v357
        %v486 = vunpack.c.l.bf16 %v358
        %v487 = vunpack.c.l.bf16 %v359
        %v488 = vunpack.c.l.bf16 %v360
        %v489 = vunpack.c.l.bf16 %v361
        %v490 = vunpack.c.l.bf16 %v362
        %v491 = vunpack.c.l.bf16 %v363
        %v492 = vunpack.c.l.bf16 %v364
        %v493 = vunpack.c.l.bf16 %v365
        %v494 = vunpack.c.l.bf16 %v366
        %v495 = vunpack.c.l.bf16 %v367
        %v496 = vunpack.c.l.bf16 %v368
        %v497 = vunpack.c.l.bf16 %v369
        %v498 = vunpack.c.l.bf16 %v370
        %v499 = vunpack.c.l.bf16 %v371
        %v500 = vunpack.c.l.bf16 %v372
        %v501 = vunpack.c.l.bf16 %v373
        %v502 = vunpack.c.l.bf16 %v374
        %v503 = vunpack.c.l.bf16 %v375
        %v504 = vunpack.c.l.bf16 %v376
        %v505 = vunpack.c.l.bf16 %v377
        %v506 = vunpack.c.l.bf16 %v378
        %v507 = vunpack.c.l.bf16 %v379
        %v508 = vunpack.c.l.bf16 %v380
        %v509 = vunpack.c.l.bf16 %v381
        %v510 = vunpack.c.l.bf16 %v382
        %v511 = vunpack.c.l.bf16 %v383
        %v512 = vunpack.c.l.bf16 %v384
        %v513 = vunpack.c.l.bf16 %v385
        %v514 = vunpack.c.l.bf16 %v386
        %v515 = vunpack.c.l.bf16 %v387
        %v516 = vunpack.c.l.bf16 %v388
        %v517 = vunpack.c.l.bf16 %v389
        %v518 = vunpack.c.l.bf16 %v390
        %v519 = vunpack.c.l.bf16 %v391
        %v520 = vunpack.c.l.bf16 %v392
        %v521 = vunpack.c.l.bf16 %v393
        %v522 = vunpack.c.l.bf16 %v394
        %v523 = vunpack.c.l.bf16 %v395
        %v524 = vunpack.c.l.bf16 %v396
        %v525 = vunpack.c.l.bf16 %v397
        %v526 = vunpack.c.l.bf16 %v398
        %v527 = vunpack.c.l.bf16 %v399
        %v528 = vunpack.c.l.bf16 %v400
        %v529 = vunpack.c.l.bf16 %v401
        %v530 = vunpack.c.l.bf16 %v402
        %v531 = vunpack.c.l.bf16 %v403
        %v532 = vunpack.c.l.bf16 %v404
        %v533 = vunpack.c.l.bf16 %v405
        %v534 = vunpack.c.l.bf16 %v406
        %v535 = vunpack.c.l.bf16 %v407
        %v536 = vunpack.c.l.bf16 %v408
        %v537 = vunpack.c.l.bf16 %v409
        %v538 = vunpack.c.l.bf16 %v410
        %v539 = vunpack.c.l.bf16 %v411
        %v540 = vunpack.c.l.bf16 %v412
        %v541 = vunpack.c.l.bf16 %v413
        %v542 = vunpack.c.l.bf16 %v414
        %v543 = vunpack.c.l.bf16 %v415
        %v544 = vunpack.c.l.bf16 %v416
        %v545 = vunpack.c.l.bf16 %v417
        %v546 = vunpack.c.l.bf16 %v418
        %v547 = vunpack.c.l.bf16 %v419
        %v548 = vunpack.c.l.bf16 %v420
        %v549 = vunpack.c.l.bf16 %v421
        %v550 = vunpack.c.l.bf16 %v422
        %v551 = vunpack.c.l.bf16 %v423
        %v552 = vunpack.c.l.bf16 %v424
        %v553 = vunpack.c.l.bf16 %v425
        %v554 = vunpack.c.l.bf16 %v426
        %v555 = vunpack.c.l.bf16 %v427
        %v556 = vunpack.c.l.bf16 %v428
        %v557 = vunpack.c.l.bf16 %v429
        %v558 = vunpack.c.l.bf16 %v430
        %v559 = vunpack.c.l.bf16 %v431
        %v560 = vunpack.c.l.bf16 %v432
        %v561 = vunpack.c.l.bf16 %v433
        %v562 = vunpack.c.l.bf16 %v434
        %v563 = vunpack.c.l.bf16 %v435
        %v564 = vunpack.c.l.bf16 %v436
        %v565 = vunpack.c.l.bf16 %v437
        %v566 = vunpack.c.l.bf16 %v438
        %v567 = vunpack.c.l.bf16 %v439
        %v568 = vunpack.c.l.bf16 %v440
        %v569 = vunpack.c.l.bf16 %v441
        %v570 = vunpack.c.l.bf16 %v442
        %v571 = vunpack.c.l.bf16 %v443
        %v572 = vunpack.c.l.bf16 %v444
        %v573 = vunpack.c.l.bf16 %v445
        %v574 = vunpack.c.l.bf16 %v446
        %v575 = vunpack.c.l.bf16 %v447
        %v576 = vunpack.c.l.bf16 %v448
        %v577 = vunpack.c.l.bf16 %v449
        %v578 = vunpack.c.l.bf16 %v450
        %v579 = vunpack.c.l.bf16 %v451
        %v580 = vunpack.c.l.bf16 %v452
        %v581 = vunpack.c.l.bf16 %v453
        %v582 = vunpack.c.l.bf16 %v454
        %v583 = vunpack.c.l.bf16 %v455
        %v584 = vunpack.c.l.bf16 %v456
        %v585 = vunpack.c.l.bf16 %v457
        %v586 = vunpack.c.l.bf16 %v458
        %v587 = vld [vmem:[%s328] sm:$0xf]
        %v588 = vld [vmem:[%s328 + $0x4] sm:$0xf]
        %v589 = vld [vmem:[%s328 + $0x8] sm:$0xf]
        %v590 = vld [vmem:[%s328 + $0xc] sm:$0xf]
        %v591 = vld [vmem:[%s328 + $0x10] sm:$0xf]
        %v592 = vld [vmem:[%s328 + $0x14] sm:$0xf]
        %v593 = vld [vmem:[%s328 + $0x18] sm:$0xf]
        %v594 = vld [vmem:[%s328 + $0x1c] sm:$0xf]
        %v595 = vld [vmem:[%s328 + $0x20] sm:$0xf]
        %v596 = vld [vmem:[%s328 + $0x24] sm:$0xf]
        %v597 = vld [vmem:[%s328 + $0x28] sm:$0xf]
        %v598 = vld [vmem:[%s328 + $0x2c] sm:$0xf]
        %v599 = vld [vmem:[%s328 + $0x30] sm:$0xf]
        %v600 = vld [vmem:[%s328 + $0x34] sm:$0xf]
        %v601 = vld [vmem:[%s328 + $0x38] sm:$0xf]
        %v602 = vld [vmem:[%s328 + $0x3c] sm:$0xf]
        %v603 = vld [vmem:[%s328 + $0x40] sm:$0xf]
        %v604 = vld [vmem:[%s328 + $0x44] sm:$0xf]
        %v605 = vld [vmem:[%s328 + $0x48] sm:$0xf]
        %v606 = vld [vmem:[%s328 + $0x4c] sm:$0xf]
        %v607 = vld [vmem:[%s328 + $0x50] sm:$0xf]
        %v608 = vld [vmem:[%s328 + $0x54] sm:$0xf]
        %v609 = vld [vmem:[%s328 + $0x58] sm:$0xf]
        %v610 = vld [vmem:[%s328 + $0x5c] sm:$0xf]
        %v611 = vld [vmem:[%s328 + $0x60] sm:$0xf]
        %v612 = vld [vmem:[%s328 + $0x64] sm:$0xf]
        %v613 = vld [vmem:[%s328 + $0x68] sm:$0xf]
        %v614 = vld [vmem:[%s328 + $0x6c] sm:$0xf]
        %v615 = vld [vmem:[%s328 + $0x70] sm:$0xf]
        %v616 = vld [vmem:[%s328 + $0x74] sm:$0xf]
        %v617 = vld [vmem:[%s328 + $0x78] sm:$0xf]
        %v618 = vld [vmem:[%s328 + $0x7c] sm:$0xf]
        %v619 = vld [vmem:[%s328 + $0x80] sm:$0xf]
        %v620 = vld [vmem:[%s328 + $0x84] sm:$0xf]
        %v621 = vld [vmem:[%s328 + $0x88] sm:$0xf]
        %v622 = vld [vmem:[%s328 + $0x8c] sm:$0xf]
        %v623 = vld [vmem:[%s328 + $0x90] sm:$0xf]
        %v624 = vld [vmem:[%s328 + $0x94] sm:$0xf]
        %v625 = vld [vmem:[%s328 + $0x98] sm:$0xf]
        %v626 = vld [vmem:[%s328 + $0x9c] sm:$0xf]
        %v627 = vld [vmem:[%s328 + $0xa0] sm:$0xf]
        %v628 = vld [vmem:[%s328 + $0xa4] sm:$0xf]
        %v629 = vld [vmem:[%s328 + $0xa8] sm:$0xf]
        %v630 = vld [vmem:[%s328 + $0xac] sm:$0xf]
        %v631 = vld [vmem:[%s328 + $0xb0] sm:$0xf]
        %v632 = vld [vmem:[%s328 + $0xb4] sm:$0xf]
        %v633 = vld [vmem:[%s328 + $0xb8] sm:$0xf]
        %v634 = vld [vmem:[%s328 + $0xbc] sm:$0xf]
        %v635 = vld [vmem:[%s328 + $0xc0] sm:$0xf]
        %v636 = vld [vmem:[%s328 + $0xc4] sm:$0xf]
        %v637 = vld [vmem:[%s328 + $0xc8] sm:$0xf]
        %v638 = vld [vmem:[%s328 + $0xcc] sm:$0xf]
        %v639 = vld [vmem:[%s328 + $0xd0] sm:$0xf]
        %v640 = vld [vmem:[%s328 + $0xd4] sm:$0xf]
        %v641 = vld [vmem:[%s328 + $0xd8] sm:$0xf]
        %v642 = vld [vmem:[%s328 + $0xdc] sm:$0xf]
        %v643 = vld [vmem:[%s328 + $0xe0] sm:$0xf]
        %v644 = vld [vmem:[%s328 + $0xe4] sm:$0xf]
        %v645 = vld [vmem:[%s328 + $0xe8] sm:$0xf]
        %v646 = vld [vmem:[%s328 + $0xec] sm:$0xf]
        %v647 = vld [vmem:[%s328 + $0xf0] sm:$0xf]
        %v648 = vld [vmem:[%s328 + $0xf4] sm:$0xf]
        %v649 = vld [vmem:[%s328 + $0xf8] sm:$0xf]
        %v650 = vld [vmem:[%s328 + $0xfc] sm:$0xf]
        %v651 = vld [vmem:[%s328 + $0x100] sm:$0xf]
        %v652 = vld [vmem:[%s328 + $0x104] sm:$0xf]
        %v653 = vld [vmem:[%s328 + $0x108] sm:$0xf]
        %v654 = vld [vmem:[%s328 + $0x10c] sm:$0xf]
        %v655 = vld [vmem:[%s328 + $0x110] sm:$0xf]
        %v656 = vld [vmem:[%s328 + $0x114] sm:$0xf]
        %v657 = vld [vmem:[%s328 + $0x118] sm:$0xf]
        %v658 = vld [vmem:[%s328 + $0x11c] sm:$0xf]
        %v659 = vld [vmem:[%s328 + $0x120] sm:$0xf]
        %v660 = vld [vmem:[%s328 + $0x124] sm:$0xf]
        %v661 = vld [vmem:[%s328 + $0x128] sm:$0xf]
        %v662 = vld [vmem:[%s328 + $0x12c] sm:$0xf]
        %v663 = vld [vmem:[%s328 + $0x130] sm:$0xf]
        %v664 = vld [vmem:[%s328 + $0x134] sm:$0xf]
        %v665 = vld [vmem:[%s328 + $0x138] sm:$0xf]
        %v666 = vld [vmem:[%s328 + $0x13c] sm:$0xf]
        %v667 = vld [vmem:[%s328 + $0x140] sm:$0xf]
        %v668 = vld [vmem:[%s328 + $0x144] sm:$0xf]
        %v669 = vld [vmem:[%s328 + $0x148] sm:$0xf]
        %v670 = vld [vmem:[%s328 + $0x14c] sm:$0xf]
        %v671 = vld [vmem:[%s328 + $0x150] sm:$0xf]
        %v672 = vld [vmem:[%s328 + $0x154] sm:$0xf]
        %v673 = vld [vmem:[%s328 + $0x158] sm:$0xf]
        %v674 = vld [vmem:[%s328 + $0x15c] sm:$0xf]
        %v675 = vld [vmem:[%s328 + $0x160] sm:$0xf]
        %v676 = vld [vmem:[%s328 + $0x164] sm:$0xf]
        %v677 = vld [vmem:[%s328 + $0x168] sm:$0xf]
        %v678 = vld [vmem:[%s328 + $0x16c] sm:$0xf]
        %v679 = vld [vmem:[%s328 + $0x170] sm:$0xf]
        %v680 = vld [vmem:[%s328 + $0x174] sm:$0xf]
        %v681 = vld [vmem:[%s328 + $0x178] sm:$0xf]
        %v682 = vld [vmem:[%s328 + $0x17c] sm:$0xf]
        %v683 = vld [vmem:[%s328 + $0x180] sm:$0xf]
        %v684 = vld [vmem:[%s328 + $0x184] sm:$0xf]
        %v685 = vld [vmem:[%s328 + $0x188] sm:$0xf]
        %v686 = vld [vmem:[%s328 + $0x18c] sm:$0xf]
        %v687 = vld [vmem:[%s328 + $0x190] sm:$0xf]
        %v688 = vld [vmem:[%s328 + $0x194] sm:$0xf]
        %v689 = vld [vmem:[%s328 + $0x198] sm:$0xf]
        %v690 = vld [vmem:[%s328 + $0x19c] sm:$0xf]
        %v691 = vld [vmem:[%s328 + $0x1a0] sm:$0xf]
        %v692 = vld [vmem:[%s328 + $0x1a4] sm:$0xf]
        %v693 = vld [vmem:[%s328 + $0x1a8] sm:$0xf]
        %v694 = vld [vmem:[%s328 + $0x1ac] sm:$0xf]
        %v695 = vld [vmem:[%s328 + $0x1b0] sm:$0xf]
        %v696 = vld [vmem:[%s328 + $0x1b4] sm:$0xf]
        %v697 = vld [vmem:[%s328 + $0x1b8] sm:$0xf]
        %v698 = vld [vmem:[%s328 + $0x1bc] sm:$0xf]
        %v699 = vld [vmem:[%s328 + $0x1c0] sm:$0xf]
        %v700 = vld [vmem:[%s328 + $0x1c4] sm:$0xf]
        %v701 = vld [vmem:[%s328 + $0x1c8] sm:$0xf]
        %v702 = vld [vmem:[%s328 + $0x1cc] sm:$0xf]
        %v703 = vld [vmem:[%s328 + $0x1d0] sm:$0xf]
        %v704 = vld [vmem:[%s328 + $0x1d4] sm:$0xf]
        %v705 = vld [vmem:[%s328 + $0x1d8] sm:$0xf]
        %v706 = vld [vmem:[%s328 + $0x1dc] sm:$0xf]
        %v707 = vld [vmem:[%s328 + $0x1e0] sm:$0xf]
        %v708 = vld [vmem:[%s328 + $0x1e4] sm:$0xf]
        %v709 = vld [vmem:[%s328 + $0x1e8] sm:$0xf]
        %v710 = vld [vmem:[%s328 + $0x1ec] sm:$0xf]
        %v711 = vld [vmem:[%s328 + $0x1f0] sm:$0xf]
        %v712 = vld [vmem:[%s328 + $0x1f4] sm:$0xf]
        %v713 = vld [vmem:[%s328 + $0x1f8] sm:$0xf]
        %v714 = vld [vmem:[%s328 + $0x1fc] sm:$0xf]
        %v715 = vunpack.c.l.bf16 %v587
        %v716 = vunpack.c.l.bf16 %v588
        %v717 = vunpack.c.l.bf16 %v589
        %v718 = vunpack.c.l.bf16 %v590
        %v719 = vunpack.c.l.bf16 %v591
        %v720 = vunpack.c.l.bf16 %v592
        %v721 = vunpack.c.l.bf16 %v593
        %v722 = vunpack.c.l.bf16 %v594
        %v723 = vunpack.c.l.bf16 %v595
        %v724 = vunpack.c.l.bf16 %v596
        %v725 = vunpack.c.l.bf16 %v597
        %v726 = vunpack.c.l.bf16 %v598
        %v727 = vunpack.c.l.bf16 %v599
        %v728 = vunpack.c.l.bf16 %v600
        %v729 = vunpack.c.l.bf16 %v601
        %v730 = vunpack.c.l.bf16 %v602
        %v731 = vunpack.c.l.bf16 %v603
        %v732 = vunpack.c.l.bf16 %v604
        %v733 = vunpack.c.l.bf16 %v605
        %v734 = vunpack.c.l.bf16 %v606
        %v735 = vunpack.c.l.bf16 %v607
        %v736 = vunpack.c.l.bf16 %v608
        %v737 = vunpack.c.l.bf16 %v609
        %v738 = vunpack.c.l.bf16 %v610
        %v739 = vunpack.c.l.bf16 %v611
        %v740 = vunpack.c.l.bf16 %v612
        %v741 = vunpack.c.l.bf16 %v613
        %v742 = vunpack.c.l.bf16 %v614
        %v743 = vunpack.c.l.bf16 %v615
        %v744 = vunpack.c.l.bf16 %v616
        %v745 = vunpack.c.l.bf16 %v617
        %v746 = vunpack.c.l.bf16 %v618
        %v747 = vunpack.c.l.bf16 %v619
        %v748 = vunpack.c.l.bf16 %v620
        %v749 = vunpack.c.l.bf16 %v621
        %v750 = vunpack.c.l.bf16 %v622
        %v751 = vunpack.c.l.bf16 %v623
        %v752 = vunpack.c.l.bf16 %v624
        %v753 = vunpack.c.l.bf16 %v625
        %v754 = vunpack.c.l.bf16 %v626
        %v755 = vunpack.c.l.bf16 %v627
        %v756 = vunpack.c.l.bf16 %v628
        %v757 = vunpack.c.l.bf16 %v629
        %v758 = vunpack.c.l.bf16 %v630
        %v759 = vunpack.c.l.bf16 %v631
        %v760 = vunpack.c.l.bf16 %v632
        %v761 = vunpack.c.l.bf16 %v633
        %v762 = vunpack.c.l.bf16 %v634
        %v763 = vunpack.c.l.bf16 %v635
        %v764 = vunpack.c.l.bf16 %v636
        %v765 = vunpack.c.l.bf16 %v637
        %v766 = vunpack.c.l.bf16 %v638
        %v767 = vunpack.c.l.bf16 %v639
        %v768 = vunpack.c.l.bf16 %v640
        %v769 = vunpack.c.l.bf16 %v641
        %v770 = vunpack.c.l.bf16 %v642
        %v771 = vunpack.c.l.bf16 %v643
        %v772 = vunpack.c.l.bf16 %v644
        %v773 = vunpack.c.l.bf16 %v645
        %v774 = vunpack.c.l.bf16 %v646
        %v775 = vunpack.c.l.bf16 %v647
        %v776 = vunpack.c.l.bf16 %v648
        %v777 = vunpack.c.l.bf16 %v649
        %v778 = vunpack.c.l.bf16 %v650
        %v779 = vunpack.c.l.bf16 %v651
        %v780 = vunpack.c.l.bf16 %v652
        %v781 = vunpack.c.l.bf16 %v653
        %v782 = vunpack.c.l.bf16 %v654
        %v783 = vunpack.c.l.bf16 %v655
        %v784 = vunpack.c.l.bf16 %v656
        %v785 = vunpack.c.l.bf16 %v657
        %v786 = vunpack.c.l.bf16 %v658
        %v787 = vunpack.c.l.bf16 %v659
        %v788 = vunpack.c.l.bf16 %v660
        %v789 = vunpack.c.l.bf16 %v661
        %v790 = vunpack.c.l.bf16 %v662
        %v791 = vunpack.c.l.bf16 %v663
        %v792 = vunpack.c.l.bf16 %v664
        %v793 = vunpack.c.l.bf16 %v665
        %v794 = vunpack.c.l.bf16 %v666
        %v795 = vunpack.c.l.bf16 %v667
        %v796 = vunpack.c.l.bf16 %v668
        %v797 = vunpack.c.l.bf16 %v669
        %v798 = vunpack.c.l.bf16 %v670
        %v799 = vunpack.c.l.bf16 %v671
        %v800 = vunpack.c.l.bf16 %v672
        %v801 = vunpack.c.l.bf16 %v673
        %v802 = vunpack.c.l.bf16 %v674
        %v803 = vunpack.c.l.bf16 %v675
        %v804 = vunpack.c.l.bf16 %v676
        %v805 = vunpack.c.l.bf16 %v677
        %v806 = vunpack.c.l.bf16 %v678
        %v807 = vunpack.c.l.bf16 %v679
        %v808 = vunpack.c.l.bf16 %v680
        %v809 = vunpack.c.l.bf16 %v681
        %v810 = vunpack.c.l.bf16 %v682
        %v811 = vunpack.c.l.bf16 %v683
        %v812 = vunpack.c.l.bf16 %v684
        %v813 = vunpack.c.l.bf16 %v685
        %v814 = vunpack.c.l.bf16 %v686
        %v815 = vunpack.c.l.bf16 %v687
        %v816 = vunpack.c.l.bf16 %v688
        %v817 = vunpack.c.l.bf16 %v689
        %v818 = vunpack.c.l.bf16 %v690
        %v819 = vunpack.c.l.bf16 %v691
        %v820 = vunpack.c.l.bf16 %v692
        %v821 = vunpack.c.l.bf16 %v693
        %v822 = vunpack.c.l.bf16 %v694
        %v823 = vunpack.c.l.bf16 %v695
        %v824 = vunpack.c.l.bf16 %v696
        %v825 = vunpack.c.l.bf16 %v697
        %v826 = vunpack.c.l.bf16 %v698
        %v827 = vunpack.c.l.bf16 %v699
        %v828 = vunpack.c.l.bf16 %v700
        %v829 = vunpack.c.l.bf16 %v701
        %v830 = vunpack.c.l.bf16 %v702
        %v831 = vunpack.c.l.bf16 %v703
        %v832 = vunpack.c.l.bf16 %v704
        %v833 = vunpack.c.l.bf16 %v705
        %v834 = vunpack.c.l.bf16 %v706
        %v835 = vunpack.c.l.bf16 %v707
        %v836 = vunpack.c.l.bf16 %v708
        %v837 = vunpack.c.l.bf16 %v709
        %v838 = vunpack.c.l.bf16 %v710
        %v839 = vunpack.c.l.bf16 %v711
        %v840 = vunpack.c.l.bf16 %v712
        %v841 = vunpack.c.l.bf16 %v713
        %v842 = vunpack.c.l.bf16 %v714
        %v843 = vmul.f32 %v459, %v715
        %v844 = vmul.f32 %v460, %v716
        %v845 = vmul.f32 %v461, %v717
        %v846 = vmul.f32 %v462, %v718
        %v847 = vmul.f32 %v463, %v719
        %v848 = vmul.f32 %v464, %v720
        %v849 = vmul.f32 %v465, %v721
        %v850 = vmul.f32 %v466, %v722
        %v851 = vmul.f32 %v467, %v723
        %v852 = vmul.f32 %v468, %v724
        %v853 = vmul.f32 %v469, %v725
        %v854 = vmul.f32 %v470, %v726
        %v855 = vmul.f32 %v471, %v727
        %v856 = vmul.f32 %v472, %v728
        %v857 = vmul.f32 %v473, %v729
        %v858 = vmul.f32 %v474, %v730
        %v859 = vmul.f32 %v475, %v731
        %v860 = vmul.f32 %v476, %v732
        %v861 = vmul.f32 %v477, %v733
        %v862 = vmul.f32 %v478, %v734
        %v863 = vmul.f32 %v479, %v735
        %v864 = vmul.f32 %v480, %v736
        %v865 = vmul.f32 %v481, %v737
        %v866 = vmul.f32 %v482, %v738
        %v867 = vmul.f32 %v483, %v739
        %v868 = vmul.f32 %v484, %v740
        %v869 = vmul.f32 %v485, %v741
        %v870 = vmul.f32 %v486, %v742
        %v871 = vmul.f32 %v487, %v743
        %v872 = vmul.f32 %v488, %v744
        %v873 = vmul.f32 %v489, %v745
        %v874 = vmul.f32 %v490, %v746
        %v875 = vmul.f32 %v491, %v747
        %v876 = vmul.f32 %v492, %v748
        %v877 = vmul.f32 %v493, %v749
        %v878 = vmul.f32 %v494, %v750
        %v879 = vmul.f32 %v495, %v751
        %v880 = vmul.f32 %v496, %v752
        %v881 = vmul.f32 %v497, %v753
        %v882 = vmul.f32 %v498, %v754
        %v883 = vmul.f32 %v499, %v755
        %v884 = vmul.f32 %v500, %v756
        %v885 = vmul.f32 %v501, %v757
        %v886 = vmul.f32 %v502, %v758
        %v887 = vmul.f32 %v503, %v759
        %v888 = vmul.f32 %v504, %v760
        %v889 = vmul.f32 %v505, %v761
        %v890 = vmul.f32 %v506, %v762
        %v891 = vmul.f32 %v507, %v763
        %v892 = vmul.f32 %v508, %v764
        %v893 = vmul.f32 %v509, %v765
        %v894 = vmul.f32 %v510, %v766
        %v895 = vmul.f32 %v511, %v767
        %v896 = vmul.f32 %v512, %v768
        %v897 = vmul.f32 %v513, %v769
        %v898 = vmul.f32 %v514, %v770
        %v899 = vmul.f32 %v515, %v771
        %v900 = vmul.f32 %v516, %v772
        %v901 = vmul.f32 %v517, %v773
        %v902 = vmul.f32 %v518, %v774
        %v903 = vmul.f32 %v519, %v775
        %v904 = vmul.f32 %v520, %v776
        %v905 = vmul.f32 %v521, %v777
        %v906 = vmul.f32 %v522, %v778
        %v907 = vmul.f32 %v523, %v779
        %v908 = vmul.f32 %v524, %v780
        %v909 = vmul.f32 %v525, %v781
        %v910 = vmul.f32 %v526, %v782
        %v911 = vmul.f32 %v527, %v783
        %v912 = vmul.f32 %v528, %v784
        %v913 = vmul.f32 %v529, %v785
        %v914 = vmul.f32 %v530, %v786
        %v915 = vmul.f32 %v531, %v787
        %v916 = vmul.f32 %v532, %v788
        %v917 = vmul.f32 %v533, %v789
        %v918 = vmul.f32 %v534, %v790
        %v919 = vmul.f32 %v535, %v791
        %v920 = vmul.f32 %v536, %v792
        %v921 = vmul.f32 %v537, %v793
        %v922 = vmul.f32 %v538, %v794
        %v923 = vmul.f32 %v539, %v795
        %v924 = vmul.f32 %v540, %v796
        %v925 = vmul.f32 %v541, %v797
        %v926 = vmul.f32 %v542, %v798
        %v927 = vmul.f32 %v543, %v799
        %v928 = vmul.f32 %v544, %v800
        %v929 = vmul.f32 %v545, %v801
        %v930 = vmul.f32 %v546, %v802
        %v931 = vmul.f32 %v547, %v803
        %v932 = vmul.f32 %v548, %v804
        %v933 = vmul.f32 %v549, %v805
        %v934 = vmul.f32 %v550, %v806
        %v935 = vmul.f32 %v551, %v807
        %v936 = vmul.f32 %v552, %v808
        %v937 = vmul.f32 %v553, %v809
        %v938 = vmul.f32 %v554, %v810
        %v939 = vmul.f32 %v555, %v811
        %v940 = vmul.f32 %v556, %v812
        %v941 = vmul.f32 %v557, %v813
        %v942 = vmul.f32 %v558, %v814
        %v943 = vmul.f32 %v559, %v815
        %v944 = vmul.f32 %v560, %v816
        %v945 = vmul.f32 %v561, %v817
        %v946 = vmul.f32 %v562, %v818
        %v947 = vmul.f32 %v563, %v819
        %v948 = vmul.f32 %v564, %v820
        %v949 = vmul.f32 %v565, %v821
        %v950 = vmul.f32 %v566, %v822
        %v951 = vmul.f32 %v567, %v823
        %v952 = vmul.f32 %v568, %v824
        %v953 = vmul.f32 %v569, %v825
        %v954 = vmul.f32 %v570, %v826
        %v955 = vmul.f32 %v571, %v827
        %v956 = vmul.f32 %v572, %v828
        %v957 = vmul.f32 %v573, %v829
        %v958 = vmul.f32 %v574, %v830
        %v959 = vmul.f32 %v575, %v831
        %v960 = vmul.f32 %v576, %v832
        %v961 = vmul.f32 %v577, %v833
        %v962 = vmul.f32 %v578, %v834
        %v963 = vmul.f32 %v579, %v835
        %v964 = vmul.f32 %v580, %v836
        %v965 = vmul.f32 %v581, %v837
        %v966 = vmul.f32 %v582, %v838
        %v967 = vmul.f32 %v583, %v839
        %v968 = vmul.f32 %v584, %v840
        %v969 = vmul.f32 %v585, %v841
        %v970 = vmul.f32 %v586, %v842
        %v971 = vld [vmem:[%s2] sm:$0xff]
        %v972 = vld [vmem:[%s2 + $0x8] sm:$0xff]
        %v973 = vld [vmem:[%s2 + $0x10] sm:$0xff]
        %v974 = vld [vmem:[%s2 + $0x18] sm:$0xff]
        %v975 = vld [vmem:[%s3] sm:$0x1]
        %v977 = vlaneseq
        %v978 = vshrl.u32 %v977, 7
        %v979 = vsub.s32 0, %v978
        %v980 = vrot.slane %v975, %v979
        %vm982 = vcmask 261120
        %v984 = vsel %vm982, %v843, 0
        %v987 = vsel %vm982, %v844, 0
        %v990 = vsel %vm982, %v845, 0
        %v993 = vsel %vm982, %v846, 0
        %v996 = vsel %vm982, %v847, 0
        %v999 = vsel %vm982, %v848, 0
        %v1002 = vsel %vm982, %v849, 0
        %v1005 = vsel %vm982, %v850, 0
        %v1008 = vsel %vm982, %v851, 0
        %v1011 = vsel %vm982, %v852, 0
        %v1014 = vsel %vm982, %v853, 0
        %v1017 = vsel %vm982, %v854, 0
        %v1020 = vsel %vm982, %v855, 0
        %v1023 = vsel %vm982, %v856, 0
        %v1026 = vsel %vm982, %v857, 0
        %v1029 = vsel %vm982, %v858, 0
        %v1032 = vsel %vm982, %v859, 0
        %v1035 = vsel %vm982, %v860, 0
        %v1038 = vsel %vm982, %v861, 0
        %v1041 = vsel %vm982, %v862, 0
        %v1044 = vsel %vm982, %v863, 0
        %v1047 = vsel %vm982, %v864, 0
        %v1050 = vsel %vm982, %v865, 0
        %v1053 = vsel %vm982, %v866, 0
        %v1056 = vsel %vm982, %v867, 0
        %v1059 = vsel %vm982, %v868, 0
        %v1062 = vsel %vm982, %v869, 0
        %v1065 = vsel %vm982, %v870, 0
        %v1068 = vsel %vm982, %v871, 0
        %v1071 = vsel %vm982, %v872, 0
        %v1074 = vsel %vm982, %v873, 0
        %v1077 = vsel %vm982, %v874, 0
        %v1080 = vsel %vm982, %v875, 0
        %v1083 = vsel %vm982, %v876, 0
        %v1086 = vsel %vm982, %v877, 0
        %v1089 = vsel %vm982, %v878, 0
        %v1092 = vsel %vm982, %v879, 0
        %v1095 = vsel %vm982, %v880, 0
        %v1098 = vsel %vm982, %v881, 0
        %v1101 = vsel %vm982, %v882, 0
        %v1104 = vsel %vm982, %v883, 0
        %v1107 = vsel %vm982, %v884, 0
        %v1110 = vsel %vm982, %v885, 0
        %v1113 = vsel %vm982, %v886, 0
        %v1116 = vsel %vm982, %v887, 0
        %v1119 = vsel %vm982, %v888, 0
        %v1122 = vsel %vm982, %v889, 0
        %v1125 = vsel %vm982, %v890, 0
        %v1128 = vsel %vm982, %v891, 0
        %v1131 = vsel %vm982, %v892, 0
        %v1134 = vsel %vm982, %v893, 0
        %v1137 = vsel %vm982, %v894, 0
        %v1140 = vsel %vm982, %v895, 0
        %v1143 = vsel %vm982, %v896, 0
        %v1146 = vsel %vm982, %v897, 0
        %v1149 = vsel %vm982, %v898, 0
        %v1152 = vsel %vm982, %v899, 0
        %v1155 = vsel %vm982, %v900, 0
        %v1158 = vsel %vm982, %v901, 0
        %v1161 = vsel %vm982, %v902, 0
        %v1164 = vsel %vm982, %v903, 0
        %v1167 = vsel %vm982, %v904, 0
        %v1170 = vsel %vm982, %v905, 0
        %v1173 = vsel %vm982, %v906, 0
        %v1176 = vsel %vm982, %v907, 0
        %v1179 = vsel %vm982, %v908, 0
        %v1182 = vsel %vm982, %v909, 0
        %v1185 = vsel %vm982, %v910, 0
        %v1188 = vsel %vm982, %v911, 0
        %v1191 = vsel %vm982, %v912, 0
        %v1194 = vsel %vm982, %v913, 0
        %v1197 = vsel %vm982, %v914, 0
        %v1200 = vsel %vm982, %v915, 0
        %v1203 = vsel %vm982, %v916, 0
        %v1206 = vsel %vm982, %v917, 0
        %v1209 = vsel %vm982, %v918, 0
        %v1212 = vsel %vm982, %v919, 0
        %v1215 = vsel %vm982, %v920, 0
        %v1218 = vsel %vm982, %v921, 0
        %v1221 = vsel %vm982, %v922, 0
        %v1224 = vsel %vm982, %v923, 0
        %v1227 = vsel %vm982, %v924, 0
        %v1230 = vsel %vm982, %v925, 0
        %v1233 = vsel %vm982, %v926, 0
        %v1236 = vsel %vm982, %v927, 0
        %v1239 = vsel %vm982, %v928, 0
        %v1242 = vsel %vm982, %v929, 0
        %v1245 = vsel %vm982, %v930, 0
        %v1248 = vsel %vm982, %v931, 0
        %v1251 = vsel %vm982, %v932, 0
        %v1254 = vsel %vm982, %v933, 0
        %v1257 = vsel %vm982, %v934, 0
        %v1260 = vsel %vm982, %v935, 0
        %v1263 = vsel %vm982, %v936, 0
        %v1266 = vsel %vm982, %v937, 0
        %v1269 = vsel %vm982, %v938, 0
        %v1272 = vsel %vm982, %v939, 0
        %v1275 = vsel %vm982, %v940, 0
        %v1278 = vsel %vm982, %v941, 0
        %v1281 = vsel %vm982, %v942, 0
        %v1284 = vsel %vm982, %v943, 0
        %v1287 = vsel %vm982, %v944, 0
        %v1290 = vsel %vm982, %v945, 0
        %v1293 = vsel %vm982, %v946, 0
        %v1296 = vsel %vm982, %v947, 0
        %v1299 = vsel %vm982, %v948, 0
        %v1302 = vsel %vm982, %v949, 0
        %v1305 = vsel %vm982, %v950, 0
        %v1308 = vsel %vm982, %v951, 0
        %v1311 = vsel %vm982, %v952, 0
        %v1314 = vsel %vm982, %v953, 0
        %v1317 = vsel %vm982, %v954, 0
        %v1320 = vsel %vm982, %v955, 0
        %v1323 = vsel %vm982, %v956, 0
        %v1326 = vsel %vm982, %v957, 0
        %v1329 = vsel %vm982, %v958, 0
        %v1332 = vsel %vm982, %v959, 0
        %v1335 = vsel %vm982, %v960, 0
        %v1338 = vsel %vm982, %v961, 0
        %v1341 = vsel %vm982, %v962, 0
        %v1344 = vsel %vm982, %v963, 0
        %v1347 = vsel %vm982, %v964, 0
        %v1350 = vsel %vm982, %v965, 0
        %v1353 = vsel %vm982, %v966, 0
        %v1356 = vsel %vm982, %v967, 0
        %v1359 = vsel %vm982, %v968, 0
        %v1362 = vsel %vm982, %v969, 0
        %v1365 = vsel %vm982, %v970, 0
        %1367 = vmatprep.subr.mxu0 0.0
        %1368 = vmatpush1.msra.mxu0 %v971
        %1369 = vmatprep.subr.mxu0 0.0
        %1370 = vmatpush1.msra.mxu0 %v972
        %1371 = vmatprep.subr.mxu0 0.0
        %1372 = vmatpush1.msra.mxu0 %v973
        %1373 = vmatprep.subr.mxu0 0.0
        %1374 = vmatpush1.msra.mxu0 %v974
        %1375 = vmatprep.subr.mxu0 0.0
        %1376 = vmatpush1.msra.mxu0 0.0
        %1377 = vmatprep.subr.mxu0 0.0
        %1378 = vmatpush1.msra.mxu0 0.0
        %1379 = vmatprep.subr.mxu0 0.0
        %1380 = vmatpush1.msra.mxu0 0.0
        %1381 = vmatprep.subr.mxu0 0.0
        %1382 = vmatpush1.msra.mxu0 0.0
        %1383 = vmatprep.subr.mxu0 0.0
        %1384 = vmatpush1.msra.mxu0 0.0
        %1385 = vmatprep.subr.mxu0 0.0
        %1386 = vmatpush1.msra.mxu0 0.0
        %1387 = vmatprep.subr.mxu0 0.0
        %1388 = vmatpush1.msra.mxu0 0.0
        %1389 = vmatprep.subr.mxu0 0.0
        %1390 = vmatpush1.msra.mxu0 0.0
        %1391 = vmatprep.subr.mxu0 0.0
        %1392 = vmatpush1.msra.mxu0 0.0
        %1393 = vmatprep.subr.mxu0 0.0
        %1394 = vmatpush1.msra.mxu0 0.0
        %1395 = vmatprep.subr.mxu0 0.0
        %1396 = vmatpush1.msra.mxu0 0.0
        %1397 = vmatprep.subr.mxu0 0.0
        %1398 = vmatpush1.msra.mxu0 0.0
        %1399 = vmatprep.subr.mxu0 0.0
        %1400 = vmatpush1.msra.mxu0 0.0
        %1401 = vmatprep.subr.mxu0 0.0
        %1402 = vmatpush1.msra.mxu0 0.0
        %1403 = vmatprep.subr.mxu0 0.0
        %1404 = vmatpush1.msra.mxu0 0.0
        %1405 = vmatprep.subr.mxu0 0.0
        %1406 = vmatpush1.msra.mxu0 0.0
        %1407 = vmatprep.subr.mxu0 0.0
        %1408 = vmatpush1.msra.mxu0 0.0
        %1409 = vmatprep.subr.mxu0 0.0
        %1410 = vmatpush1.msra.mxu0 0.0
        %1411 = vmatprep.subr.mxu0 0.0
        %1412 = vmatpush1.msra.mxu0 0.0
        %1413 = vmatprep.subr.mxu0 0.0
        %1414 = vmatpush1.msra.mxu0 0.0
        %1415 = vmatprep.subr.mxu0 0.0
        %1416 = vmatpush1.msra.mxu0 0.0
        %1417 = vmatprep.subr.mxu0 0.0
        %1418 = vmatpush1.msra.mxu0 0.0
        %1419 = vmatprep.subr.mxu0 0.0
        %1420 = vmatpush1.msra.mxu0 0.0
        %1421 = vmatprep.subr.mxu0 0.0
        %1422 = vmatpush1.msra.mxu0 0.0
        %1423 = vmatprep.subr.mxu0 0.0
        %1424 = vmatpush1.msra.mxu0 0.0
        %1425 = vmatprep.subr.mxu0 0.0
        %1426 = vmatpush1.msra.mxu0 0.0
        %1427 = vmatprep.subr.mxu0 0.0
        %1428 = vmatpush1.msra.mxu0 0.0
        %1429 = vmatprep.subr.mxu0 0.0
        %1430 = vmatpush1.msra.mxu0 0.0
        %1431 = vmatprep.mubr.f32.mxu0 0.0
        %1432 = vmatmul.mubr.f32.gmra.mrb[0].mxu0 %v984
        %v1433 = vpop.f32.mrb[0].mxu0
        %v1434 = vadd.f32 %v980, %v1433
        %v1435 = vpop.f32.mrb[0].mxu0
        %1436 = vmatprep.mubr.f32.mxu0 0.0
        %1437 = vmatmul.mubr.f32.gmra.mrb[0].mxu0 %v987
        %v1438 = vpop.f32.mrb[0].mxu0
        %v1439 = vadd.f32 %v980, %v1438
        %v1440 = vpop.f32.mrb[0].mxu0
        %1441 = vmatprep.mubr.f32.mxu0 0.0
        %1442 = vmatmul.mubr.f32.gmra.mrb[0].mxu0 %v990
        %v1443 = vpop.f32.mrb[0].mxu0
        %v1444 = vadd.f32 %v980, %v1443
        %v1445 = vpop.f32.mrb[0].mxu0
        %1446 = vmatprep.mubr.f32.mxu0 0.0
        %1447 = vmatmul.mubr.f32.gmra.mrb[0].mxu0 %v993
        %v1448 = vpop.f32.mrb[0].mxu0
        %v1449 = vadd.f32 %v980, %v1448
        %v1450 = vpop.f32.mrb[0].mxu0
        %1451 = vmatprep.mubr.f32.mxu0 0.0
        %1452 = vmatmul.mubr.f32.gmra.mrb[0].mxu0 %v996
        %v1453 = vpop.f32.mrb[0].mxu0
        %v1454 = vadd.f32 %v980, %v1453
        %v1455 = vpop.f32.mrb[0].mxu0
        %1456 = vmatprep.mubr.f32.mxu0 0.0
        %1457 = vmatmul.mubr.f32.gmra.mrb[0].mxu0 %v999
        %v1458 = vpop.f32.mrb[0].mxu0
        %v1459 = vadd.f32 %v980, %v1458
        %v1460 = vpop.f32.mrb[0].mxu0
        %1461 = vmatprep.mubr.f32.mxu0 0.0
        %1462 = vmatmul.mubr.f32.gmra.mrb[0].mxu0 %v1002
        %v1463 = vpop.f32.mrb[0].mxu0
        %v1464 = vadd.f32 %v980, %v1463
        %v1465 = vpop.f32.mrb[0].mxu0
        %1466 = vmatprep.mubr.f32.mxu0 0.0
        %1467 = vmatmul.mubr.f32.gmra.mrb[0].mxu0 %v1005
        %v1468 = vpop.f32.mrb[0].mxu0
        %v1469 = vadd.f32 %v980, %v1468
        %v1470 = vpop.f32.mrb[0].mxu0
        %1471 = vmatprep.mubr.f32.mxu0 0.0
        %1472 = vmatmul.mubr.f32.gmra.mrb[0].mxu0 %v1008
        %v1473 = vpop.f32.mrb[0].mxu0
        %v1474 = vadd.f32 %v980, %v1473
        %v1475 = vpop.f32.mrb[0].mxu0
        %1476 = vmatprep.mubr.f32.mxu0 0.0
        %1477 = vmatmul.mubr.f32.gmra.mrb[0].mxu0 %v1011
        %v1478 = vpop.f32.mrb[0].mxu0
        %v1479 = vadd.f32 %v980, %v1478
        %v1480 = vpop.f32.mrb[0].mxu0
        %1481 = vmatprep.mubr.f32.mxu0 0.0
        %1482 = vmatmul.mubr.f32.gmra.mrb[0].mxu0 %v1014
        %v1483 = vpop.f32.mrb[0].mxu0
        %v1484 = vadd.f32 %v980, %v1483
        %v1485 = vpop.f32.mrb[0].mxu0
        %1486 = vmatprep.mubr.f32.mxu0 0.0
        %1487 = vmatmul.mubr.f32.gmra.mrb[0].mxu0 %v1017
        %v1488 = vpop.f32.mrb[0].mxu0
        %v1489 = vadd.f32 %v980, %v1488
        %v1490 = vpop.f32.mrb[0].mxu0
        %1491 = vmatprep.mubr.f32.mxu0 0.0
        %1492 = vmatmul.mubr.f32.gmra.mrb[0].mxu0 %v1020
        %v1493 = vpop.f32.mrb[0].mxu0
        %v1494 = vadd.f32 %v980, %v1493
        %v1495 = vpop.f32.mrb[0].mxu0
        %1496 = vmatprep.mubr.f32.mxu0 0.0
        %1497 = vmatmul.mubr.f32.gmra.mrb[0].mxu0 %v1023
        %v1498 = vpop.f32.mrb[0].mxu0
        %v1499 = vadd.f32 %v980, %v1498
        %v1500 = vpop.f32.mrb[0].mxu0
        %1501 = vmatprep.mubr.f32.mxu0 0.0
        %1502 = vmatmul.mubr.f32.gmra.mrb[0].mxu0 %v1026
        %v1503 = vpop.f32.mrb[0].mxu0
        %v1504 = vadd.f32 %v980, %v1503
        %v1505 = vpop.f32.mrb[0].mxu0
        %1506 = vmatprep.mubr.f32.mxu0 0.0
        %1507 = vmatmul.mubr.f32.gmra.mrb[0].mxu0 %v1029
        %v1508 = vpop.f32.mrb[0].mxu0
        %v1509 = vadd.f32 %v980, %v1508
        %v1510 = vpop.f32.mrb[0].mxu0
        %1511 = vmatprep.mubr.f32.mxu0 0.0
        %1512 = vmatmul.mubr.f32.gmra.mrb[0].mxu0 %v1032
        %v1513 = vpop.f32.mrb[0].mxu0
        %v1514 = vadd.f32 %v980, %v1513
        %v1515 = vpop.f32.mrb[0].mxu0
        %1516 = vmatprep.mubr.f32.mxu0 0.0
        %1517 = vmatmul.mubr.f32.gmra.mrb[0].mxu0 %v1035
        %v1518 = vpop.f32.mrb[0].mxu0
        %v1519 = vadd.f32 %v980, %v1518
        %v1520 = vpop.f32.mrb[0].mxu0
        %1521 = vmatprep.mubr.f32.mxu0 0.0
        %1522 = vmatmul.mubr.f32.gmra.mrb[0].mxu0 %v1038
        %v1523 = vpop.f32.mrb[0].mxu0
        %v1524 = vadd.f32 %v980, %v1523
        %v1525 = vpop.f32.mrb[0].mxu0
        %1526 = vmatprep.mubr.f32.mxu0 0.0
        %1527 = vmatmul.mubr.f32.gmra.mrb[0].mxu0 %v1041
        %v1528 = vpop.f32.mrb[0].mxu0
        %v1529 = vadd.f32 %v980, %v1528
        %v1530 = vpop.f32.mrb[0].mxu0
        %1531 = vmatprep.mubr.f32.mxu0 0.0
        %1532 = vmatmul.mubr.f32.gmra.mrb[0].mxu0 %v1044
        %v1533 = vpop.f32.mrb[0].mxu0
        %v1534 = vadd.f32 %v980, %v1533
        %v1535 = vpop.f32.mrb[0].mxu0
        %1536 = vmatprep.mubr.f32.mxu0 0.0
        %1537 = vmatmul.mubr.f32.gmra.mrb[0].mxu0 %v1047
        %v1538 = vpop.f32.mrb[0].mxu0
        %v1539 = vadd.f32 %v980, %v1538
        %v1540 = vpop.f32.mrb[0].mxu0
        %1541 = vmatprep.mubr.f32.mxu0 0.0
        %1542 = vmatmul.mubr.f32.gmra.mrb[0].mxu0 %v1050
        %v1543 = vpop.f32.mrb[0].mxu0
        %v1544 = vadd.f32 %v980, %v1543
        %v1545 = vpop.f32.mrb[0].mxu0
        %1546 = vmatprep.mubr.f32.mxu0 0.0
        %1547 = vmatmul.mubr.f32.gmra.mrb[0].mxu0 %v1053
        %v1548 = vpop.f32.mrb[0].mxu0
        %v1549 = vadd.f32 %v980, %v1548
        %v1550 = vpop.f32.mrb[0].mxu0
        %1551 = vmatprep.mubr.f32.mxu0 0.0
        %1552 = vmatmul.mubr.f32.gmra.mrb[0].mxu0 %v1056
        %v1553 = vpop.f32.mrb[0].mxu0
        %v1554 = vadd.f32 %v980, %v1553
        %v1555 = vpop.f32.mrb[0].mxu0
        %1556 = vmatprep.mubr.f32.mxu0 0.0
        %1557 = vmatmul.mubr.f32.gmra.mrb[0].mxu0 %v1059
        %v1558 = vpop.f32.mrb[0].mxu0
        %v1559 = vadd.f32 %v980, %v1558
        %v1560 = vpop.f32.mrb[0].mxu0
        %1561 = vmatprep.mubr.f32.mxu0 0.0
        %1562 = vmatmul.mubr.f32.gmra.mrb[0].mxu0 %v1062
        %v1563 = vpop.f32.mrb[0].mxu0
        %v1564 = vadd.f32 %v980, %v1563
        %v1565 = vpop.f32.mrb[0].mxu0
        %1566 = vmatprep.mubr.f32.mxu0 0.0
        %1567 = vmatmul.mubr.f32.gmra.mrb[0].mxu0 %v1065
        %v1568 = vpop.f32.mrb[0].mxu0
        %v1569 = vadd.f32 %v980, %v1568
        %v1570 = vpop.f32.mrb[0].mxu0
        %1571 = vmatprep.mubr.f32.mxu0 0.0
        %1572 = vmatmul.mubr.f32.gmra.mrb[0].mxu0 %v1068
        %v1573 = vpop.f32.mrb[0].mxu0
        %v1574 = vadd.f32 %v980, %v1573
        %v1575 = vpop.f32.mrb[0].mxu0
        %1576 = vmatprep.mubr.f32.mxu0 0.0
        %1577 = vmatmul.mubr.f32.gmra.mrb[0].mxu0 %v1071
        %v1578 = vpop.f32.mrb[0].mxu0
        %v1579 = vadd.f32 %v980, %v1578
        %v1580 = vpop.f32.mrb[0].mxu0
        %1581 = vmatprep.mubr.f32.mxu0 0.0
        %1582 = vmatmul.mubr.f32.gmra.mrb[0].mxu0 %v1074
        %v1583 = vpop.f32.mrb[0].mxu0
        %v1584 = vadd.f32 %v980, %v1583
        %v1585 = vpop.f32.mrb[0].mxu0
        %1586 = vmatprep.mubr.f32.mxu0 0.0
        %1587 = vmatmul.mubr.f32.gmra.mrb[0].mxu0 %v1077
        %v1588 = vpop.f32.mrb[0].mxu0
        %v1589 = vadd.f32 %v980, %v1588
        %v1590 = vpop.f32.mrb[0].mxu0
        %1591 = vmatprep.mubr.f32.mxu0 0.0
        %1592 = vmatmul.mubr.f32.gmra.mrb[0].mxu0 %v1080
        %v1593 = vpop.f32.mrb[0].mxu0
        %v1594 = vadd.f32 %v980, %v1593
        %v1595 = vpop.f32.mrb[0].mxu0
        %1596 = vmatprep.mubr.f32.mxu0 0.0
        %1597 = vmatmul.mubr.f32.gmra.mrb[0].mxu0 %v1083
        %v1598 = vpop.f32.mrb[0].mxu0
        %v1599 = vadd.f32 %v980, %v1598
        %v1600 = vpop.f32.mrb[0].mxu0
        %1601 = vmatprep.mubr.f32.mxu0 0.0
        %1602 = vmatmul.mubr.f32.gmra.mrb[0].mxu0 %v1086
        %v1603 = vpop.f32.mrb[0].mxu0
        %v1604 = vadd.f32 %v980, %v1603
        %v1605 = vpop.f32.mrb[0].mxu0
        %1606 = vmatprep.mubr.f32.mxu0 0.0
        %1607 = vmatmul.mubr.f32.gmra.mrb[0].mxu0 %v1089
        %v1608 = vpop.f32.mrb[0].mxu0
        %v1609 = vadd.f32 %v980, %v1608
        %v1610 = vpop.f32.mrb[0].mxu0
        %1611 = vmatprep.mubr.f32.mxu0 0.0
        %1612 = vmatmul.mubr.f32.gmra.mrb[0].mxu0 %v1092
        %v1613 = vpop.f32.mrb[0].mxu0
        %v1614 = vadd.f32 %v980, %v1613
        %v1615 = vpop.f32.mrb[0].mxu0
        %1616 = vmatprep.mubr.f32.mxu0 0.0
        %1617 = vmatmul.mubr.f32.gmra.mrb[0].mxu0 %v1095
        %v1618 = vpop.f32.mrb[0].mxu0
        %v1619 = vadd.f32 %v980, %v1618
        %v1620 = vpop.f32.mrb[0].mxu0
        %1621 = vmatprep.mubr.f32.mxu0 0.0
        %1622 = vmatmul.mubr.f32.gmra.mrb[0].mxu0 %v1098
        %v1623 = vpop.f32.mrb[0].mxu0
        %v1624 = vadd.f32 %v980, %v1623
        %v1625 = vpop.f32.mrb[0].mxu0
        %1626 = vmatprep.mubr.f32.mxu0 0.0
        %1627 = vmatmul.mubr.f32.gmra.mrb[0].mxu0 %v1101
        %v1628 = vpop.f32.mrb[0].mxu0
        %v1629 = vadd.f32 %v980, %v1628
        %v1630 = vpop.f32.mrb[0].mxu0
        %1631 = vmatprep.mubr.f32.mxu0 0.0
        %1632 = vmatmul.mubr.f32.gmra.mrb[0].mxu0 %v1104
        %v1633 = vpop.f32.mrb[0].mxu0
        %v1634 = vadd.f32 %v980, %v1633
        %v1635 = vpop.f32.mrb[0].mxu0
        %1636 = vmatprep.mubr.f32.mxu0 0.0
        %1637 = vmatmul.mubr.f32.gmra.mrb[0].mxu0 %v1107
        %v1638 = vpop.f32.mrb[0].mxu0
        %v1639 = vadd.f32 %v980, %v1638
        %v1640 = vpop.f32.mrb[0].mxu0
        %1641 = vmatprep.mubr.f32.mxu0 0.0
        %1642 = vmatmul.mubr.f32.gmra.mrb[0].mxu0 %v1110
        %v1643 = vpop.f32.mrb[0].mxu0
        %v1644 = vadd.f32 %v980, %v1643
        %v1645 = vpop.f32.mrb[0].mxu0
        %1646 = vmatprep.mubr.f32.mxu0 0.0
        %1647 = vmatmul.mubr.f32.gmra.mrb[0].mxu0 %v1113
        %v1648 = vpop.f32.mrb[0].mxu0
        %v1649 = vadd.f32 %v980, %v1648
        %v1650 = vpop.f32.mrb[0].mxu0
        %1651 = vmatprep.mubr.f32.mxu0 0.0
        %1652 = vmatmul.mubr.f32.gmra.mrb[0].mxu0 %v1116
        %v1653 = vpop.f32.mrb[0].mxu0
        %v1654 = vadd.f32 %v980, %v1653
        %v1655 = vpop.f32.mrb[0].mxu0
        %1656 = vmatprep.mubr.f32.mxu0 0.0
        %1657 = vmatmul.mubr.f32.gmra.mrb[0].mxu0 %v1119
        %v1658 = vpop.f32.mrb[0].mxu0
        %v1659 = vadd.f32 %v980, %v1658
        %v1660 = vpop.f32.mrb[0].mxu0
        %1661 = vmatprep.mubr.f32.mxu0 0.0
        %1662 = vmatmul.mubr.f32.gmra.mrb[0].mxu0 %v1122
        %v1663 = vpop.f32.mrb[0].mxu0
        %v1664 = vadd.f32 %v980, %v1663
        %v1665 = vpop.f32.mrb[0].mxu0
        %1666 = vmatprep.mubr.f32.mxu0 0.0
        %1667 = vmatmul.mubr.f32.gmra.mrb[0].mxu0 %v1125
        %v1668 = vpop.f32.mrb[0].mxu0
        %v1669 = vadd.f32 %v980, %v1668
        %v1670 = vpop.f32.mrb[0].mxu0
        %1671 = vmatprep.mubr.f32.mxu0 0.0
        %1672 = vmatmul.mubr.f32.gmra.mrb[0].mxu0 %v1128
        %v1673 = vpop.f32.mrb[0].mxu0
        %v1674 = vadd.f32 %v980, %v1673
        %v1675 = vpop.f32.mrb[0].mxu0
        %1676 = vmatprep.mubr.f32.mxu0 0.0
        %1677 = vmatmul.mubr.f32.gmra.mrb[0].mxu0 %v1131
        %v1678 = vpop.f32.mrb[0].mxu0
        %v1679 = vadd.f32 %v980, %v1678
        %v1680 = vpop.f32.mrb[0].mxu0
        %1681 = vmatprep.mubr.f32.mxu0 0.0
        %1682 = vmatmul.mubr.f32.gmra.mrb[0].mxu0 %v1134
        %v1683 = vpop.f32.mrb[0].mxu0
        %v1684 = vadd.f32 %v980, %v1683
        %v1685 = vpop.f32.mrb[0].mxu0
        %1686 = vmatprep.mubr.f32.mxu0 0.0
        %1687 = vmatmul.mubr.f32.gmra.mrb[0].mxu0 %v1137
        %v1688 = vpop.f32.mrb[0].mxu0
        %v1689 = vadd.f32 %v980, %v1688
        %v1690 = vpop.f32.mrb[0].mxu0
        %1691 = vmatprep.mubr.f32.mxu0 0.0
        %1692 = vmatmul.mubr.f32.gmra.mrb[0].mxu0 %v1140
        %v1693 = vpop.f32.mrb[0].mxu0
        %v1694 = vadd.f32 %v980, %v1693
        %v1695 = vpop.f32.mrb[0].mxu0
        %1696 = vmatprep.mubr.f32.mxu0 0.0
        %1697 = vmatmul.mubr.f32.gmra.mrb[0].mxu0 %v1143
        %v1698 = vpop.f32.mrb[0].mxu0
        %v1699 = vadd.f32 %v980, %v1698
        %v1700 = vpop.f32.mrb[0].mxu0
        %1701 = vmatprep.mubr.f32.mxu0 0.0
        %1702 = vmatmul.mubr.f32.gmra.mrb[0].mxu0 %v1146
        %v1703 = vpop.f32.mrb[0].mxu0
        %v1704 = vadd.f32 %v980, %v1703
        %v1705 = vpop.f32.mrb[0].mxu0
        %1706 = vmatprep.mubr.f32.mxu0 0.0
        %1707 = vmatmul.mubr.f32.gmra.mrb[0].mxu0 %v1149
        %v1708 = vpop.f32.mrb[0].mxu0
        %v1709 = vadd.f32 %v980, %v1708
        %v1710 = vpop.f32.mrb[0].mxu0
        %1711 = vmatprep.mubr.f32.mxu0 0.0
        %1712 = vmatmul.mubr.f32.gmra.mrb[0].mxu0 %v1152
        %v1713 = vpop.f32.mrb[0].mxu0
        %v1714 = vadd.f32 %v980, %v1713
        %v1715 = vpop.f32.mrb[0].mxu0
        %1716 = vmatprep.mubr.f32.mxu0 0.0
        %1717 = vmatmul.mubr.f32.gmra.mrb[0].mxu0 %v1155
        %v1718 = vpop.f32.mrb[0].mxu0
        %v1719 = vadd.f32 %v980, %v1718
        %v1720 = vpop.f32.mrb[0].mxu0
        %1721 = vmatprep.mubr.f32.mxu0 0.0
        %1722 = vmatmul.mubr.f32.gmra.mrb[0].mxu0 %v1158
        %v1723 = vpop.f32.mrb[0].mxu0
        %v1724 = vadd.f32 %v980, %v1723
        %v1725 = vpop.f32.mrb[0].mxu0
        %1726 = vmatprep.mubr.f32.mxu0 0.0
        %1727 = vmatmul.mubr.f32.gmra.mrb[0].mxu0 %v1161
        %v1728 = vpop.f32.mrb[0].mxu0
        %v1729 = vadd.f32 %v980, %v1728
        %v1730 = vpop.f32.mrb[0].mxu0
        %1731 = vmatprep.mubr.f32.mxu0 0.0
        %1732 = vmatmul.mubr.f32.gmra.mrb[0].mxu0 %v1164
        %v1733 = vpop.f32.mrb[0].mxu0
        %v1734 = vadd.f32 %v980, %v1733
        %v1735 = vpop.f32.mrb[0].mxu0
        %1736 = vmatprep.mubr.f32.mxu0 0.0
        %1737 = vmatmul.mubr.f32.gmra.mrb[0].mxu0 %v1167
        %v1738 = vpop.f32.mrb[0].mxu0
        %v1739 = vadd.f32 %v980, %v1738
        %v1740 = vpop.f32.mrb[0].mxu0
        %1741 = vmatprep.mubr.f32.mxu0 0.0
        %1742 = vmatmul.mubr.f32.gmra.mrb[0].mxu0 %v1170
        %v1743 = vpop.f32.mrb[0].mxu0
        %v1744 = vadd.f32 %v980, %v1743
        %v1745 = vpop.f32.mrb[0].mxu0
        %1746 = vmatprep.mubr.f32.mxu0 0.0
        %1747 = vmatmul.mubr.f32.gmra.mrb[0].mxu0 %v1173
        %v1748 = vpop.f32.mrb[0].mxu0
        %v1749 = vadd.f32 %v980, %v1748
        %v1750 = vpop.f32.mrb[0].mxu0
        %1751 = vmatprep.mubr.f32.mxu0 0.0
        %1752 = vmatmul.mubr.f32.gmra.mrb[0].mxu0 %v1176
        %v1753 = vpop.f32.mrb[0].mxu0
        %v1754 = vadd.f32 %v980, %v1753
        %v1755 = vpop.f32.mrb[0].mxu0
        %1756 = vmatprep.mubr.f32.mxu0 0.0
        %1757 = vmatmul.mubr.f32.gmra.mrb[0].mxu0 %v1179
        %v1758 = vpop.f32.mrb[0].mxu0
        %v1759 = vadd.f32 %v980, %v1758
        %v1760 = vpop.f32.mrb[0].mxu0
        %1761 = vmatprep.mubr.f32.mxu0 0.0
        %1762 = vmatmul.mubr.f32.gmra.mrb[0].mxu0 %v1182
        %v1763 = vpop.f32.mrb[0].mxu0
        %v1764 = vadd.f32 %v980, %v1763
        %v1765 = vpop.f32.mrb[0].mxu0
        %1766 = vmatprep.mubr.f32.mxu0 0.0
        %1767 = vmatmul.mubr.f32.gmra.mrb[0].mxu0 %v1185
        %v1768 = vpop.f32.mrb[0].mxu0
        %v1769 = vadd.f32 %v980, %v1768
        %v1770 = vpop.f32.mrb[0].mxu0
        %1771 = vmatprep.mubr.f32.mxu0 0.0
        %1772 = vmatmul.mubr.f32.gmra.mrb[0].mxu0 %v1188
        %v1773 = vpop.f32.mrb[0].mxu0
        %v1774 = vadd.f32 %v980, %v1773
        %v1775 = vpop.f32.mrb[0].mxu0
        %1776 = vmatprep.mubr.f32.mxu0 0.0
        %1777 = vmatmul.mubr.f32.gmra.mrb[0].mxu0 %v1191
        %v1778 = vpop.f32.mrb[0].mxu0
        %v1779 = vadd.f32 %v980, %v1778
        %v1780 = vpop.f32.mrb[0].mxu0
        %1781 = vmatprep.mubr.f32.mxu0 0.0
        %1782 = vmatmul.mubr.f32.gmra.mrb[0].mxu0 %v1194
        %v1783 = vpop.f32.mrb[0].mxu0
        %v1784 = vadd.f32 %v980, %v1783
        %v1785 = vpop.f32.mrb[0].mxu0
        %1786 = vmatprep.mubr.f32.mxu0 0.0
        %1787 = vmatmul.mubr.f32.gmra.mrb[0].mxu0 %v1197
        %v1788 = vpop.f32.mrb[0].mxu0
        %v1789 = vadd.f32 %v980, %v1788
        %v1790 = vpop.f32.mrb[0].mxu0
        %1791 = vmatprep.mubr.f32.mxu0 0.0
        %1792 = vmatmul.mubr.f32.gmra.mrb[0].mxu0 %v1200
        %v1793 = vpop.f32.mrb[0].mxu0
        %v1794 = vadd.f32 %v980, %v1793
        %v1795 = vpop.f32.mrb[0].mxu0
        %1796 = vmatprep.mubr.f32.mxu0 0.0
        %1797 = vmatmul.mubr.f32.gmra.mrb[0].mxu0 %v1203
        %v1798 = vpop.f32.mrb[0].mxu0
        %v1799 = vadd.f32 %v980, %v1798
        %v1800 = vpop.f32.mrb[0].mxu0
        %1801 = vmatprep.mubr.f32.mxu0 0.0
        %1802 = vmatmul.mubr.f32.gmra.mrb[0].mxu0 %v1206
        %v1803 = vpop.f32.mrb[0].mxu0
        %v1804 = vadd.f32 %v980, %v1803
        %v1805 = vpop.f32.mrb[0].mxu0
        %1806 = vmatprep.mubr.f32.mxu0 0.0
        %1807 = vmatmul.mubr.f32.gmra.mrb[0].mxu0 %v1209
        %v1808 = vpop.f32.mrb[0].mxu0
        %v1809 = vadd.f32 %v980, %v1808
        %v1810 = vpop.f32.mrb[0].mxu0
        %1811 = vmatprep.mubr.f32.mxu0 0.0
        %1812 = vmatmul.mubr.f32.gmra.mrb[0].mxu0 %v1212
        %v1813 = vpop.f32.mrb[0].mxu0
        %v1814 = vadd.f32 %v980, %v1813
        %v1815 = vpop.f32.mrb[0].mxu0
        %1816 = vmatprep.mubr.f32.mxu0 0.0
        %1817 = vmatmul.mubr.f32.gmra.mrb[0].mxu0 %v1215
        %v1818 = vpop.f32.mrb[0].mxu0
        %v1819 = vadd.f32 %v980, %v1818
        %v1820 = vpop.f32.mrb[0].mxu0
        %1821 = vmatprep.mubr.f32.mxu0 0.0
        %1822 = vmatmul.mubr.f32.gmra.mrb[0].mxu0 %v1218
        %v1823 = vpop.f32.mrb[0].mxu0
        %v1824 = vadd.f32 %v980, %v1823
        %v1825 = vpop.f32.mrb[0].mxu0
        %1826 = vmatprep.mubr.f32.mxu0 0.0
        %1827 = vmatmul.mubr.f32.gmra.mrb[0].mxu0 %v1221
        %v1828 = vpop.f32.mrb[0].mxu0
        %v1829 = vadd.f32 %v980, %v1828
        %v1830 = vpop.f32.mrb[0].mxu0
        %1831 = vmatprep.mubr.f32.mxu0 0.0
        %1832 = vmatmul.mubr.f32.gmra.mrb[0].mxu0 %v1224
        %v1833 = vpop.f32.mrb[0].mxu0
        %v1834 = vadd.f32 %v980, %v1833
        %v1835 = vpop.f32.mrb[0].mxu0
        %1836 = vmatprep.mubr.f32.mxu0 0.0
        %1837 = vmatmul.mubr.f32.gmra.mrb[0].mxu0 %v1227
        %v1838 = vpop.f32.mrb[0].mxu0
        %v1839 = vadd.f32 %v980, %v1838
        %v1840 = vpop.f32.mrb[0].mxu0
        %1841 = vmatprep.mubr.f32.mxu0 0.0
        %1842 = vmatmul.mubr.f32.gmra.mrb[0].mxu0 %v1230
        %v1843 = vpop.f32.mrb[0].mxu0
        %v1844 = vadd.f32 %v980, %v1843
        %v1845 = vpop.f32.mrb[0].mxu0
        %1846 = vmatprep.mubr.f32.mxu0 0.0
        %1847 = vmatmul.mubr.f32.gmra.mrb[0].mxu0 %v1233
        %v1848 = vpop.f32.mrb[0].mxu0
        %v1849 = vadd.f32 %v980, %v1848
        %v1850 = vpop.f32.mrb[0].mxu0
        %1851 = vmatprep.mubr.f32.mxu0 0.0
        %1852 = vmatmul.mubr.f32.gmra.mrb[0].mxu0 %v1236
        %v1853 = vpop.f32.mrb[0].mxu0
        %v1854 = vadd.f32 %v980, %v1853
        %v1855 = vpop.f32.mrb[0].mxu0
        %1856 = vmatprep.mubr.f32.mxu0 0.0
        %1857 = vmatmul.mubr.f32.gmra.mrb[0].mxu0 %v1239
        %v1858 = vpop.f32.mrb[0].mxu0
        %v1859 = vadd.f32 %v980, %v1858
        %v1860 = vpop.f32.mrb[0].mxu0
        %1861 = vmatprep.mubr.f32.mxu0 0.0
        %1862 = vmatmul.mubr.f32.gmra.mrb[0].mxu0 %v1242
        %v1863 = vpop.f32.mrb[0].mxu0
        %v1864 = vadd.f32 %v980, %v1863
        %v1865 = vpop.f32.mrb[0].mxu0
        %1866 = vmatprep.mubr.f32.mxu0 0.0
        %1867 = vmatmul.mubr.f32.gmra.mrb[0].mxu0 %v1245
        %v1868 = vpop.f32.mrb[0].mxu0
        %v1869 = vadd.f32 %v980, %v1868
        %v1870 = vpop.f32.mrb[0].mxu0
        %1871 = vmatprep.mubr.f32.mxu0 0.0
        %1872 = vmatmul.mubr.f32.gmra.mrb[0].mxu0 %v1248
        %v1873 = vpop.f32.mrb[0].mxu0
        %v1874 = vadd.f32 %v980, %v1873
        %v1875 = vpop.f32.mrb[0].mxu0
        %1876 = vmatprep.mubr.f32.mxu0 0.0
        %1877 = vmatmul.mubr.f32.gmra.mrb[0].mxu0 %v1251
        %v1878 = vpop.f32.mrb[0].mxu0
        %v1879 = vadd.f32 %v980, %v1878
        %v1880 = vpop.f32.mrb[0].mxu0
        %1881 = vmatprep.mubr.f32.mxu0 0.0
        %1882 = vmatmul.mubr.f32.gmra.mrb[0].mxu0 %v1254
        %v1883 = vpop.f32.mrb[0].mxu0
        %v1884 = vadd.f32 %v980, %v1883
        %v1885 = vpop.f32.mrb[0].mxu0
        %1886 = vmatprep.mubr.f32.mxu0 0.0
        %1887 = vmatmul.mubr.f32.gmra.mrb[0].mxu0 %v1257
        %v1888 = vpop.f32.mrb[0].mxu0
        %v1889 = vadd.f32 %v980, %v1888
        %v1890 = vpop.f32.mrb[0].mxu0
        %1891 = vmatprep.mubr.f32.mxu0 0.0
        %1892 = vmatmul.mubr.f32.gmra.mrb[0].mxu0 %v1260
        %v1893 = vpop.f32.mrb[0].mxu0
        %v1894 = vadd.f32 %v980, %v1893
        %v1895 = vpop.f32.mrb[0].mxu0
        %1896 = vmatprep.mubr.f32.mxu0 0.0
        %1897 = vmatmul.mubr.f32.gmra.mrb[0].mxu0 %v1263
        %v1898 = vpop.f32.mrb[0].mxu0
        %v1899 = vadd.f32 %v980, %v1898
        %v1900 = vpop.f32.mrb[0].mxu0
        %1901 = vmatprep.mubr.f32.mxu0 0.0
        %1902 = vmatmul.mubr.f32.gmra.mrb[0].mxu0 %v1266
        %v1903 = vpop.f32.mrb[0].mxu0
        %v1904 = vadd.f32 %v980, %v1903
        %v1905 = vpop.f32.mrb[0].mxu0
        %1906 = vmatprep.mubr.f32.mxu0 0.0
        %1907 = vmatmul.mubr.f32.gmra.mrb[0].mxu0 %v1269
        %v1908 = vpop.f32.mrb[0].mxu0
        %v1909 = vadd.f32 %v980, %v1908
        %v1910 = vpop.f32.mrb[0].mxu0
        %1911 = vmatprep.mubr.f32.mxu0 0.0
        %1912 = vmatmul.mubr.f32.gmra.mrb[0].mxu0 %v1272
        %v1913 = vpop.f32.mrb[0].mxu0
        %v1914 = vadd.f32 %v980, %v1913
        %v1915 = vpop.f32.mrb[0].mxu0
        %1916 = vmatprep.mubr.f32.mxu0 0.0
        %1917 = vmatmul.mubr.f32.gmra.mrb[0].mxu0 %v1275
        %v1918 = vpop.f32.mrb[0].mxu0
        %v1919 = vadd.f32 %v980, %v1918
        %v1920 = vpop.f32.mrb[0].mxu0
        %1921 = vmatprep.mubr.f32.mxu0 0.0
        %1922 = vmatmul.mubr.f32.gmra.mrb[0].mxu0 %v1278
        %v1923 = vpop.f32.mrb[0].mxu0
        %v1924 = vadd.f32 %v980, %v1923
        %v1925 = vpop.f32.mrb[0].mxu0
        %1926 = vmatprep.mubr.f32.mxu0 0.0
        %1927 = vmatmul.mubr.f32.gmra.mrb[0].mxu0 %v1281
        %v1928 = vpop.f32.mrb[0].mxu0
        %v1929 = vadd.f32 %v980, %v1928
        %v1930 = vpop.f32.mrb[0].mxu0
        %1931 = vmatprep.mubr.f32.mxu0 0.0
        %1932 = vmatmul.mubr.f32.gmra.mrb[0].mxu0 %v1284
        %v1933 = vpop.f32.mrb[0].mxu0
        %v1934 = vadd.f32 %v980, %v1933
        %v1935 = vpop.f32.mrb[0].mxu0
        %1936 = vmatprep.mubr.f32.mxu0 0.0
        %1937 = vmatmul.mubr.f32.gmra.mrb[0].mxu0 %v1287
        %v1938 = vpop.f32.mrb[0].mxu0
        %v1939 = vadd.f32 %v980, %v1938
        %v1940 = vpop.f32.mrb[0].mxu0
        %1941 = vmatprep.mubr.f32.mxu0 0.0
        %1942 = vmatmul.mubr.f32.gmra.mrb[0].mxu0 %v1290
        %v1943 = vpop.f32.mrb[0].mxu0
        %v1944 = vadd.f32 %v980, %v1943
        %v1945 = vpop.f32.mrb[0].mxu0
        %1946 = vmatprep.mubr.f32.mxu0 0.0
        %1947 = vmatmul.mubr.f32.gmra.mrb[0].mxu0 %v1293
        %v1948 = vpop.f32.mrb[0].mxu0
        %v1949 = vadd.f32 %v980, %v1948
        %v1950 = vpop.f32.mrb[0].mxu0
        %1951 = vmatprep.mubr.f32.mxu0 0.0
        %1952 = vmatmul.mubr.f32.gmra.mrb[0].mxu0 %v1296
        %v1953 = vpop.f32.mrb[0].mxu0
        %v1954 = vadd.f32 %v980, %v1953
        %v1955 = vpop.f32.mrb[0].mxu0
        %1956 = vmatprep.mubr.f32.mxu0 0.0
        %1957 = vmatmul.mubr.f32.gmra.mrb[0].mxu0 %v1299
        %v1958 = vpop.f32.mrb[0].mxu0
        %v1959 = vadd.f32 %v980, %v1958
        %v1960 = vpop.f32.mrb[0].mxu0
        %1961 = vmatprep.mubr.f32.mxu0 0.0
        %1962 = vmatmul.mubr.f32.gmra.mrb[0].mxu0 %v1302
        %v1963 = vpop.f32.mrb[0].mxu0
        %v1964 = vadd.f32 %v980, %v1963
        %v1965 = vpop.f32.mrb[0].mxu0
        %1966 = vmatprep.mubr.f32.mxu0 0.0
        %1967 = vmatmul.mubr.f32.gmra.mrb[0].mxu0 %v1305
        %v1968 = vpop.f32.mrb[0].mxu0
        %v1969 = vadd.f32 %v980, %v1968
        %v1970 = vpop.f32.mrb[0].mxu0
        %1971 = vmatprep.mubr.f32.mxu0 0.0
        %1972 = vmatmul.mubr.f32.gmra.mrb[0].mxu0 %v1308
        %v1973 = vpop.f32.mrb[0].mxu0
        %v1974 = vadd.f32 %v980, %v1973
        %v1975 = vpop.f32.mrb[0].mxu0
        %1976 = vmatprep.mubr.f32.mxu0 0.0
        %1977 = vmatmul.mubr.f32.gmra.mrb[0].mxu0 %v1311
        %v1978 = vpop.f32.mrb[0].mxu0
        %v1979 = vadd.f32 %v980, %v1978
        %v1980 = vpop.f32.mrb[0].mxu0
        %1981 = vmatprep.mubr.f32.mxu0 0.0
        %1982 = vmatmul.mubr.f32.gmra.mrb[0].mxu0 %v1314
        %v1983 = vpop.f32.mrb[0].mxu0
        %v1984 = vadd.f32 %v980, %v1983
        %v1985 = vpop.f32.mrb[0].mxu0
        %1986 = vmatprep.mubr.f32.mxu0 0.0
        %1987 = vmatmul.mubr.f32.gmra.mrb[0].mxu0 %v1317
        %v1988 = vpop.f32.mrb[0].mxu0
        %v1989 = vadd.f32 %v980, %v1988
        %v1990 = vpop.f32.mrb[0].mxu0
        %1991 = vmatprep.mubr.f32.mxu0 0.0
        %1992 = vmatmul.mubr.f32.gmra.mrb[0].mxu0 %v1320
        %v1993 = vpop.f32.mrb[0].mxu0
        %v1994 = vadd.f32 %v980, %v1993
        %v1995 = vpop.f32.mrb[0].mxu0
        %1996 = vmatprep.mubr.f32.mxu0 0.0
        %1997 = vmatmul.mubr.f32.gmra.mrb[0].mxu0 %v1323
        %v1998 = vpop.f32.mrb[0].mxu0
        %v1999 = vadd.f32 %v980, %v1998
        %v2000 = vpop.f32.mrb[0].mxu0
        %2001 = vmatprep.mubr.f32.mxu0 0.0
        %2002 = vmatmul.mubr.f32.gmra.mrb[0].mxu0 %v1326
        %v2003 = vpop.f32.mrb[0].mxu0
        %v2004 = vadd.f32 %v980, %v2003
        %v2005 = vpop.f32.mrb[0].mxu0
        %2006 = vmatprep.mubr.f32.mxu0 0.0
        %2007 = vmatmul.mubr.f32.gmra.mrb[0].mxu0 %v1329
        %v2008 = vpop.f32.mrb[0].mxu0
        %v2009 = vadd.f32 %v980, %v2008
        %v2010 = vpop.f32.mrb[0].mxu0
        %2011 = vmatprep.mubr.f32.mxu0 0.0
        %2012 = vmatmul.mubr.f32.gmra.mrb[0].mxu0 %v1332
        %v2013 = vpop.f32.mrb[0].mxu0
        %v2014 = vadd.f32 %v980, %v2013
        %v2015 = vpop.f32.mrb[0].mxu0
        %2016 = vmatprep.mubr.f32.mxu0 0.0
        %2017 = vmatmul.mubr.f32.gmra.mrb[0].mxu0 %v1335
        %v2018 = vpop.f32.mrb[0].mxu0
        %v2019 = vadd.f32 %v980, %v2018
        %v2020 = vpop.f32.mrb[0].mxu0
        %2021 = vmatprep.mubr.f32.mxu0 0.0
        %2022 = vmatmul.mubr.f32.gmra.mrb[0].mxu0 %v1338
        %v2023 = vpop.f32.mrb[0].mxu0
        %v2024 = vadd.f32 %v980, %v2023
        %v2025 = vpop.f32.mrb[0].mxu0
        %2026 = vmatprep.mubr.f32.mxu0 0.0
        %2027 = vmatmul.mubr.f32.gmra.mrb[0].mxu0 %v1341
        %v2028 = vpop.f32.mrb[0].mxu0
        %v2029 = vadd.f32 %v980, %v2028
        %v2030 = vpop.f32.mrb[0].mxu0
        %2031 = vmatprep.mubr.f32.mxu0 0.0
        %2032 = vmatmul.mubr.f32.gmra.mrb[0].mxu0 %v1344
        %v2033 = vpop.f32.mrb[0].mxu0
        %v2034 = vadd.f32 %v980, %v2033
        %v2035 = vpop.f32.mrb[0].mxu0
        %2036 = vmatprep.mubr.f32.mxu0 0.0
        %2037 = vmatmul.mubr.f32.gmra.mrb[0].mxu0 %v1347
        %v2038 = vpop.f32.mrb[0].mxu0
        %v2039 = vadd.f32 %v980, %v2038
        %v2040 = vpop.f32.mrb[0].mxu0
        %2041 = vmatprep.mubr.f32.mxu0 0.0
        %2042 = vmatmul.mubr.f32.gmra.mrb[0].mxu0 %v1350
        %v2043 = vpop.f32.mrb[0].mxu0
        %v2044 = vadd.f32 %v980, %v2043
        %v2045 = vpop.f32.mrb[0].mxu0
        %2046 = vmatprep.mubr.f32.mxu0 0.0
        %2047 = vmatmul.mubr.f32.gmra.mrb[0].mxu0 %v1353
        %v2048 = vpop.f32.mrb[0].mxu0
        %v2049 = vadd.f32 %v980, %v2048
        %v2050 = vpop.f32.mrb[0].mxu0
        %2051 = vmatprep.mubr.f32.mxu0 0.0
        %2052 = vmatmul.mubr.f32.gmra.mrb[0].mxu0 %v1356
        %v2053 = vpop.f32.mrb[0].mxu0
        %v2054 = vadd.f32 %v980, %v2053
        %v2055 = vpop.f32.mrb[0].mxu0
        %2056 = vmatprep.mubr.f32.mxu0 0.0
        %2057 = vmatmul.mubr.f32.gmra.mrb[0].mxu0 %v1359
        %v2058 = vpop.f32.mrb[0].mxu0
        %v2059 = vadd.f32 %v980, %v2058
        %v2060 = vpop.f32.mrb[0].mxu0
        %2061 = vmatprep.mubr.f32.mxu0 0.0
        %2062 = vmatmul.mubr.f32.gmra.mrb[0].mxu0 %v1362
        %v2063 = vpop.f32.mrb[0].mxu0
        %v2064 = vadd.f32 %v980, %v2063
        %v2065 = vpop.f32.mrb[0].mxu0
        %2066 = vmatprep.mubr.f32.mxu0 0.0
        %2067 = vmatmul.mubr.f32.gmra.mrb[0].mxu0 %v1365
        %v2068 = vpop.f32.mrb[0].mxu0
        %v2069 = vadd.f32 %v980, %v2068
        %v2070 = vpop.f32.mrb[0].mxu0
        %2071 = vdwg.mxu0
        %v2072 = vmax.f32 %v1434, 0.0
        %v2073 = vmax.f32 %v1439, 0.0
        %v2074 = vmax.f32 %v1444, 0.0
        %v2075 = vmax.f32 %v1449, 0.0
        %v2076 = vmax.f32 %v1454, 0.0
        %v2077 = vmax.f32 %v1459, 0.0
        %v2078 = vmax.f32 %v1464, 0.0
        %v2079 = vmax.f32 %v1469, 0.0
        %v2080 = vmax.f32 %v1474, 0.0
        %v2081 = vmax.f32 %v1479, 0.0
        %v2082 = vmax.f32 %v1484, 0.0
        %v2083 = vmax.f32 %v1489, 0.0
        %v2084 = vmax.f32 %v1494, 0.0
        %v2085 = vmax.f32 %v1499, 0.0
        %v2086 = vmax.f32 %v1504, 0.0
        %v2087 = vmax.f32 %v1509, 0.0
        %v2088 = vmax.f32 %v1514, 0.0
        %v2089 = vmax.f32 %v1519, 0.0
        %v2090 = vmax.f32 %v1524, 0.0
        %v2091 = vmax.f32 %v1529, 0.0
        %v2092 = vmax.f32 %v1534, 0.0
        %v2093 = vmax.f32 %v1539, 0.0
        %v2094 = vmax.f32 %v1544, 0.0
        %v2095 = vmax.f32 %v1549, 0.0
        %v2096 = vmax.f32 %v1554, 0.0
        %v2097 = vmax.f32 %v1559, 0.0
        %v2098 = vmax.f32 %v1564, 0.0
        %v2099 = vmax.f32 %v1569, 0.0
        %v2100 = vmax.f32 %v1574, 0.0
        %v2101 = vmax.f32 %v1579, 0.0
        %v2102 = vmax.f32 %v1584, 0.0
        %v2103 = vmax.f32 %v1589, 0.0
        %v2104 = vmax.f32 %v1594, 0.0
        %v2105 = vmax.f32 %v1599, 0.0
        %v2106 = vmax.f32 %v1604, 0.0
        %v2107 = vmax.f32 %v1609, 0.0
        %v2108 = vmax.f32 %v1614, 0.0
        %v2109 = vmax.f32 %v1619, 0.0
        %v2110 = vmax.f32 %v1624, 0.0
        %v2111 = vmax.f32 %v1629, 0.0
        %v2112 = vmax.f32 %v1634, 0.0
        %v2113 = vmax.f32 %v1639, 0.0
        %v2114 = vmax.f32 %v1644, 0.0
        %v2115 = vmax.f32 %v1649, 0.0
        %v2116 = vmax.f32 %v1654, 0.0
        %v2117 = vmax.f32 %v1659, 0.0
        %v2118 = vmax.f32 %v1664, 0.0
        %v2119 = vmax.f32 %v1669, 0.0
        %v2120 = vmax.f32 %v1674, 0.0
        %v2121 = vmax.f32 %v1679, 0.0
        %v2122 = vmax.f32 %v1684, 0.0
        %v2123 = vmax.f32 %v1689, 0.0
        %v2124 = vmax.f32 %v1694, 0.0
        %v2125 = vmax.f32 %v1699, 0.0
        %v2126 = vmax.f32 %v1704, 0.0
        %v2127 = vmax.f32 %v1709, 0.0
        %v2128 = vmax.f32 %v1714, 0.0
        %v2129 = vmax.f32 %v1719, 0.0
        %v2130 = vmax.f32 %v1724, 0.0
        %v2131 = vmax.f32 %v1729, 0.0
        %v2132 = vmax.f32 %v1734, 0.0
        %v2133 = vmax.f32 %v1739, 0.0
        %v2134 = vmax.f32 %v1744, 0.0
        %v2135 = vmax.f32 %v1749, 0.0
        %v2136 = vmax.f32 %v1754, 0.0
        %v2137 = vmax.f32 %v1759, 0.0
        %v2138 = vmax.f32 %v1764, 0.0
        %v2139 = vmax.f32 %v1769, 0.0
        %v2140 = vmax.f32 %v1774, 0.0
        %v2141 = vmax.f32 %v1779, 0.0
        %v2142 = vmax.f32 %v1784, 0.0
        %v2143 = vmax.f32 %v1789, 0.0
        %v2144 = vmax.f32 %v1794, 0.0
        %v2145 = vmax.f32 %v1799, 0.0
        %v2146 = vmax.f32 %v1804, 0.0
        %v2147 = vmax.f32 %v1809, 0.0
        %v2148 = vmax.f32 %v1814, 0.0
        %v2149 = vmax.f32 %v1819, 0.0
        %v2150 = vmax.f32 %v1824, 0.0
        %v2151 = vmax.f32 %v1829, 0.0
        %v2152 = vmax.f32 %v1834, 0.0
        %v2153 = vmax.f32 %v1839, 0.0
        %v2154 = vmax.f32 %v1844, 0.0
        %v2155 = vmax.f32 %v1849, 0.0
        %v2156 = vmax.f32 %v1854, 0.0
        %v2157 = vmax.f32 %v1859, 0.0
        %v2158 = vmax.f32 %v1864, 0.0
        %v2159 = vmax.f32 %v1869, 0.0
        %v2160 = vmax.f32 %v1874, 0.0
        %v2161 = vmax.f32 %v1879, 0.0
        %v2162 = vmax.f32 %v1884, 0.0
        %v2163 = vmax.f32 %v1889, 0.0
        %v2164 = vmax.f32 %v1894, 0.0
        %v2165 = vmax.f32 %v1899, 0.0
        %v2166 = vmax.f32 %v1904, 0.0
        %v2167 = vmax.f32 %v1909, 0.0
        %v2168 = vmax.f32 %v1914, 0.0
        %v2169 = vmax.f32 %v1919, 0.0
        %v2170 = vmax.f32 %v1924, 0.0
        %v2171 = vmax.f32 %v1929, 0.0
        %v2172 = vmax.f32 %v1934, 0.0
        %v2173 = vmax.f32 %v1939, 0.0
        %v2174 = vmax.f32 %v1944, 0.0
        %v2175 = vmax.f32 %v1949, 0.0
        %v2176 = vmax.f32 %v1954, 0.0
        %v2177 = vmax.f32 %v1959, 0.0
        %v2178 = vmax.f32 %v1964, 0.0
        %v2179 = vmax.f32 %v1969, 0.0
        %v2180 = vmax.f32 %v1974, 0.0
        %v2181 = vmax.f32 %v1979, 0.0
        %v2182 = vmax.f32 %v1984, 0.0
        %v2183 = vmax.f32 %v1989, 0.0
        %v2184 = vmax.f32 %v1994, 0.0
        %v2185 = vmax.f32 %v1999, 0.0
        %v2186 = vmax.f32 %v2004, 0.0
        %v2187 = vmax.f32 %v2009, 0.0
        %v2188 = vmax.f32 %v2014, 0.0
        %v2189 = vmax.f32 %v2019, 0.0
        %v2190 = vmax.f32 %v2024, 0.0
        %v2191 = vmax.f32 %v2029, 0.0
        %v2192 = vmax.f32 %v2034, 0.0
        %v2193 = vmax.f32 %v2039, 0.0
        %v2194 = vmax.f32 %v2044, 0.0
        %v2195 = vmax.f32 %v2049, 0.0
        %v2196 = vmax.f32 %v2054, 0.0
        %v2197 = vmax.f32 %v2059, 0.0
        %v2198 = vmax.f32 %v2064, 0.0
        %v2199 = vmax.f32 %v2069, 0.0
        %v2200 = vld [vmem:[%s4] sm:$0xff]
        %v2201 = vld [vmem:[%s4 + $0x8] sm:$0xff]
        %v2202 = vld [vmem:[%s4 + $0x10] sm:$0xff]
        %v2203 = vld [vmem:[%s4 + $0x18] sm:$0xff]
        %v2204 = vld [vmem:[%s5] sm:$0x1]
        %v2206 = vlaneseq
        %v2207 = vshrl.u32 %v2206, 7
        %v2208 = vsub.s32 0, %v2207
        %v2209 = vrot.slane %v2204, %v2208
        %v2212 = vsel %vm982, %v2072, 0
        %v2215 = vsel %vm982, %v2073, 0
        %v2218 = vsel %vm982, %v2074, 0
        %v2221 = vsel %vm982, %v2075, 0
        %v2224 = vsel %vm982, %v2076, 0
        %v2227 = vsel %vm982, %v2077, 0
        %v2230 = vsel %vm982, %v2078, 0
        %v2233 = vsel %vm982, %v2079, 0
        %v2236 = vsel %vm982, %v2080, 0
        %v2239 = vsel %vm982, %v2081, 0
        %v2242 = vsel %vm982, %v2082, 0
        %v2245 = vsel %vm982, %v2083, 0
        %v2248 = vsel %vm982, %v2084, 0
        %v2251 = vsel %vm982, %v2085, 0
        %v2254 = vsel %vm982, %v2086, 0
        %v2257 = vsel %vm982, %v2087, 0
        %v2260 = vsel %vm982, %v2088, 0
        %v2263 = vsel %vm982, %v2089, 0
        %v2266 = vsel %vm982, %v2090, 0
        %v2269 = vsel %vm982, %v2091, 0
        %v2272 = vsel %vm982, %v2092, 0
        %v2275 = vsel %vm982, %v2093, 0
        %v2278 = vsel %vm982, %v2094, 0
        %v2281 = vsel %vm982, %v2095, 0
        %v2284 = vsel %vm982, %v2096, 0
        %v2287 = vsel %vm982, %v2097, 0
        %v2290 = vsel %vm982, %v2098, 0
        %v2293 = vsel %vm982, %v2099, 0
        %v2296 = vsel %vm982, %v2100, 0
        %v2299 = vsel %vm982, %v2101, 0
        %v2302 = vsel %vm982, %v2102, 0
        %v2305 = vsel %vm982, %v2103, 0
        %v2308 = vsel %vm982, %v2104, 0
        %v2311 = vsel %vm982, %v2105, 0
        %v2314 = vsel %vm982, %v2106, 0
        %v2317 = vsel %vm982, %v2107, 0
        %v2320 = vsel %vm982, %v2108, 0
        %v2323 = vsel %vm982, %v2109, 0
        %v2326 = vsel %vm982, %v2110, 0
        %v2329 = vsel %vm982, %v2111, 0
        %v2332 = vsel %vm982, %v2112, 0
        %v2335 = vsel %vm982, %v2113, 0
        %v2338 = vsel %vm982, %v2114, 0
        %v2341 = vsel %vm982, %v2115, 0
        %v2344 = vsel %vm982, %v2116, 0
        %v2347 = vsel %vm982, %v2117, 0
        %v2350 = vsel %vm982, %v2118, 0
        %v2353 = vsel %vm982, %v2119, 0
        %v2356 = vsel %vm982, %v2120, 0
        %v2359 = vsel %vm982, %v2121, 0
        %v2362 = vsel %vm982, %v2122, 0
        %v2365 = vsel %vm982, %v2123, 0
        %v2368 = vsel %vm982, %v2124, 0
        %v2371 = vsel %vm982, %v2125, 0
        %v2374 = vsel %vm982, %v2126, 0
        %v2377 = vsel %vm982, %v2127, 0
        %v2380 = vsel %vm982, %v2128, 0
        %v2383 = vsel %vm982, %v2129, 0
        %v2386 = vsel %vm982, %v2130, 0
        %v2389 = vsel %vm982, %v2131, 0
        %v2392 = vsel %vm982, %v2132, 0
        %v2395 = vsel %vm982, %v2133, 0
        %v2398 = vsel %vm982, %v2134, 0
        %v2401 = vsel %vm982, %v2135, 0
        %v2404 = vsel %vm982, %v2136, 0
        %v2407 = vsel %vm982, %v2137, 0
        %v2410 = vsel %vm982, %v2138, 0
        %v2413 = vsel %vm982, %v2139, 0
        %v2416 = vsel %vm982, %v2140, 0
        %v2419 = vsel %vm982, %v2141, 0
        %v2422 = vsel %vm982, %v2142, 0
        %v2425 = vsel %vm982, %v2143, 0
        %v2428 = vsel %vm982, %v2144, 0
        %v2431 = vsel %vm982, %v2145, 0
        %v2434 = vsel %vm982, %v2146, 0
        %v2437 = vsel %vm982, %v2147, 0
        %v2440 = vsel %vm982, %v2148, 0
        %v2443 = vsel %vm982, %v2149, 0
        %v2446 = vsel %vm982, %v2150, 0
        %v2449 = vsel %vm982, %v2151, 0
        %v2452 = vsel %vm982, %v2152, 0
        %v2455 = vsel %vm982, %v2153, 0
        %v2458 = vsel %vm982, %v2154, 0
        %v2461 = vsel %vm982, %v2155, 0
        %v2464 = vsel %vm982, %v2156, 0
        %v2467 = vsel %vm982, %v2157, 0
        %v2470 = vsel %vm982, %v2158, 0
        %v2473 = vsel %vm982, %v2159, 0
        %v2476 = vsel %vm982, %v2160, 0
        %v2479 = vsel %vm982, %v2161, 0
        %v2482 = vsel %vm982, %v2162, 0
        %v2485 = vsel %vm982, %v2163, 0
        %v2488 = vsel %vm982, %v2164, 0
        %v2491 = vsel %vm982, %v2165, 0
        %v2494 = vsel %vm982, %v2166, 0
        %v2497 = vsel %vm982, %v2167, 0
        %v2500 = vsel %vm982, %v2168, 0
        %v2503 = vsel %vm982, %v2169, 0
        %v2506 = vsel %vm982, %v2170, 0
        %v2509 = vsel %vm982, %v2171, 0
        %v2512 = vsel %vm982, %v2172, 0
        %v2515 = vsel %vm982, %v2173, 0
        %v2518 = vsel %vm982, %v2174, 0
        %v2521 = vsel %vm982, %v2175, 0
        %v2524 = vsel %vm982, %v2176, 0
        %v2527 = vsel %vm982, %v2177, 0
        %v2530 = vsel %vm982, %v2178, 0
        %v2533 = vsel %vm982, %v2179, 0
        %v2536 = vsel %vm982, %v2180, 0
        %v2539 = vsel %vm982, %v2181, 0
        %v2542 = vsel %vm982, %v2182, 0
        %v2545 = vsel %vm982, %v2183, 0
        %v2548 = vsel %vm982, %v2184, 0
        %v2551 = vsel %vm982, %v2185, 0
        %v2554 = vsel %vm982, %v2186, 0
        %v2557 = vsel %vm982, %v2187, 0
        %v2560 = vsel %vm982, %v2188, 0
        %v2563 = vsel %vm982, %v2189, 0
        %v2566 = vsel %vm982, %v2190, 0
        %v2569 = vsel %vm982, %v2191, 0
        %v2572 = vsel %vm982, %v2192, 0
        %v2575 = vsel %vm982, %v2193, 0
        %v2578 = vsel %vm982, %v2194, 0
        %v2581 = vsel %vm982, %v2195, 0
        %v2584 = vsel %vm982, %v2196, 0
        %v2587 = vsel %vm982, %v2197, 0
        %v2590 = vsel %vm982, %v2198, 0
        %v2593 = vsel %vm982, %v2199, 0
        %2595 = vmatprep.subr.mxu0 0.0
        %2596 = vmatpush1.msra.mxu0 %v2200
        %2597 = vmatprep.subr.mxu0 0.0
        %2598 = vmatpush1.msra.mxu0 %v2201
        %2599 = vmatprep.subr.mxu0 0.0
        %2600 = vmatpush1.msra.mxu0 %v2202
        %2601 = vmatprep.subr.mxu0 0.0
        %2602 = vmatpush1.msra.mxu0 %v2203
        %2603 = vmatprep.subr.mxu0 0.0
        %2604 = vmatpush1.msra.mxu0 0.0
        %2605 = vmatprep.subr.mxu0 0.0
        %2606 = vmatpush1.msra.mxu0 0.0
        %2607 = vmatprep.subr.mxu0 0.0
        %2608 = vmatpush1.msra.mxu0 0.0
        %2609 = vmatprep.subr.mxu0 0.0
        %2610 = vmatpush1.msra.mxu0 0.0
        %2611 = vmatprep.subr.mxu0 0.0
        %2612 = vmatpush1.msra.mxu0 0.0
        %2613 = vmatprep.subr.mxu0 0.0
        %2614 = vmatpush1.msra.mxu0 0.0
        %2615 = vmatprep.subr.mxu0 0.0
        %2616 = vmatpush1.msra.mxu0 0.0
        %2617 = vmatprep.subr.mxu0 0.0
        %2618 = vmatpush1.msra.mxu0 0.0
        %2619 = vmatprep.subr.mxu0 0.0
        %2620 = vmatpush1.msra.mxu0 0.0
        %2621 = vmatprep.subr.mxu0 0.0
        %2622 = vmatpush1.msra.mxu0 0.0
        %2623 = vmatprep.subr.mxu0 0.0
        %2624 = vmatpush1.msra.mxu0 0.0
        %2625 = vmatprep.subr.mxu0 0.0
        %2626 = vmatpush1.msra.mxu0 0.0
        %2627 = vmatprep.subr.mxu0 0.0
        %2628 = vmatpush1.msra.mxu0 0.0
        %2629 = vmatprep.subr.mxu0 0.0
        %2630 = vmatpush1.msra.mxu0 0.0
        %2631 = vmatprep.subr.mxu0 0.0
        %2632 = vmatpush1.msra.mxu0 0.0
        %2633 = vmatprep.subr.mxu0 0.0
        %2634 = vmatpush1.msra.mxu0 0.0
        %2635 = vmatprep.subr.mxu0 0.0
        %2636 = vmatpush1.msra.mxu0 0.0
        %2637 = vmatprep.subr.mxu0 0.0
        %2638 = vmatpush1.msra.mxu0 0.0
        %2639 = vmatprep.subr.mxu0 0.0
        %2640 = vmatpush1.msra.mxu0 0.0
        %2641 = vmatprep.subr.mxu0 0.0
        %2642 = vmatpush1.msra.mxu0 0.0
        %2643 = vmatprep.subr.mxu0 0.0
        %2644 = vmatpush1.msra.mxu0 0.0
        %2645 = vmatprep.subr.mxu0 0.0
        %2646 = vmatpush1.msra.mxu0 0.0
        %2647 = vmatprep.subr.mxu0 0.0
        %2648 = vmatpush1.msra.mxu0 0.0
        %2649 = vmatprep.subr.mxu0 0.0
        %2650 = vmatpush1.msra.mxu0 0.0
        %2651 = vmatprep.subr.mxu0 0.0
        %2652 = vmatpush1.msra.mxu0 0.0
        %2653 = vmatprep.subr.mxu0 0.0
        %2654 = vmatpush1.msra.mxu0 0.0
        %2655 = vmatprep.subr.mxu0 0.0
        %2656 = vmatpush1.msra.mxu0 0.0
        %2657 = vmatprep.subr.mxu0 0.0
        %2658 = vmatpush1.msra.mxu0 0.0
        %2659 = vmatprep.mubr.f32.mxu0 0.0
        %2660 = vmatmul.mubr.f32.gmra.mrb[0].mxu0 %v2212
        %v2661 = vpop.f32.mrb[0].mxu0
        %v2662 = vadd.f32 %v2209, %v2661
        %v2663 = vpop.f32.mrb[0].mxu0
        %2664 = vmatprep.mubr.f32.mxu0 0.0
        %2665 = vmatmul.mubr.f32.gmra.mrb[0].mxu0 %v2215
        %v2666 = vpop.f32.mrb[0].mxu0
        %v2667 = vadd.f32 %v2209, %v2666
        %v2668 = vpop.f32.mrb[0].mxu0
        %2669 = vmatprep.mubr.f32.mxu0 0.0
        %2670 = vmatmul.mubr.f32.gmra.mrb[0].mxu0 %v2218
        %v2671 = vpop.f32.mrb[0].mxu0
        %v2672 = vadd.f32 %v2209, %v2671
        %v2673 = vpop.f32.mrb[0].mxu0
        %2674 = vmatprep.mubr.f32.mxu0 0.0
        %2675 = vmatmul.mubr.f32.gmra.mrb[0].mxu0 %v2221
        %v2676 = vpop.f32.mrb[0].mxu0
        %v2677 = vadd.f32 %v2209, %v2676
        %v2678 = vpop.f32.mrb[0].mxu0
        %2679 = vmatprep.mubr.f32.mxu0 0.0
        %2680 = vmatmul.mubr.f32.gmra.mrb[0].mxu0 %v2224
        %v2681 = vpop.f32.mrb[0].mxu0
        %v2682 = vadd.f32 %v2209, %v2681
        %v2683 = vpop.f32.mrb[0].mxu0
        %2684 = vmatprep.mubr.f32.mxu0 0.0
        %2685 = vmatmul.mubr.f32.gmra.mrb[0].mxu0 %v2227
        %v2686 = vpop.f32.mrb[0].mxu0
        %v2687 = vadd.f32 %v2209, %v2686
        %v2688 = vpop.f32.mrb[0].mxu0
        %2689 = vmatprep.mubr.f32.mxu0 0.0
        %2690 = vmatmul.mubr.f32.gmra.mrb[0].mxu0 %v2230
        %v2691 = vpop.f32.mrb[0].mxu0
        %v2692 = vadd.f32 %v2209, %v2691
        %v2693 = vpop.f32.mrb[0].mxu0
        %2694 = vmatprep.mubr.f32.mxu0 0.0
        %2695 = vmatmul.mubr.f32.gmra.mrb[0].mxu0 %v2233
        %v2696 = vpop.f32.mrb[0].mxu0
        %v2697 = vadd.f32 %v2209, %v2696
        %v2698 = vpop.f32.mrb[0].mxu0
        %2699 = vmatprep.mubr.f32.mxu0 0.0
        %2700 = vmatmul.mubr.f32.gmra.mrb[0].mxu0 %v2236
        %v2701 = vpop.f32.mrb[0].mxu0
        %v2702 = vadd.f32 %v2209, %v2701
        %v2703 = vpop.f32.mrb[0].mxu0
        %2704 = vmatprep.mubr.f32.mxu0 0.0
        %2705 = vmatmul.mubr.f32.gmra.mrb[0].mxu0 %v2239
        %v2706 = vpop.f32.mrb[0].mxu0
        %v2707 = vadd.f32 %v2209, %v2706
        %v2708 = vpop.f32.mrb[0].mxu0
        %2709 = vmatprep.mubr.f32.mxu0 0.0
        %2710 = vmatmul.mubr.f32.gmra.mrb[0].mxu0 %v2242
        %v2711 = vpop.f32.mrb[0].mxu0
        %v2712 = vadd.f32 %v2209, %v2711
        %v2713 = vpop.f32.mrb[0].mxu0
        %2714 = vmatprep.mubr.f32.mxu0 0.0
        %2715 = vmatmul.mubr.f32.gmra.mrb[0].mxu0 %v2245
        %v2716 = vpop.f32.mrb[0].mxu0
        %v2717 = vadd.f32 %v2209, %v2716
        %v2718 = vpop.f32.mrb[0].mxu0
        %2719 = vmatprep.mubr.f32.mxu0 0.0
        %2720 = vmatmul.mubr.f32.gmra.mrb[0].mxu0 %v2248
        %v2721 = vpop.f32.mrb[0].mxu0
        %v2722 = vadd.f32 %v2209, %v2721
        %v2723 = vpop.f32.mrb[0].mxu0
        %2724 = vmatprep.mubr.f32.mxu0 0.0
        %2725 = vmatmul.mubr.f32.gmra.mrb[0].mxu0 %v2251
        %v2726 = vpop.f32.mrb[0].mxu0
        %v2727 = vadd.f32 %v2209, %v2726
        %v2728 = vpop.f32.mrb[0].mxu0
        %2729 = vmatprep.mubr.f32.mxu0 0.0
        %2730 = vmatmul.mubr.f32.gmra.mrb[0].mxu0 %v2254
        %v2731 = vpop.f32.mrb[0].mxu0
        %v2732 = vadd.f32 %v2209, %v2731
        %v2733 = vpop.f32.mrb[0].mxu0
        %2734 = vmatprep.mubr.f32.mxu0 0.0
        %2735 = vmatmul.mubr.f32.gmra.mrb[0].mxu0 %v2257
        %v2736 = vpop.f32.mrb[0].mxu0
        %v2737 = vadd.f32 %v2209, %v2736
        %v2738 = vpop.f32.mrb[0].mxu0
        %2739 = vmatprep.mubr.f32.mxu0 0.0
        %2740 = vmatmul.mubr.f32.gmra.mrb[0].mxu0 %v2260
        %v2741 = vpop.f32.mrb[0].mxu0
        %v2742 = vadd.f32 %v2209, %v2741
        %v2743 = vpop.f32.mrb[0].mxu0
        %2744 = vmatprep.mubr.f32.mxu0 0.0
        %2745 = vmatmul.mubr.f32.gmra.mrb[0].mxu0 %v2263
        %v2746 = vpop.f32.mrb[0].mxu0
        %v2747 = vadd.f32 %v2209, %v2746
        %v2748 = vpop.f32.mrb[0].mxu0
        %2749 = vmatprep.mubr.f32.mxu0 0.0
        %2750 = vmatmul.mubr.f32.gmra.mrb[0].mxu0 %v2266
        %v2751 = vpop.f32.mrb[0].mxu0
        %v2752 = vadd.f32 %v2209, %v2751
        %v2753 = vpop.f32.mrb[0].mxu0
        %2754 = vmatprep.mubr.f32.mxu0 0.0
        %2755 = vmatmul.mubr.f32.gmra.mrb[0].mxu0 %v2269
        %v2756 = vpop.f32.mrb[0].mxu0
        %v2757 = vadd.f32 %v2209, %v2756
        %v2758 = vpop.f32.mrb[0].mxu0
        %2759 = vmatprep.mubr.f32.mxu0 0.0
        %2760 = vmatmul.mubr.f32.gmra.mrb[0].mxu0 %v2272
        %v2761 = vpop.f32.mrb[0].mxu0
        %v2762 = vadd.f32 %v2209, %v2761
        %v2763 = vpop.f32.mrb[0].mxu0
        %2764 = vmatprep.mubr.f32.mxu0 0.0
        %2765 = vmatmul.mubr.f32.gmra.mrb[0].mxu0 %v2275
        %v2766 = vpop.f32.mrb[0].mxu0
        %v2767 = vadd.f32 %v2209, %v2766
        %v2768 = vpop.f32.mrb[0].mxu0
        %2769 = vmatprep.mubr.f32.mxu0 0.0
        %2770 = vmatmul.mubr.f32.gmra.mrb[0].mxu0 %v2278
        %v2771 = vpop.f32.mrb[0].mxu0
        %v2772 = vadd.f32 %v2209, %v2771
        %v2773 = vpop.f32.mrb[0].mxu0
        %2774 = vmatprep.mubr.f32.mxu0 0.0
        %2775 = vmatmul.mubr.f32.gmra.mrb[0].mxu0 %v2281
        %v2776 = vpop.f32.mrb[0].mxu0
        %v2777 = vadd.f32 %v2209, %v2776
        %v2778 = vpop.f32.mrb[0].mxu0
        %2779 = vmatprep.mubr.f32.mxu0 0.0
        %2780 = vmatmul.mubr.f32.gmra.mrb[0].mxu0 %v2284
        %v2781 = vpop.f32.mrb[0].mxu0
        %v2782 = vadd.f32 %v2209, %v2781
        %v2783 = vpop.f32.mrb[0].mxu0
        %2784 = vmatprep.mubr.f32.mxu0 0.0
        %2785 = vmatmul.mubr.f32.gmra.mrb[0].mxu0 %v2287
        %v2786 = vpop.f32.mrb[0].mxu0
        %v2787 = vadd.f32 %v2209, %v2786
        %v2788 = vpop.f32.mrb[0].mxu0
        %2789 = vmatprep.mubr.f32.mxu0 0.0
        %2790 = vmatmul.mubr.f32.gmra.mrb[0].mxu0 %v2290
        %v2791 = vpop.f32.mrb[0].mxu0
        %v2792 = vadd.f32 %v2209, %v2791
        %v2793 = vpop.f32.mrb[0].mxu0
        %2794 = vmatprep.mubr.f32.mxu0 0.0
        %2795 = vmatmul.mubr.f32.gmra.mrb[0].mxu0 %v2293
        %v2796 = vpop.f32.mrb[0].mxu0
        %v2797 = vadd.f32 %v2209, %v2796
        %v2798 = vpop.f32.mrb[0].mxu0
        %2799 = vmatprep.mubr.f32.mxu0 0.0
        %2800 = vmatmul.mubr.f32.gmra.mrb[0].mxu0 %v2296
        %v2801 = vpop.f32.mrb[0].mxu0
        %v2802 = vadd.f32 %v2209, %v2801
        %v2803 = vpop.f32.mrb[0].mxu0
        %2804 = vmatprep.mubr.f32.mxu0 0.0
        %2805 = vmatmul.mubr.f32.gmra.mrb[0].mxu0 %v2299
        %v2806 = vpop.f32.mrb[0].mxu0
        %v2807 = vadd.f32 %v2209, %v2806
        %v2808 = vpop.f32.mrb[0].mxu0
        %2809 = vmatprep.mubr.f32.mxu0 0.0
        %2810 = vmatmul.mubr.f32.gmra.mrb[0].mxu0 %v2302
        %v2811 = vpop.f32.mrb[0].mxu0
        %v2812 = vadd.f32 %v2209, %v2811
        %v2813 = vpop.f32.mrb[0].mxu0
        %2814 = vmatprep.mubr.f32.mxu0 0.0
        %2815 = vmatmul.mubr.f32.gmra.mrb[0].mxu0 %v2305
        %v2816 = vpop.f32.mrb[0].mxu0
        %v2817 = vadd.f32 %v2209, %v2816
        %v2818 = vpop.f32.mrb[0].mxu0
        %2819 = vmatprep.mubr.f32.mxu0 0.0
        %2820 = vmatmul.mubr.f32.gmra.mrb[0].mxu0 %v2308
        %v2821 = vpop.f32.mrb[0].mxu0
        %v2822 = vadd.f32 %v2209, %v2821
        %v2823 = vpop.f32.mrb[0].mxu0
        %2824 = vmatprep.mubr.f32.mxu0 0.0
        %2825 = vmatmul.mubr.f32.gmra.mrb[0].mxu0 %v2311
        %v2826 = vpop.f32.mrb[0].mxu0
        %v2827 = vadd.f32 %v2209, %v2826
        %v2828 = vpop.f32.mrb[0].mxu0
        %2829 = vmatprep.mubr.f32.mxu0 0.0
        %2830 = vmatmul.mubr.f32.gmra.mrb[0].mxu0 %v2314
        %v2831 = vpop.f32.mrb[0].mxu0
        %v2832 = vadd.f32 %v2209, %v2831
        %v2833 = vpop.f32.mrb[0].mxu0
        %2834 = vmatprep.mubr.f32.mxu0 0.0
        %2835 = vmatmul.mubr.f32.gmra.mrb[0].mxu0 %v2317
        %v2836 = vpop.f32.mrb[0].mxu0
        %v2837 = vadd.f32 %v2209, %v2836
        %v2838 = vpop.f32.mrb[0].mxu0
        %2839 = vmatprep.mubr.f32.mxu0 0.0
        %2840 = vmatmul.mubr.f32.gmra.mrb[0].mxu0 %v2320
        %v2841 = vpop.f32.mrb[0].mxu0
        %v2842 = vadd.f32 %v2209, %v2841
        %v2843 = vpop.f32.mrb[0].mxu0
        %2844 = vmatprep.mubr.f32.mxu0 0.0
        %2845 = vmatmul.mubr.f32.gmra.mrb[0].mxu0 %v2323
        %v2846 = vpop.f32.mrb[0].mxu0
        %v2847 = vadd.f32 %v2209, %v2846
        %v2848 = vpop.f32.mrb[0].mxu0
        %2849 = vmatprep.mubr.f32.mxu0 0.0
        %2850 = vmatmul.mubr.f32.gmra.mrb[0].mxu0 %v2326
        %v2851 = vpop.f32.mrb[0].mxu0
        %v2852 = vadd.f32 %v2209, %v2851
        %v2853 = vpop.f32.mrb[0].mxu0
        %2854 = vmatprep.mubr.f32.mxu0 0.0
        %2855 = vmatmul.mubr.f32.gmra.mrb[0].mxu0 %v2329
        %v2856 = vpop.f32.mrb[0].mxu0
        %v2857 = vadd.f32 %v2209, %v2856
        %v2858 = vpop.f32.mrb[0].mxu0
        %2859 = vmatprep.mubr.f32.mxu0 0.0
        %2860 = vmatmul.mubr.f32.gmra.mrb[0].mxu0 %v2332
        %v2861 = vpop.f32.mrb[0].mxu0
        %v2862 = vadd.f32 %v2209, %v2861
        %v2863 = vpop.f32.mrb[0].mxu0
        %2864 = vmatprep.mubr.f32.mxu0 0.0
        %2865 = vmatmul.mubr.f32.gmra.mrb[0].mxu0 %v2335
        %v2866 = vpop.f32.mrb[0].mxu0
        %v2867 = vadd.f32 %v2209, %v2866
        %v2868 = vpop.f32.mrb[0].mxu0
        %2869 = vmatprep.mubr.f32.mxu0 0.0
        %2870 = vmatmul.mubr.f32.gmra.mrb[0].mxu0 %v2338
        %v2871 = vpop.f32.mrb[0].mxu0
        %v2872 = vadd.f32 %v2209, %v2871
        %v2873 = vpop.f32.mrb[0].mxu0
        %2874 = vmatprep.mubr.f32.mxu0 0.0
        %2875 = vmatmul.mubr.f32.gmra.mrb[0].mxu0 %v2341
        %v2876 = vpop.f32.mrb[0].mxu0
        %v2877 = vadd.f32 %v2209, %v2876
        %v2878 = vpop.f32.mrb[0].mxu0
        %2879 = vmatprep.mubr.f32.mxu0 0.0
        %2880 = vmatmul.mubr.f32.gmra.mrb[0].mxu0 %v2344
        %v2881 = vpop.f32.mrb[0].mxu0
        %v2882 = vadd.f32 %v2209, %v2881
        %v2883 = vpop.f32.mrb[0].mxu0
        %2884 = vmatprep.mubr.f32.mxu0 0.0
        %2885 = vmatmul.mubr.f32.gmra.mrb[0].mxu0 %v2347
        %v2886 = vpop.f32.mrb[0].mxu0
        %v2887 = vadd.f32 %v2209, %v2886
        %v2888 = vpop.f32.mrb[0].mxu0
        %2889 = vmatprep.mubr.f32.mxu0 0.0
        %2890 = vmatmul.mubr.f32.gmra.mrb[0].mxu0 %v2350
        %v2891 = vpop.f32.mrb[0].mxu0
        %v2892 = vadd.f32 %v2209, %v2891
        %v2893 = vpop.f32.mrb[0].mxu0
        %2894 = vmatprep.mubr.f32.mxu0 0.0
        %2895 = vmatmul.mubr.f32.gmra.mrb[0].mxu0 %v2353
        %v2896 = vpop.f32.mrb[0].mxu0
        %v2897 = vadd.f32 %v2209, %v2896
        %v2898 = vpop.f32.mrb[0].mxu0
        %2899 = vmatprep.mubr.f32.mxu0 0.0
        %2900 = vmatmul.mubr.f32.gmra.mrb[0].mxu0 %v2356
        %v2901 = vpop.f32.mrb[0].mxu0
        %v2902 = vadd.f32 %v2209, %v2901
        %v2903 = vpop.f32.mrb[0].mxu0
        %2904 = vmatprep.mubr.f32.mxu0 0.0
        %2905 = vmatmul.mubr.f32.gmra.mrb[0].mxu0 %v2359
        %v2906 = vpop.f32.mrb[0].mxu0
        %v2907 = vadd.f32 %v2209, %v2906
        %v2908 = vpop.f32.mrb[0].mxu0
        %2909 = vmatprep.mubr.f32.mxu0 0.0
        %2910 = vmatmul.mubr.f32.gmra.mrb[0].mxu0 %v2362
        %v2911 = vpop.f32.mrb[0].mxu0
        %v2912 = vadd.f32 %v2209, %v2911
        %v2913 = vpop.f32.mrb[0].mxu0
        %2914 = vmatprep.mubr.f32.mxu0 0.0
        %2915 = vmatmul.mubr.f32.gmra.mrb[0].mxu0 %v2365
        %v2916 = vpop.f32.mrb[0].mxu0
        %v2917 = vadd.f32 %v2209, %v2916
        %v2918 = vpop.f32.mrb[0].mxu0
        %2919 = vmatprep.mubr.f32.mxu0 0.0
        %2920 = vmatmul.mubr.f32.gmra.mrb[0].mxu0 %v2368
        %v2921 = vpop.f32.mrb[0].mxu0
        %v2922 = vadd.f32 %v2209, %v2921
        %v2923 = vpop.f32.mrb[0].mxu0
        %2924 = vmatprep.mubr.f32.mxu0 0.0
        %2925 = vmatmul.mubr.f32.gmra.mrb[0].mxu0 %v2371
        %v2926 = vpop.f32.mrb[0].mxu0
        %v2927 = vadd.f32 %v2209, %v2926
        %v2928 = vpop.f32.mrb[0].mxu0
        %2929 = vmatprep.mubr.f32.mxu0 0.0
        %2930 = vmatmul.mubr.f32.gmra.mrb[0].mxu0 %v2374
        %v2931 = vpop.f32.mrb[0].mxu0
        %v2932 = vadd.f32 %v2209, %v2931
        %v2933 = vpop.f32.mrb[0].mxu0
        %2934 = vmatprep.mubr.f32.mxu0 0.0
        %2935 = vmatmul.mubr.f32.gmra.mrb[0].mxu0 %v2377
        %v2936 = vpop.f32.mrb[0].mxu0
        %v2937 = vadd.f32 %v2209, %v2936
        %v2938 = vpop.f32.mrb[0].mxu0
        %2939 = vmatprep.mubr.f32.mxu0 0.0
        %2940 = vmatmul.mubr.f32.gmra.mrb[0].mxu0 %v2380
        %v2941 = vpop.f32.mrb[0].mxu0
        %v2942 = vadd.f32 %v2209, %v2941
        %v2943 = vpop.f32.mrb[0].mxu0
        %2944 = vmatprep.mubr.f32.mxu0 0.0
        %2945 = vmatmul.mubr.f32.gmra.mrb[0].mxu0 %v2383
        %v2946 = vpop.f32.mrb[0].mxu0
        %v2947 = vadd.f32 %v2209, %v2946
        %v2948 = vpop.f32.mrb[0].mxu0
        %2949 = vmatprep.mubr.f32.mxu0 0.0
        %2950 = vmatmul.mubr.f32.gmra.mrb[0].mxu0 %v2386
        %v2951 = vpop.f32.mrb[0].mxu0
        %v2952 = vadd.f32 %v2209, %v2951
        %v2953 = vpop.f32.mrb[0].mxu0
        %2954 = vmatprep.mubr.f32.mxu0 0.0
        %2955 = vmatmul.mubr.f32.gmra.mrb[0].mxu0 %v2389
        %v2956 = vpop.f32.mrb[0].mxu0
        %v2957 = vadd.f32 %v2209, %v2956
        %v2958 = vpop.f32.mrb[0].mxu0
        %2959 = vmatprep.mubr.f32.mxu0 0.0
        %2960 = vmatmul.mubr.f32.gmra.mrb[0].mxu0 %v2392
        %v2961 = vpop.f32.mrb[0].mxu0
        %v2962 = vadd.f32 %v2209, %v2961
        %v2963 = vpop.f32.mrb[0].mxu0
        %2964 = vmatprep.mubr.f32.mxu0 0.0
        %2965 = vmatmul.mubr.f32.gmra.mrb[0].mxu0 %v2395
        %v2966 = vpop.f32.mrb[0].mxu0
        %v2967 = vadd.f32 %v2209, %v2966
        %v2968 = vpop.f32.mrb[0].mxu0
        %2969 = vmatprep.mubr.f32.mxu0 0.0
        %2970 = vmatmul.mubr.f32.gmra.mrb[0].mxu0 %v2398
        %v2971 = vpop.f32.mrb[0].mxu0
        %v2972 = vadd.f32 %v2209, %v2971
        %v2973 = vpop.f32.mrb[0].mxu0
        %2974 = vmatprep.mubr.f32.mxu0 0.0
        %2975 = vmatmul.mubr.f32.gmra.mrb[0].mxu0 %v2401
        %v2976 = vpop.f32.mrb[0].mxu0
        %v2977 = vadd.f32 %v2209, %v2976
        %v2978 = vpop.f32.mrb[0].mxu0
        %2979 = vmatprep.mubr.f32.mxu0 0.0
        %2980 = vmatmul.mubr.f32.gmra.mrb[0].mxu0 %v2404
        %v2981 = vpop.f32.mrb[0].mxu0
        %v2982 = vadd.f32 %v2209, %v2981
        %v2983 = vpop.f32.mrb[0].mxu0
        %2984 = vmatprep.mubr.f32.mxu0 0.0
        %2985 = vmatmul.mubr.f32.gmra.mrb[0].mxu0 %v2407
        %v2986 = vpop.f32.mrb[0].mxu0
        %v2987 = vadd.f32 %v2209, %v2986
        %v2988 = vpop.f32.mrb[0].mxu0
        %2989 = vmatprep.mubr.f32.mxu0 0.0
        %2990 = vmatmul.mubr.f32.gmra.mrb[0].mxu0 %v2410
        %v2991 = vpop.f32.mrb[0].mxu0
        %v2992 = vadd.f32 %v2209, %v2991
        %v2993 = vpop.f32.mrb[0].mxu0
        %2994 = vmatprep.mubr.f32.mxu0 0.0
        %2995 = vmatmul.mubr.f32.gmra.mrb[0].mxu0 %v2413
        %v2996 = vpop.f32.mrb[0].mxu0
        %v2997 = vadd.f32 %v2209, %v2996
        %v2998 = vpop.f32.mrb[0].mxu0
        %2999 = vmatprep.mubr.f32.mxu0 0.0
        %3000 = vmatmul.mubr.f32.gmra.mrb[0].mxu0 %v2416
        %v3001 = vpop.f32.mrb[0].mxu0
        %v3002 = vadd.f32 %v2209, %v3001
        %v3003 = vpop.f32.mrb[0].mxu0
        %3004 = vmatprep.mubr.f32.mxu0 0.0
        %3005 = vmatmul.mubr.f32.gmra.mrb[0].mxu0 %v2419
        %v3006 = vpop.f32.mrb[0].mxu0
        %v3007 = vadd.f32 %v2209, %v3006
        %v3008 = vpop.f32.mrb[0].mxu0
        %3009 = vmatprep.mubr.f32.mxu0 0.0
        %3010 = vmatmul.mubr.f32.gmra.mrb[0].mxu0 %v2422
        %v3011 = vpop.f32.mrb[0].mxu0
        %v3012 = vadd.f32 %v2209, %v3011
        %v3013 = vpop.f32.mrb[0].mxu0
        %3014 = vmatprep.mubr.f32.mxu0 0.0
        %3015 = vmatmul.mubr.f32.gmra.mrb[0].mxu0 %v2425
        %v3016 = vpop.f32.mrb[0].mxu0
        %v3017 = vadd.f32 %v2209, %v3016
        %v3018 = vpop.f32.mrb[0].mxu0
        %3019 = vmatprep.mubr.f32.mxu0 0.0
        %3020 = vmatmul.mubr.f32.gmra.mrb[0].mxu0 %v2428
        %v3021 = vpop.f32.mrb[0].mxu0
        %v3022 = vadd.f32 %v2209, %v3021
        %v3023 = vpop.f32.mrb[0].mxu0
        %3024 = vmatprep.mubr.f32.mxu0 0.0
        %3025 = vmatmul.mubr.f32.gmra.mrb[0].mxu0 %v2431
        %v3026 = vpop.f32.mrb[0].mxu0
        %v3027 = vadd.f32 %v2209, %v3026
        %v3028 = vpop.f32.mrb[0].mxu0
        %3029 = vmatprep.mubr.f32.mxu0 0.0
        %3030 = vmatmul.mubr.f32.gmra.mrb[0].mxu0 %v2434
        %v3031 = vpop.f32.mrb[0].mxu0
        %v3032 = vadd.f32 %v2209, %v3031
        %v3033 = vpop.f32.mrb[0].mxu0
        %3034 = vmatprep.mubr.f32.mxu0 0.0
        %3035 = vmatmul.mubr.f32.gmra.mrb[0].mxu0 %v2437
        %v3036 = vpop.f32.mrb[0].mxu0
        %v3037 = vadd.f32 %v2209, %v3036
        %v3038 = vpop.f32.mrb[0].mxu0
        %3039 = vmatprep.mubr.f32.mxu0 0.0
        %3040 = vmatmul.mubr.f32.gmra.mrb[0].mxu0 %v2440
        %v3041 = vpop.f32.mrb[0].mxu0
        %v3042 = vadd.f32 %v2209, %v3041
        %v3043 = vpop.f32.mrb[0].mxu0
        %3044 = vmatprep.mubr.f32.mxu0 0.0
        %3045 = vmatmul.mubr.f32.gmra.mrb[0].mxu0 %v2443
        %v3046 = vpop.f32.mrb[0].mxu0
        %v3047 = vadd.f32 %v2209, %v3046
        %v3048 = vpop.f32.mrb[0].mxu0
        %3049 = vmatprep.mubr.f32.mxu0 0.0
        %3050 = vmatmul.mubr.f32.gmra.mrb[0].mxu0 %v2446
        %v3051 = vpop.f32.mrb[0].mxu0
        %v3052 = vadd.f32 %v2209, %v3051
        %v3053 = vpop.f32.mrb[0].mxu0
        %3054 = vmatprep.mubr.f32.mxu0 0.0
        %3055 = vmatmul.mubr.f32.gmra.mrb[0].mxu0 %v2449
        %v3056 = vpop.f32.mrb[0].mxu0
        %v3057 = vadd.f32 %v2209, %v3056
        %v3058 = vpop.f32.mrb[0].mxu0
        %3059 = vmatprep.mubr.f32.mxu0 0.0
        %3060 = vmatmul.mubr.f32.gmra.mrb[0].mxu0 %v2452
        %v3061 = vpop.f32.mrb[0].mxu0
        %v3062 = vadd.f32 %v2209, %v3061
        %v3063 = vpop.f32.mrb[0].mxu0
        %3064 = vmatprep.mubr.f32.mxu0 0.0
        %3065 = vmatmul.mubr.f32.gmra.mrb[0].mxu0 %v2455
        %v3066 = vpop.f32.mrb[0].mxu0
        %v3067 = vadd.f32 %v2209, %v3066
        %v3068 = vpop.f32.mrb[0].mxu0
        %3069 = vmatprep.mubr.f32.mxu0 0.0
        %3070 = vmatmul.mubr.f32.gmra.mrb[0].mxu0 %v2458
        %v3071 = vpop.f32.mrb[0].mxu0
        %v3072 = vadd.f32 %v2209, %v3071
        %v3073 = vpop.f32.mrb[0].mxu0
        %3074 = vmatprep.mubr.f32.mxu0 0.0
        %3075 = vmatmul.mubr.f32.gmra.mrb[0].mxu0 %v2461
        %v3076 = vpop.f32.mrb[0].mxu0
        %v3077 = vadd.f32 %v2209, %v3076
        %v3078 = vpop.f32.mrb[0].mxu0
        %3079 = vmatprep.mubr.f32.mxu0 0.0
        %3080 = vmatmul.mubr.f32.gmra.mrb[0].mxu0 %v2464
        %v3081 = vpop.f32.mrb[0].mxu0
        %v3082 = vadd.f32 %v2209, %v3081
        %v3083 = vpop.f32.mrb[0].mxu0
        %3084 = vmatprep.mubr.f32.mxu0 0.0
        %3085 = vmatmul.mubr.f32.gmra.mrb[0].mxu0 %v2467
        %v3086 = vpop.f32.mrb[0].mxu0
        %v3087 = vadd.f32 %v2209, %v3086
        %v3088 = vpop.f32.mrb[0].mxu0
        %3089 = vmatprep.mubr.f32.mxu0 0.0
        %3090 = vmatmul.mubr.f32.gmra.mrb[0].mxu0 %v2470
        %v3091 = vpop.f32.mrb[0].mxu0
        %v3092 = vadd.f32 %v2209, %v3091
        %v3093 = vpop.f32.mrb[0].mxu0
        %3094 = vmatprep.mubr.f32.mxu0 0.0
        %3095 = vmatmul.mubr.f32.gmra.mrb[0].mxu0 %v2473
        %v3096 = vpop.f32.mrb[0].mxu0
        %v3097 = vadd.f32 %v2209, %v3096
        %v3098 = vpop.f32.mrb[0].mxu0
        %3099 = vmatprep.mubr.f32.mxu0 0.0
        %3100 = vmatmul.mubr.f32.gmra.mrb[0].mxu0 %v2476
        %v3101 = vpop.f32.mrb[0].mxu0
        %v3102 = vadd.f32 %v2209, %v3101
        %v3103 = vpop.f32.mrb[0].mxu0
        %3104 = vmatprep.mubr.f32.mxu0 0.0
        %3105 = vmatmul.mubr.f32.gmra.mrb[0].mxu0 %v2479
        %v3106 = vpop.f32.mrb[0].mxu0
        %v3107 = vadd.f32 %v2209, %v3106
        %v3108 = vpop.f32.mrb[0].mxu0
        %3109 = vmatprep.mubr.f32.mxu0 0.0
        %3110 = vmatmul.mubr.f32.gmra.mrb[0].mxu0 %v2482
        %v3111 = vpop.f32.mrb[0].mxu0
        %v3112 = vadd.f32 %v2209, %v3111
        %v3113 = vpop.f32.mrb[0].mxu0
        %3114 = vmatprep.mubr.f32.mxu0 0.0
        %3115 = vmatmul.mubr.f32.gmra.mrb[0].mxu0 %v2485
        %v3116 = vpop.f32.mrb[0].mxu0
        %v3117 = vadd.f32 %v2209, %v3116
        %v3118 = vpop.f32.mrb[0].mxu0
        %3119 = vmatprep.mubr.f32.mxu0 0.0
        %3120 = vmatmul.mubr.f32.gmra.mrb[0].mxu0 %v2488
        %v3121 = vpop.f32.mrb[0].mxu0
        %v3122 = vadd.f32 %v2209, %v3121
        %v3123 = vpop.f32.mrb[0].mxu0
        %3124 = vmatprep.mubr.f32.mxu0 0.0
        %3125 = vmatmul.mubr.f32.gmra.mrb[0].mxu0 %v2491
        %v3126 = vpop.f32.mrb[0].mxu0
        %v3127 = vadd.f32 %v2209, %v3126
        %v3128 = vpop.f32.mrb[0].mxu0
        %3129 = vmatprep.mubr.f32.mxu0 0.0
        %3130 = vmatmul.mubr.f32.gmra.mrb[0].mxu0 %v2494
        %v3131 = vpop.f32.mrb[0].mxu0
        %v3132 = vadd.f32 %v2209, %v3131
        %v3133 = vpop.f32.mrb[0].mxu0
        %3134 = vmatprep.mubr.f32.mxu0 0.0
        %3135 = vmatmul.mubr.f32.gmra.mrb[0].mxu0 %v2497
        %v3136 = vpop.f32.mrb[0].mxu0
        %v3137 = vadd.f32 %v2209, %v3136
        %v3138 = vpop.f32.mrb[0].mxu0
        %3139 = vmatprep.mubr.f32.mxu0 0.0
        %3140 = vmatmul.mubr.f32.gmra.mrb[0].mxu0 %v2500
        %v3141 = vpop.f32.mrb[0].mxu0
        %v3142 = vadd.f32 %v2209, %v3141
        %v3143 = vpop.f32.mrb[0].mxu0
        %3144 = vmatprep.mubr.f32.mxu0 0.0
        %3145 = vmatmul.mubr.f32.gmra.mrb[0].mxu0 %v2503
        %v3146 = vpop.f32.mrb[0].mxu0
        %v3147 = vadd.f32 %v2209, %v3146
        %v3148 = vpop.f32.mrb[0].mxu0
        %3149 = vmatprep.mubr.f32.mxu0 0.0
        %3150 = vmatmul.mubr.f32.gmra.mrb[0].mxu0 %v2506
        %v3151 = vpop.f32.mrb[0].mxu0
        %v3152 = vadd.f32 %v2209, %v3151
        %v3153 = vpop.f32.mrb[0].mxu0
        %3154 = vmatprep.mubr.f32.mxu0 0.0
        %3155 = vmatmul.mubr.f32.gmra.mrb[0].mxu0 %v2509
        %v3156 = vpop.f32.mrb[0].mxu0
        %v3157 = vadd.f32 %v2209, %v3156
        %v3158 = vpop.f32.mrb[0].mxu0
        %3159 = vmatprep.mubr.f32.mxu0 0.0
        %3160 = vmatmul.mubr.f32.gmra.mrb[0].mxu0 %v2512
        %v3161 = vpop.f32.mrb[0].mxu0
        %v3162 = vadd.f32 %v2209, %v3161
        %v3163 = vpop.f32.mrb[0].mxu0
        %3164 = vmatprep.mubr.f32.mxu0 0.0
        %3165 = vmatmul.mubr.f32.gmra.mrb[0].mxu0 %v2515
        %v3166 = vpop.f32.mrb[0].mxu0
        %v3167 = vadd.f32 %v2209, %v3166
        %v3168 = vpop.f32.mrb[0].mxu0
        %3169 = vmatprep.mubr.f32.mxu0 0.0
        %3170 = vmatmul.mubr.f32.gmra.mrb[0].mxu0 %v2518
        %v3171 = vpop.f32.mrb[0].mxu0
        %v3172 = vadd.f32 %v2209, %v3171
        %v3173 = vpop.f32.mrb[0].mxu0
        %3174 = vmatprep.mubr.f32.mxu0 0.0
        %3175 = vmatmul.mubr.f32.gmra.mrb[0].mxu0 %v2521
        %v3176 = vpop.f32.mrb[0].mxu0
        %v3177 = vadd.f32 %v2209, %v3176
        %v3178 = vpop.f32.mrb[0].mxu0
        %3179 = vmatprep.mubr.f32.mxu0 0.0
        %3180 = vmatmul.mubr.f32.gmra.mrb[0].mxu0 %v2524
        %v3181 = vpop.f32.mrb[0].mxu0
        %v3182 = vadd.f32 %v2209, %v3181
        %v3183 = vpop.f32.mrb[0].mxu0
        %3184 = vmatprep.mubr.f32.mxu0 0.0
        %3185 = vmatmul.mubr.f32.gmra.mrb[0].mxu0 %v2527
        %v3186 = vpop.f32.mrb[0].mxu0
        %v3187 = vadd.f32 %v2209, %v3186
        %v3188 = vpop.f32.mrb[0].mxu0
        %3189 = vmatprep.mubr.f32.mxu0 0.0
        %3190 = vmatmul.mubr.f32.gmra.mrb[0].mxu0 %v2530
        %v3191 = vpop.f32.mrb[0].mxu0
        %v3192 = vadd.f32 %v2209, %v3191
        %v3193 = vpop.f32.mrb[0].mxu0
        %3194 = vmatprep.mubr.f32.mxu0 0.0
        %3195 = vmatmul.mubr.f32.gmra.mrb[0].mxu0 %v2533
        %v3196 = vpop.f32.mrb[0].mxu0
        %v3197 = vadd.f32 %v2209, %v3196
        %v3198 = vpop.f32.mrb[0].mxu0
        %3199 = vmatprep.mubr.f32.mxu0 0.0
        %3200 = vmatmul.mubr.f32.gmra.mrb[0].mxu0 %v2536
        %v3201 = vpop.f32.mrb[0].mxu0
        %v3202 = vadd.f32 %v2209, %v3201
        %v3203 = vpop.f32.mrb[0].mxu0
        %3204 = vmatprep.mubr.f32.mxu0 0.0
        %3205 = vmatmul.mubr.f32.gmra.mrb[0].mxu0 %v2539
        %v3206 = vpop.f32.mrb[0].mxu0
        %v3207 = vadd.f32 %v2209, %v3206
        %v3208 = vpop.f32.mrb[0].mxu0
        %3209 = vmatprep.mubr.f32.mxu0 0.0
        %3210 = vmatmul.mubr.f32.gmra.mrb[0].mxu0 %v2542
        %v3211 = vpop.f32.mrb[0].mxu0
        %v3212 = vadd.f32 %v2209, %v3211
        %v3213 = vpop.f32.mrb[0].mxu0
        %3214 = vmatprep.mubr.f32.mxu0 0.0
        %3215 = vmatmul.mubr.f32.gmra.mrb[0].mxu0 %v2545
        %v3216 = vpop.f32.mrb[0].mxu0
        %v3217 = vadd.f32 %v2209, %v3216
        %v3218 = vpop.f32.mrb[0].mxu0
        %3219 = vmatprep.mubr.f32.mxu0 0.0
        %3220 = vmatmul.mubr.f32.gmra.mrb[0].mxu0 %v2548
        %v3221 = vpop.f32.mrb[0].mxu0
        %v3222 = vadd.f32 %v2209, %v3221
        %v3223 = vpop.f32.mrb[0].mxu0
        %3224 = vmatprep.mubr.f32.mxu0 0.0
        %3225 = vmatmul.mubr.f32.gmra.mrb[0].mxu0 %v2551
        %v3226 = vpop.f32.mrb[0].mxu0
        %v3227 = vadd.f32 %v2209, %v3226
        %v3228 = vpop.f32.mrb[0].mxu0
        %3229 = vmatprep.mubr.f32.mxu0 0.0
        %3230 = vmatmul.mubr.f32.gmra.mrb[0].mxu0 %v2554
        %v3231 = vpop.f32.mrb[0].mxu0
        %v3232 = vadd.f32 %v2209, %v3231
        %v3233 = vpop.f32.mrb[0].mxu0
        %3234 = vmatprep.mubr.f32.mxu0 0.0
        %3235 = vmatmul.mubr.f32.gmra.mrb[0].mxu0 %v2557
        %v3236 = vpop.f32.mrb[0].mxu0
        %v3237 = vadd.f32 %v2209, %v3236
        %v3238 = vpop.f32.mrb[0].mxu0
        %3239 = vmatprep.mubr.f32.mxu0 0.0
        %3240 = vmatmul.mubr.f32.gmra.mrb[0].mxu0 %v2560
        %v3241 = vpop.f32.mrb[0].mxu0
        %v3242 = vadd.f32 %v2209, %v3241
        %v3243 = vpop.f32.mrb[0].mxu0
        %3244 = vmatprep.mubr.f32.mxu0 0.0
        %3245 = vmatmul.mubr.f32.gmra.mrb[0].mxu0 %v2563
        %v3246 = vpop.f32.mrb[0].mxu0
        %v3247 = vadd.f32 %v2209, %v3246
        %v3248 = vpop.f32.mrb[0].mxu0
        %3249 = vmatprep.mubr.f32.mxu0 0.0
        %3250 = vmatmul.mubr.f32.gmra.mrb[0].mxu0 %v2566
        %v3251 = vpop.f32.mrb[0].mxu0
        %v3252 = vadd.f32 %v2209, %v3251
        %v3253 = vpop.f32.mrb[0].mxu0
        %3254 = vmatprep.mubr.f32.mxu0 0.0
        %3255 = vmatmul.mubr.f32.gmra.mrb[0].mxu0 %v2569
        %v3256 = vpop.f32.mrb[0].mxu0
        %v3257 = vadd.f32 %v2209, %v3256
        %v3258 = vpop.f32.mrb[0].mxu0
        %3259 = vmatprep.mubr.f32.mxu0 0.0
        %3260 = vmatmul.mubr.f32.gmra.mrb[0].mxu0 %v2572
        %v3261 = vpop.f32.mrb[0].mxu0
        %v3262 = vadd.f32 %v2209, %v3261
        %v3263 = vpop.f32.mrb[0].mxu0
        %3264 = vmatprep.mubr.f32.mxu0 0.0
        %3265 = vmatmul.mubr.f32.gmra.mrb[0].mxu0 %v2575
        %v3266 = vpop.f32.mrb[0].mxu0
        %v3267 = vadd.f32 %v2209, %v3266
        %v3268 = vpop.f32.mrb[0].mxu0
        %3269 = vmatprep.mubr.f32.mxu0 0.0
        %3270 = vmatmul.mubr.f32.gmra.mrb[0].mxu0 %v2578
        %v3271 = vpop.f32.mrb[0].mxu0
        %v3272 = vadd.f32 %v2209, %v3271
        %v3273 = vpop.f32.mrb[0].mxu0
        %3274 = vmatprep.mubr.f32.mxu0 0.0
        %3275 = vmatmul.mubr.f32.gmra.mrb[0].mxu0 %v2581
        %v3276 = vpop.f32.mrb[0].mxu0
        %v3277 = vadd.f32 %v2209, %v3276
        %v3278 = vpop.f32.mrb[0].mxu0
        %3279 = vmatprep.mubr.f32.mxu0 0.0
        %3280 = vmatmul.mubr.f32.gmra.mrb[0].mxu0 %v2584
        %v3281 = vpop.f32.mrb[0].mxu0
        %v3282 = vadd.f32 %v2209, %v3281
        %v3283 = vpop.f32.mrb[0].mxu0
        %3284 = vmatprep.mubr.f32.mxu0 0.0
        %3285 = vmatmul.mubr.f32.gmra.mrb[0].mxu0 %v2587
        %v3286 = vpop.f32.mrb[0].mxu0
        %v3287 = vadd.f32 %v2209, %v3286
        %v3288 = vpop.f32.mrb[0].mxu0
        %3289 = vmatprep.mubr.f32.mxu0 0.0
        %3290 = vmatmul.mubr.f32.gmra.mrb[0].mxu0 %v2590
        %v3291 = vpop.f32.mrb[0].mxu0
        %v3292 = vadd.f32 %v2209, %v3291
        %v3293 = vpop.f32.mrb[0].mxu0
        %3294 = vmatprep.mubr.f32.mxu0 0.0
        %3295 = vmatmul.mubr.f32.gmra.mrb[0].mxu0 %v2593
        %v3296 = vpop.f32.mrb[0].mxu0
        %v3297 = vadd.f32 %v2209, %v3296
        %v3298 = vpop.f32.mrb[0].mxu0
        %3299 = vdwg.mxu0
        %v3300 = vmax.f32 %v2662, 0.0
        %v3301 = vmax.f32 %v2667, 0.0
        %v3302 = vmax.f32 %v2672, 0.0
        %v3303 = vmax.f32 %v2677, 0.0
        %v3304 = vmax.f32 %v2682, 0.0
        %v3305 = vmax.f32 %v2687, 0.0
        %v3306 = vmax.f32 %v2692, 0.0
        %v3307 = vmax.f32 %v2697, 0.0
        %v3308 = vmax.f32 %v2702, 0.0
        %v3309 = vmax.f32 %v2707, 0.0
        %v3310 = vmax.f32 %v2712, 0.0
        %v3311 = vmax.f32 %v2717, 0.0
        %v3312 = vmax.f32 %v2722, 0.0
        %v3313 = vmax.f32 %v2727, 0.0
        %v3314 = vmax.f32 %v2732, 0.0
        %v3315 = vmax.f32 %v2737, 0.0
        %v3316 = vmax.f32 %v2742, 0.0
        %v3317 = vmax.f32 %v2747, 0.0
        %v3318 = vmax.f32 %v2752, 0.0
        %v3319 = vmax.f32 %v2757, 0.0
        %v3320 = vmax.f32 %v2762, 0.0
        %v3321 = vmax.f32 %v2767, 0.0
        %v3322 = vmax.f32 %v2772, 0.0
        %v3323 = vmax.f32 %v2777, 0.0
        %v3324 = vmax.f32 %v2782, 0.0
        %v3325 = vmax.f32 %v2787, 0.0
        %v3326 = vmax.f32 %v2792, 0.0
        %v3327 = vmax.f32 %v2797, 0.0
        %v3328 = vmax.f32 %v2802, 0.0
        %v3329 = vmax.f32 %v2807, 0.0
        %v3330 = vmax.f32 %v2812, 0.0
        %v3331 = vmax.f32 %v2817, 0.0
        %v3332 = vmax.f32 %v2822, 0.0
        %v3333 = vmax.f32 %v2827, 0.0
        %v3334 = vmax.f32 %v2832, 0.0
        %v3335 = vmax.f32 %v2837, 0.0
        %v3336 = vmax.f32 %v2842, 0.0
        %v3337 = vmax.f32 %v2847, 0.0
        %v3338 = vmax.f32 %v2852, 0.0
        %v3339 = vmax.f32 %v2857, 0.0
        %v3340 = vmax.f32 %v2862, 0.0
        %v3341 = vmax.f32 %v2867, 0.0
        %v3342 = vmax.f32 %v2872, 0.0
        %v3343 = vmax.f32 %v2877, 0.0
        %v3344 = vmax.f32 %v2882, 0.0
        %v3345 = vmax.f32 %v2887, 0.0
        %v3346 = vmax.f32 %v2892, 0.0
        %v3347 = vmax.f32 %v2897, 0.0
        %v3348 = vmax.f32 %v2902, 0.0
        %v3349 = vmax.f32 %v2907, 0.0
        %v3350 = vmax.f32 %v2912, 0.0
        %v3351 = vmax.f32 %v2917, 0.0
        %v3352 = vmax.f32 %v2922, 0.0
        %v3353 = vmax.f32 %v2927, 0.0
        %v3354 = vmax.f32 %v2932, 0.0
        %v3355 = vmax.f32 %v2937, 0.0
        %v3356 = vmax.f32 %v2942, 0.0
        %v3357 = vmax.f32 %v2947, 0.0
        %v3358 = vmax.f32 %v2952, 0.0
        %v3359 = vmax.f32 %v2957, 0.0
        %v3360 = vmax.f32 %v2962, 0.0
        %v3361 = vmax.f32 %v2967, 0.0
        %v3362 = vmax.f32 %v2972, 0.0
        %v3363 = vmax.f32 %v2977, 0.0
        %v3364 = vmax.f32 %v2982, 0.0
        %v3365 = vmax.f32 %v2987, 0.0
        %v3366 = vmax.f32 %v2992, 0.0
        %v3367 = vmax.f32 %v2997, 0.0
        %v3368 = vmax.f32 %v3002, 0.0
        %v3369 = vmax.f32 %v3007, 0.0
        %v3370 = vmax.f32 %v3012, 0.0
        %v3371 = vmax.f32 %v3017, 0.0
        %v3372 = vmax.f32 %v3022, 0.0
        %v3373 = vmax.f32 %v3027, 0.0
        %v3374 = vmax.f32 %v3032, 0.0
        %v3375 = vmax.f32 %v3037, 0.0
        %v3376 = vmax.f32 %v3042, 0.0
        %v3377 = vmax.f32 %v3047, 0.0
        %v3378 = vmax.f32 %v3052, 0.0
        %v3379 = vmax.f32 %v3057, 0.0
        %v3380 = vmax.f32 %v3062, 0.0
        %v3381 = vmax.f32 %v3067, 0.0
        %v3382 = vmax.f32 %v3072, 0.0
        %v3383 = vmax.f32 %v3077, 0.0
        %v3384 = vmax.f32 %v3082, 0.0
        %v3385 = vmax.f32 %v3087, 0.0
        %v3386 = vmax.f32 %v3092, 0.0
        %v3387 = vmax.f32 %v3097, 0.0
        %v3388 = vmax.f32 %v3102, 0.0
        %v3389 = vmax.f32 %v3107, 0.0
        %v3390 = vmax.f32 %v3112, 0.0
        %v3391 = vmax.f32 %v3117, 0.0
        %v3392 = vmax.f32 %v3122, 0.0
        %v3393 = vmax.f32 %v3127, 0.0
        %v3394 = vmax.f32 %v3132, 0.0
        %v3395 = vmax.f32 %v3137, 0.0
        %v3396 = vmax.f32 %v3142, 0.0
        %v3397 = vmax.f32 %v3147, 0.0
        %v3398 = vmax.f32 %v3152, 0.0
        %v3399 = vmax.f32 %v3157, 0.0
        %v3400 = vmax.f32 %v3162, 0.0
        %v3401 = vmax.f32 %v3167, 0.0
        %v3402 = vmax.f32 %v3172, 0.0
        %v3403 = vmax.f32 %v3177, 0.0
        %v3404 = vmax.f32 %v3182, 0.0
        %v3405 = vmax.f32 %v3187, 0.0
        %v3406 = vmax.f32 %v3192, 0.0
        %v3407 = vmax.f32 %v3197, 0.0
        %v3408 = vmax.f32 %v3202, 0.0
        %v3409 = vmax.f32 %v3207, 0.0
        %v3410 = vmax.f32 %v3212, 0.0
        %v3411 = vmax.f32 %v3217, 0.0
        %v3412 = vmax.f32 %v3222, 0.0
        %v3413 = vmax.f32 %v3227, 0.0
        %v3414 = vmax.f32 %v3232, 0.0
        %v3415 = vmax.f32 %v3237, 0.0
        %v3416 = vmax.f32 %v3242, 0.0
        %v3417 = vmax.f32 %v3247, 0.0
        %v3418 = vmax.f32 %v3252, 0.0
        %v3419 = vmax.f32 %v3257, 0.0
        %v3420 = vmax.f32 %v3262, 0.0
        %v3421 = vmax.f32 %v3267, 0.0
        %v3422 = vmax.f32 %v3272, 0.0
        %v3423 = vmax.f32 %v3277, 0.0
        %v3424 = vmax.f32 %v3282, 0.0
        %v3425 = vmax.f32 %v3287, 0.0
        %v3426 = vmax.f32 %v3292, 0.0
        %v3427 = vmax.f32 %v3297, 0.0
        %v3428 = vld [vmem:[%s6] sm:$0x1]
        %v3429 = vld [vmem:[#allocation2] sm:$0x1]
        %3431 = vset.pattern.permute.xlu0 0
        %3432 = vperm.xlu0 %3431, %v3429
        %v3433 = vpop.permute.xlu0 %3432
        %v3435 = vlaneseq
        %v3436 = vshrl.u32 %v3435, 7
        %v3437 = vsub.s32 0, %v3436
        %v3438 = vrot.slane %v3433, %v3437
        %v3440 = vsel %vm982, %v3428, 0
        %v3443 = vsel %vm982, %v3300, 0
        %v3446 = vsel %vm982, %v3301, 0
        %v3449 = vsel %vm982, %v3302, 0
        %v3452 = vsel %vm982, %v3303, 0
        %v3455 = vsel %vm982, %v3304, 0
        %v3458 = vsel %vm982, %v3305, 0
        %v3461 = vsel %vm982, %v3306, 0
        %v3464 = vsel %vm982, %v3307, 0
        %v3467 = vsel %vm982, %v3308, 0
        %v3470 = vsel %vm982, %v3309, 0
        %v3473 = vsel %vm982, %v3310, 0
        %v3476 = vsel %vm982, %v3311, 0
        %v3479 = vsel %vm982, %v3312, 0
        %v3482 = vsel %vm982, %v3313, 0
        %v3485 = vsel %vm982, %v3314, 0
        %v3488 = vsel %vm982, %v3315, 0
        %v3491 = vsel %vm982, %v3316, 0
        %v3494 = vsel %vm982, %v3317, 0
        %v3497 = vsel %vm982, %v3318, 0
        %v3500 = vsel %vm982, %v3319, 0
        %v3503 = vsel %vm982, %v3320, 0
        %v3506 = vsel %vm982, %v3321, 0
        %v3509 = vsel %vm982, %v3322, 0
        %v3512 = vsel %vm982, %v3323, 0
        %v3515 = vsel %vm982, %v3324, 0
        %v3518 = vsel %vm982, %v3325, 0
        %v3521 = vsel %vm982, %v3326, 0
        %v3524 = vsel %vm982, %v3327, 0
        %v3527 = vsel %vm982, %v3328, 0
        %v3530 = vsel %vm982, %v3329, 0
        %v3533 = vsel %vm982, %v3330, 0
        %v3536 = vsel %vm982, %v3331, 0
        %v3539 = vsel %vm982, %v3332, 0
        %v3542 = vsel %vm982, %v3333, 0
        %v3545 = vsel %vm982, %v3334, 0
        %v3548 = vsel %vm982, %v3335, 0
        %v3551 = vsel %vm982, %v3336, 0
        %v3554 = vsel %vm982, %v3337, 0
        %v3557 = vsel %vm982, %v3338, 0
        %v3560 = vsel %vm982, %v3339, 0
        %v3563 = vsel %vm982, %v3340, 0
        %v3566 = vsel %vm982, %v3341, 0
        %v3569 = vsel %vm982, %v3342, 0
        %v3572 = vsel %vm982, %v3343, 0
        %v3575 = vsel %vm982, %v3344, 0
        %v3578 = vsel %vm982, %v3345, 0
        %v3581 = vsel %vm982, %v3346, 0
        %v3584 = vsel %vm982, %v3347, 0
        %v3587 = vsel %vm982, %v3348, 0
        %v3590 = vsel %vm982, %v3349, 0
        %v3593 = vsel %vm982, %v3350, 0
        %v3596 = vsel %vm982, %v3351, 0
        %v3599 = vsel %vm982, %v3352, 0
        %v3602 = vsel %vm982, %v3353, 0
        %v3605 = vsel %vm982, %v3354, 0
        %v3608 = vsel %vm982, %v3355, 0
        %v3611 = vsel %vm982, %v3356, 0
        %v3614 = vsel %vm982, %v3357, 0
        %v3617 = vsel %vm982, %v3358, 0
        %v3620 = vsel %vm982, %v3359, 0
        %v3623 = vsel %vm982, %v3360, 0
        %v3626 = vsel %vm982, %v3361, 0
        %v3629 = vsel %vm982, %v3362, 0
        %v3632 = vsel %vm982, %v3363, 0
        %v3635 = vsel %vm982, %v3364, 0
        %v3638 = vsel %vm982, %v3365, 0
        %v3641 = vsel %vm982, %v3366, 0
        %v3644 = vsel %vm982, %v3367, 0
        %v3647 = vsel %vm982, %v3368, 0
        %v3650 = vsel %vm982, %v3369, 0
        %v3653 = vsel %vm982, %v3370, 0
        %v3656 = vsel %vm982, %v3371, 0
        %v3659 = vsel %vm982, %v3372, 0
        %v3662 = vsel %vm982, %v3373, 0
        %v3665 = vsel %vm982, %v3374, 0
        %v3668 = vsel %vm982, %v3375, 0
        %v3671 = vsel %vm982, %v3376, 0
        %v3674 = vsel %vm982, %v3377, 0
        %v3677 = vsel %vm982, %v3378, 0
        %v3680 = vsel %vm982, %v3379, 0
        %v3683 = vsel %vm982, %v3380, 0
        %v3686 = vsel %vm982, %v3381, 0
        %v3689 = vsel %vm982, %v3382, 0
        %v3692 = vsel %vm982, %v3383, 0
        %v3695 = vsel %vm982, %v3384, 0
        %v3698 = vsel %vm982, %v3385, 0
        %v3701 = vsel %vm982, %v3386, 0
        %v3704 = vsel %vm982, %v3387, 0
        %v3707 = vsel %vm982, %v3388, 0
        %v3710 = vsel %vm982, %v3389, 0
        %v3713 = vsel %vm982, %v3390, 0
        %v3716 = vsel %vm982, %v3391, 0
        %v3719 = vsel %vm982, %v3392, 0
        %v3722 = vsel %vm982, %v3393, 0
        %v3725 = vsel %vm982, %v3394, 0
        %v3728 = vsel %vm982, %v3395, 0
        %v3731 = vsel %vm982, %v3396, 0
        %v3734 = vsel %vm982, %v3397, 0
        %v3737 = vsel %vm982, %v3398, 0
        %v3740 = vsel %vm982, %v3399, 0
        %v3743 = vsel %vm982, %v3400, 0
        %v3746 = vsel %vm982, %v3401, 0
        %v3749 = vsel %vm982, %v3402, 0
        %v3752 = vsel %vm982, %v3403, 0
        %v3755 = vsel %vm982, %v3404, 0
        %v3758 = vsel %vm982, %v3405, 0
        %v3761 = vsel %vm982, %v3406, 0
        %v3764 = vsel %vm982, %v3407, 0
        %v3767 = vsel %vm982, %v3408, 0
        %v3770 = vsel %vm982, %v3409, 0
        %v3773 = vsel %vm982, %v3410, 0
        %v3776 = vsel %vm982, %v3411, 0
        %v3779 = vsel %vm982, %v3412, 0
        %v3782 = vsel %vm982, %v3413, 0
        %v3785 = vsel %vm982, %v3414, 0
        %v3788 = vsel %vm982, %v3415, 0
        %v3791 = vsel %vm982, %v3416, 0
        %v3794 = vsel %vm982, %v3417, 0
        %v3797 = vsel %vm982, %v3418, 0
        %v3800 = vsel %vm982, %v3419, 0
        %v3803 = vsel %vm982, %v3420, 0
        %v3806 = vsel %vm982, %v3421, 0
        %v3809 = vsel %vm982, %v3422, 0
        %v3812 = vsel %vm982, %v3423, 0
        %v3815 = vsel %vm982, %v3424, 0
        %v3818 = vsel %vm982, %v3425, 0
        %v3821 = vsel %vm982, %v3426, 0
        %v3824 = vsel %vm982, %v3427, 0
        %3826 = vmatprep.subr.mxu0 0.0
        %3827 = vmatpush1.xpose.msra.mxu0 %v3443
        %3828 = vmatprep.subr.mxu0 0.0
        %3829 = vmatpush1.xpose.msra.mxu0 %v3446
        %3830 = vmatprep.subr.mxu0 0.0
        %3831 = vmatpush1.xpose.msra.mxu0 %v3449
        %3832 = vmatprep.subr.mxu0 0.0
        %3833 = vmatpush1.xpose.msra.mxu0 %v3452
        %3834 = vmatprep.subr.mxu0 0.0
        %3835 = vmatpush1.xpose.msra.mxu0 %v3455
        %3836 = vmatprep.subr.mxu0 0.0
        %3837 = vmatpush1.xpose.msra.mxu0 %v3458
        %3838 = vmatprep.subr.mxu0 0.0
        %3839 = vmatpush1.xpose.msra.mxu0 %v3461
        %3840 = vmatprep.subr.mxu0 0.0
        %3841 = vmatpush1.xpose.msra.mxu0 %v3464
        %3842 = vmatprep.subr.mxu0 0.0
        %3843 = vmatpush1.xpose.msra.mxu0 %v3467
        %3844 = vmatprep.subr.mxu0 0.0
        %3845 = vmatpush1.xpose.msra.mxu0 %v3470
        %3846 = vmatprep.subr.mxu0 0.0
        %3847 = vmatpush1.xpose.msra.mxu0 %v3473
        %3848 = vmatprep.subr.mxu0 0.0
        %3849 = vmatpush1.xpose.msra.mxu0 %v3476
        %3850 = vmatprep.subr.mxu0 0.0
        %3851 = vmatpush1.xpose.msra.mxu0 %v3479
        %3852 = vmatprep.subr.mxu0 0.0
        %3853 = vmatpush1.xpose.msra.mxu0 %v3482
        %3854 = vmatprep.subr.mxu0 0.0
        %3855 = vmatpush1.xpose.msra.mxu0 %v3485
        %3856 = vmatprep.subr.mxu0 0.0
        %3857 = vmatpush1.xpose.msra.mxu0 %v3488
        %3858 = vmatprep.subr.mxu0 0.0
        %3859 = vmatpush1.xpose.msra.mxu0 %v3491
        %3860 = vmatprep.subr.mxu0 0.0
        %3861 = vmatpush1.xpose.msra.mxu0 %v3494
        %3862 = vmatprep.subr.mxu0 0.0
        %3863 = vmatpush1.xpose.msra.mxu0 %v3497
        %3864 = vmatprep.subr.mxu0 0.0
        %3865 = vmatpush1.xpose.msra.mxu0 %v3500
        %3866 = vmatprep.subr.mxu0 0.0
        %3867 = vmatpush1.xpose.msra.mxu0 %v3503
        %3868 = vmatprep.subr.mxu0 0.0
        %3869 = vmatpush1.xpose.msra.mxu0 %v3506
        %3870 = vmatprep.subr.mxu0 0.0
        %3871 = vmatpush1.xpose.msra.mxu0 %v3509
        %3872 = vmatprep.subr.mxu0 0.0
        %3873 = vmatpush1.xpose.msra.mxu0 %v3512
        %3874 = vmatprep.subr.mxu0 0.0
        %3875 = vmatpush1.xpose.msra.mxu0 %v3515
        %3876 = vmatprep.subr.mxu0 0.0
        %3877 = vmatpush1.xpose.msra.mxu0 %v3518
        %3878 = vmatprep.subr.mxu0 0.0
        %3879 = vmatpush1.xpose.msra.mxu0 %v3521
        %3880 = vmatprep.subr.mxu0 0.0
        %3881 = vmatpush1.xpose.msra.mxu0 %v3524
        %3882 = vmatprep.subr.mxu0 0.0
        %3883 = vmatpush1.xpose.msra.mxu0 %v3527
        %3884 = vmatprep.subr.mxu0 0.0
        %3885 = vmatpush1.xpose.msra.mxu0 %v3530
        %3886 = vmatprep.subr.mxu0 0.0
        %3887 = vmatpush1.xpose.msra.mxu0 %v3533
        %3888 = vmatprep.subr.mxu0 0.0
        %3889 = vmatpush1.xpose.msra.mxu0 %v3536
        %3890 = vmatprep.mubr.f32.mxu0 0.0
        %3891 = vmatmul.mubr.f32.gmra.mrb[0].mxu0 %v3440
        %v3892 = vpop.f32.mrb[0].mxu0
        %v3893 = vadd.f32 %v3438, %v3892
        %v3894 = vpop.f32.mrb[0].mxu0
        %v3895 = vadd.f32 %v3438, %v3894
        %3896 = vdwg.mxu0
        %3897 = vmatprep.subr.mxu0 0.0
        %3898 = vmatpush1.xpose.msra.mxu0 %v3539
        %3899 = vmatprep.subr.mxu0 0.0
        %3900 = vmatpush1.xpose.msra.mxu0 %v3542
        %3901 = vmatprep.subr.mxu0 0.0
        %3902 = vmatpush1.xpose.msra.mxu0 %v3545
        %3903 = vmatprep.subr.mxu0 0.0
        %3904 = vmatpush1.xpose.msra.mxu0 %v3548
        %3905 = vmatprep.subr.mxu0 0.0
        %3906 = vmatpush1.xpose.msra.mxu0 %v3551
        %3907 = vmatprep.subr.mxu0 0.0
        %3908 = vmatpush1.xpose.msra.mxu0 %v3554
        %3909 = vmatprep.subr.mxu0 0.0
        %3910 = vmatpush1.xpose.msra.mxu0 %v3557
        %3911 = vmatprep.subr.mxu0 0.0
        %3912 = vmatpush1.xpose.msra.mxu0 %v3560
        %3913 = vmatprep.subr.mxu0 0.0
        %3914 = vmatpush1.xpose.msra.mxu0 %v3563
        %3915 = vmatprep.subr.mxu0 0.0
        %3916 = vmatpush1.xpose.msra.mxu0 %v3566
        %3917 = vmatprep.subr.mxu0 0.0
        %3918 = vmatpush1.xpose.msra.mxu0 %v3569
        %3919 = vmatprep.subr.mxu0 0.0
        %3920 = vmatpush1.xpose.msra.mxu0 %v3572
        %3921 = vmatprep.subr.mxu0 0.0
        %3922 = vmatpush1.xpose.msra.mxu0 %v3575
        %3923 = vmatprep.subr.mxu0 0.0
        %3924 = vmatpush1.xpose.msra.mxu0 %v3578
        %3925 = vmatprep.subr.mxu0 0.0
        %3926 = vmatpush1.xpose.msra.mxu0 %v3581
        %3927 = vmatprep.subr.mxu0 0.0
        %3928 = vmatpush1.xpose.msra.mxu0 %v3584
        %3929 = vmatprep.subr.mxu0 0.0
        %3930 = vmatpush1.xpose.msra.mxu0 %v3587
        %3931 = vmatprep.subr.mxu0 0.0
        %3932 = vmatpush1.xpose.msra.mxu0 %v3590
        %3933 = vmatprep.subr.mxu0 0.0
        %3934 = vmatpush1.xpose.msra.mxu0 %v3593
        %3935 = vmatprep.subr.mxu0 0.0
        %3936 = vmatpush1.xpose.msra.mxu0 %v3596
        %3937 = vmatprep.subr.mxu0 0.0
        %3938 = vmatpush1.xpose.msra.mxu0 %v3599
        %3939 = vmatprep.subr.mxu0 0.0
        %3940 = vmatpush1.xpose.msra.mxu0 %v3602
        %3941 = vmatprep.subr.mxu0 0.0
        %3942 = vmatpush1.xpose.msra.mxu0 %v3605
        %3943 = vmatprep.subr.mxu0 0.0
        %3944 = vmatpush1.xpose.msra.mxu0 %v3608
        %3945 = vmatprep.subr.mxu0 0.0
        %3946 = vmatpush1.xpose.msra.mxu0 %v3611
        %3947 = vmatprep.subr.mxu0 0.0
        %3948 = vmatpush1.xpose.msra.mxu0 %v3614
        %3949 = vmatprep.subr.mxu0 0.0
        %3950 = vmatpush1.xpose.msra.mxu0 %v3617
        %3951 = vmatprep.subr.mxu0 0.0
        %3952 = vmatpush1.xpose.msra.mxu0 %v3620
        %3953 = vmatprep.subr.mxu0 0.0
        %3954 = vmatpush1.xpose.msra.mxu0 %v3623
        %3955 = vmatprep.subr.mxu0 0.0
        %3956 = vmatpush1.xpose.msra.mxu0 %v3626
        %3957 = vmatprep.subr.mxu0 0.0
        %3958 = vmatpush1.xpose.msra.mxu0 %v3629
        %3959 = vmatprep.subr.mxu0 0.0
        %3960 = vmatpush1.xpose.msra.mxu0 %v3632
        %3961 = vmatprep.mubr.f32.mxu0 0.0
        %3962 = vmatmul.mubr.f32.gmra.mrb[0].mxu0 %v3440
        %v3963 = vpop.f32.mrb[0].mxu0
        %v3964 = vadd.f32 %v3438, %v3963
        %v3965 = vpop.f32.mrb[0].mxu0
        %v3966 = vadd.f32 %v3438, %v3965
        %3967 = vdwg.mxu0
        %3968 = vmatprep.subr.mxu0 0.0
        %3969 = vmatpush1.xpose.msra.mxu0 %v3635
        %3970 = vmatprep.subr.mxu0 0.0
        %3971 = vmatpush1.xpose.msra.mxu0 %v3638
        %3972 = vmatprep.subr.mxu0 0.0
        %3973 = vmatpush1.xpose.msra.mxu0 %v3641
        %3974 = vmatprep.subr.mxu0 0.0
        %3975 = vmatpush1.xpose.msra.mxu0 %v3644
        %3976 = vmatprep.subr.mxu0 0.0
        %3977 = vmatpush1.xpose.msra.mxu0 %v3647
        %3978 = vmatprep.subr.mxu0 0.0
        %3979 = vmatpush1.xpose.msra.mxu0 %v3650
        %3980 = vmatprep.subr.mxu0 0.0
        %3981 = vmatpush1.xpose.msra.mxu0 %v3653
        %3982 = vmatprep.subr.mxu0 0.0
        %3983 = vmatpush1.xpose.msra.mxu0 %v3656
        %3984 = vmatprep.subr.mxu0 0.0
        %3985 = vmatpush1.xpose.msra.mxu0 %v3659
        %3986 = vmatprep.subr.mxu0 0.0
        %3987 = vmatpush1.xpose.msra.mxu0 %v3662
        %3988 = vmatprep.subr.mxu0 0.0
        %3989 = vmatpush1.xpose.msra.mxu0 %v3665
        %3990 = vmatprep.subr.mxu0 0.0
        %3991 = vmatpush1.xpose.msra.mxu0 %v3668
        %3992 = vmatprep.subr.mxu0 0.0
        %3993 = vmatpush1.xpose.msra.mxu0 %v3671
        %3994 = vmatprep.subr.mxu0 0.0
        %3995 = vmatpush1.xpose.msra.mxu0 %v3674
        %3996 = vmatprep.subr.mxu0 0.0
        %3997 = vmatpush1.xpose.msra.mxu0 %v3677
        %3998 = vmatprep.subr.mxu0 0.0
        %3999 = vmatpush1.xpose.msra.mxu0 %v3680
        %4000 = vmatprep.subr.mxu0 0.0
        %4001 = vmatpush1.xpose.msra.mxu0 %v3683
        %4002 = vmatprep.subr.mxu0 0.0
        %4003 = vmatpush1.xpose.msra.mxu0 %v3686
        %4004 = vmatprep.subr.mxu0 0.0
        %4005 = vmatpush1.xpose.msra.mxu0 %v3689
        %4006 = vmatprep.subr.mxu0 0.0
        %4007 = vmatpush1.xpose.msra.mxu0 %v3692
        %4008 = vmatprep.subr.mxu0 0.0
        %4009 = vmatpush1.xpose.msra.mxu0 %v3695
        %4010 = vmatprep.subr.mxu0 0.0
        %4011 = vmatpush1.xpose.msra.mxu0 %v3698
        %4012 = vmatprep.subr.mxu0 0.0
        %4013 = vmatpush1.xpose.msra.mxu0 %v3701
        %4014 = vmatprep.subr.mxu0 0.0
        %4015 = vmatpush1.xpose.msra.mxu0 %v3704
        %4016 = vmatprep.subr.mxu0 0.0
        %4017 = vmatpush1.xpose.msra.mxu0 %v3707
        %4018 = vmatprep.subr.mxu0 0.0
        %4019 = vmatpush1.xpose.msra.mxu0 %v3710
        %4020 = vmatprep.subr.mxu0 0.0
        %4021 = vmatpush1.xpose.msra.mxu0 %v3713
        %4022 = vmatprep.subr.mxu0 0.0
        %4023 = vmatpush1.xpose.msra.mxu0 %v3716
        %4024 = vmatprep.subr.mxu0 0.0
        %4025 = vmatpush1.xpose.msra.mxu0 %v3719
        %4026 = vmatprep.subr.mxu0 0.0
        %4027 = vmatpush1.xpose.msra.mxu0 %v3722
        %4028 = vmatprep.subr.mxu0 0.0
        %4029 = vmatpush1.xpose.msra.mxu0 %v3725
        %4030 = vmatprep.subr.mxu0 0.0
        %4031 = vmatpush1.xpose.msra.mxu0 %v3728
        %4032 = vmatprep.mubr.f32.mxu0 0.0
        %4033 = vmatmul.mubr.f32.gmra.mrb[0].mxu0 %v3440
        %v4034 = vpop.f32.mrb[0].mxu0
        %v4035 = vadd.f32 %v3438, %v4034
        %v4036 = vpop.f32.mrb[0].mxu0
        %v4037 = vadd.f32 %v3438, %v4036
        %4038 = vdwg.mxu0
        %4039 = vmatprep.subr.mxu0 0.0
        %4040 = vmatpush1.xpose.msra.mxu0 %v3731
        %4041 = vmatprep.subr.mxu0 0.0
        %4042 = vmatpush1.xpose.msra.mxu0 %v3734
        %4043 = vmatprep.subr.mxu0 0.0
        %4044 = vmatpush1.xpose.msra.mxu0 %v3737
        %4045 = vmatprep.subr.mxu0 0.0
        %4046 = vmatpush1.xpose.msra.mxu0 %v3740
        %4047 = vmatprep.subr.mxu0 0.0
        %4048 = vmatpush1.xpose.msra.mxu0 %v3743
        %4049 = vmatprep.subr.mxu0 0.0
        %4050 = vmatpush1.xpose.msra.mxu0 %v3746
        %4051 = vmatprep.subr.mxu0 0.0
        %4052 = vmatpush1.xpose.msra.mxu0 %v3749
        %4053 = vmatprep.subr.mxu0 0.0
        %4054 = vmatpush1.xpose.msra.mxu0 %v3752
        %4055 = vmatprep.subr.mxu0 0.0
        %4056 = vmatpush1.xpose.msra.mxu0 %v3755
        %4057 = vmatprep.subr.mxu0 0.0
        %4058 = vmatpush1.xpose.msra.mxu0 %v3758
        %4059 = vmatprep.subr.mxu0 0.0
        %4060 = vmatpush1.xpose.msra.mxu0 %v3761
        %4061 = vmatprep.subr.mxu0 0.0
        %4062 = vmatpush1.xpose.msra.mxu0 %v3764
        %4063 = vmatprep.subr.mxu0 0.0
        %4064 = vmatpush1.xpose.msra.mxu0 %v3767
        %4065 = vmatprep.subr.mxu0 0.0
        %4066 = vmatpush1.xpose.msra.mxu0 %v3770
        %4067 = vmatprep.subr.mxu0 0.0
        %4068 = vmatpush1.xpose.msra.mxu0 %v3773
        %4069 = vmatprep.subr.mxu0 0.0
        %4070 = vmatpush1.xpose.msra.mxu0 %v3776
        %4071 = vmatprep.subr.mxu0 0.0
        %4072 = vmatpush1.xpose.msra.mxu0 %v3779
        %4073 = vmatprep.subr.mxu0 0.0
        %4074 = vmatpush1.xpose.msra.mxu0 %v3782
        %4075 = vmatprep.subr.mxu0 0.0
        %4076 = vmatpush1.xpose.msra.mxu0 %v3785
        %4077 = vmatprep.subr.mxu0 0.0
        %4078 = vmatpush1.xpose.msra.mxu0 %v3788
        %4079 = vmatprep.subr.mxu0 0.0
        %4080 = vmatpush1.xpose.msra.mxu0 %v3791
        %4081 = vmatprep.subr.mxu0 0.0
        %4082 = vmatpush1.xpose.msra.mxu0 %v3794
        %4083 = vmatprep.subr.mxu0 0.0
        %4084 = vmatpush1.xpose.msra.mxu0 %v3797
        %4085 = vmatprep.subr.mxu0 0.0
        %4086 = vmatpush1.xpose.msra.mxu0 %v3800
        %4087 = vmatprep.subr.mxu0 0.0
        %4088 = vmatpush1.xpose.msra.mxu0 %v3803
        %4089 = vmatprep.subr.mxu0 0.0
        %4090 = vmatpush1.xpose.msra.mxu0 %v3806
        %4091 = vmatprep.subr.mxu0 0.0
        %4092 = vmatpush1.xpose.msra.mxu0 %v3809
        %4093 = vmatprep.subr.mxu0 0.0
        %4094 = vmatpush1.xpose.msra.mxu0 %v3812
        %4095 = vmatprep.subr.mxu0 0.0
        %4096 = vmatpush1.xpose.msra.mxu0 %v3815
        %4097 = vmatprep.subr.mxu0 0.0
        %4098 = vmatpush1.xpose.msra.mxu0 %v3818
        %4099 = vmatprep.subr.mxu0 0.0
        %4100 = vmatpush1.xpose.msra.mxu0 %v3821
        %4101 = vmatprep.subr.mxu0 0.0
        %4102 = vmatpush1.xpose.msra.mxu0 %v3824
        %4103 = vmatprep.mubr.f32.mxu0 0.0
        %4104 = vmatmul.mubr.f32.gmra.mrb[0].mxu0 %v3440
        %v4105 = vpop.f32.mrb[0].mxu0
        %v4106 = vadd.f32 %v3438, %v4105
        %v4107 = vpop.f32.mrb[0].mxu0
        %v4108 = vadd.f32 %v3438, %v4107
        %4109 = vdwg.mxu0
        %v4110 = vxor.u32 %v3893, 2147483648
        %v4111 = vxor.u32 %v3895, 2147483648
        %v4112 = vxor.u32 %v3964, 2147483648
        %v4113 = vxor.u32 %v3966, 2147483648
        %v4114 = vxor.u32 %v4035, 2147483648
        %v4115 = vxor.u32 %v4037, 2147483648
        %v4116 = vxor.u32 %v4106, 2147483648
        %v4117 = vxor.u32 %v4108, 2147483648
        %v4118 = vmul.f32 %v4110, 1.442695
        %v4119 = vpow.pop %v4118
        %v4120 = vmul.f32 %v4111, 1.442695
        %v4121 = vpow.pop %v4120
        %v4122 = vmul.f32 %v4112, 1.442695
        %v4123 = vpow.pop %v4122
        %v4124 = vmul.f32 %v4113, 1.442695
        %v4125 = vpow.pop %v4124
        %v4126 = vmul.f32 %v4114, 1.442695
        %v4127 = vpow.pop %v4126
        %v4128 = vmul.f32 %v4115, 1.442695
        %v4129 = vpow.pop %v4128
        %v4130 = vmul.f32 %v4116, 1.442695
        %v4131 = vpow.pop %v4130
        %v4132 = vmul.f32 %v4117, 1.442695
        %v4133 = vpow.pop %v4132
        %v4134 = vadd.f32 %v4119, 1.0
        %v4135 = vadd.f32 %v4121, 1.0
        %v4136 = vadd.f32 %v4123, 1.0
        %v4137 = vadd.f32 %v4125, 1.0
        %v4138 = vadd.f32 %v4127, 1.0
        %v4139 = vadd.f32 %v4129, 1.0
        %v4140 = vadd.f32 %v4131, 1.0
        %v4141 = vadd.f32 %v4133, 1.0
        %v4142 = vrcp.pop %v4134
        %v4143 = vmul.f32 1.0, %v4142
        %v4144 = vrcp.pop %v4135
        %v4145 = vmul.f32 1.0, %v4144
        %v4146 = vrcp.pop %v4136
        %v4147 = vmul.f32 1.0, %v4146
        %v4148 = vrcp.pop %v4137
        %v4149 = vmul.f32 1.0, %v4148
        %v4150 = vrcp.pop %v4138
        %v4151 = vmul.f32 1.0, %v4150
        %v4152 = vrcp.pop %v4139
        %v4153 = vmul.f32 1.0, %v4152
        %v4154 = vrcp.pop %v4140
        %v4155 = vmul.f32 1.0, %v4154
        %v4156 = vrcp.pop %v4141
        %v4157 = vmul.f32 1.0, %v4156
        %v4166 = vcombine.low %v4143, %v4145
        %v4167 = vcombine.low %v4147, %v4149
        %v4168 = vcombine.low %v4151, %v4153
        %v4169 = vcombine.low %v4155, %v4157
        %v4171 = vunpack.c.l.s4 1966171168
        %v4172 = vunpack.c.0.s8 %v4171
        %v4173 = vlaneseq
        %v4174 = vshrl.u32 %v4173, 7
        %v4175 = vsub.s32 %v4172, %v4174
        %v4176 = vrot.slane %v4166, %v4175
        %v4178 = vunpack.c.l.s4 1966171168
        %v4179 = vunpack.c.0.s8 %v4178
        %v4180 = vlaneseq
        %v4181 = vshrl.u32 %v4180, 7
        %v4182 = vsub.s32 %v4179, %v4181
        %v4183 = vrot.slane %v4167, %v4182
        %v4185 = vunpack.c.l.s4 1966171168
        %v4186 = vunpack.c.0.s8 %v4185
        %v4187 = vlaneseq
        %v4188 = vshrl.u32 %v4187, 7
        %v4189 = vsub.s32 %v4186, %v4188
        %v4190 = vrot.slane %v4168, %v4189
        %v4192 = vunpack.c.l.s4 1966171168
        %v4193 = vunpack.c.0.s8 %v4192
        %v4194 = vlaneseq
        %v4195 = vshrl.u32 %v4194, 7
        %v4196 = vsub.s32 %v4193, %v4195
        %v4197 = vrot.slane %v4169, %v4196
        %v4198 = vcombine.low %v4176, %v4183
        %v4199 = vcombine.low %v4190, %v4197
        %v4201 = vunpack.c.l.s4 1966171168
        %v4202 = vunpack.c.0.s8 %v4201
        %v4203 = vlaneseq
        %v4204 = vshrl.u32 %v4203, 7
        %v4205 = vsub.s32 %v4202, %v4204
        %v4206 = vrot.slane %v4198, %v4205
        %v4208 = vunpack.c.l.s4 1966171168
        %v4209 = vunpack.c.0.s8 %v4208
        %v4210 = vlaneseq
        %v4211 = vshrl.u32 %v4210, 7
        %v4212 = vsub.s32 %v4209, %v4211
        %v4213 = vrot.slane %v4199, %v4212
        %v4214 = vcombine.low %v4206, %v4213
        %4216 = vst [vmem:[%s317] sm:$0xff] %v4214
        %s4217 = sand.u32 %s210, 1
        %s4218 = scalar_lea.sflag [#allocation4], %s4217
        %s4219 = sand.u32 %s210, 1
        %s4220 = smul.addr %s4219, 8
        %s4221 = scalar_lea.vmem [#allocation3], %s4220
        // Predicated region
        $region53: #{link_predictor.1} parent=51 // pred_check
          %p4222 = pneg %p220
        $region54: #{link_predictor.1} parent=51 // pred_check_branch
          %4224 = sbr.rel (%p4222) target = $region56
        $region55: #{link_predictor.1} parent=51 // pred_region
          %s4225 = smul.u32 8, %s24
          %s4227 = ssub.s32 128, 128
          %4228 = vsyncadd %s4218, %s4227
          %s4229 = smul.addr %s4225, 16
          %s4230 = scalar_lea.hbm %s8, %s4229
          %s4232 = sshll.u32 %s4221, 4
          %s4233 = int_to_ptr.vmem [resolvable:$true] %s4232
          %4235 = dma.vmem_to_hbm [thread:$0]  %s4233, 128, %s4230, %s4218
        $region56: #{link_predictor.1} parent=51 // pred_fallthru
          _
      $region52: #{link_predictor.1} parent=5 // pred_fallthru
        _
      %p4236 = scmp.le.s32.totalorder 2, %s19
      // Predicated region
      $region57: #{link_predictor.1} parent=5 // pred_check
        %p4237 = pneg %p4236
      $region58: #{link_predictor.1} parent=5 // pred_check_branch
        %4239 = sbr.rel (%p4237) target = $region60
      $region59: #{link_predictor.1} parent=5 // pred_region
        %s4240 = ssub.s32 %s19, 2
        // Predicated region
        $region61: #{link_predictor.1} parent=59 // pred_check
          %p4241 = pneg %p226
        $region62: #{link_predictor.1} parent=59 // pred_check_branch
          %4243 = sbr.rel (%p4241) target = $region64
        $region63: #{link_predictor.1} parent=59 // pred_region
          %s4244 = sand.u32 %s211, 1
          %s4245 = scalar_lea.sflag [#allocation4], %s4244
          %s4246 = sand.u32 %s211, 1
          %s4247 = smul.addr %s4246, 8
          %s4248 = scalar_lea.vmem [#allocation3], %s4247
          %4249 = dma.done %s4245, 128
        $region64: #{link_predictor.1} parent=59 // pred_fallthru
          _
      $region60: #{link_predictor.1} parent=5 // pred_fallthru
        _
    $region6: #{link_predictor.1} parent=1 // loop_footer
      %s23 = sadd.s32 1, %s19
    $region7: #{link_predictor.1} parent=1 // loop_footer_branch
      %18 = sbr.rel target = $region3
    $region8: #{link_predictor.1} parent=1 // loop_exit
      _
    %4250 = vsyncpa [#allocation4], 1
    %s4251 = scalar_lea.sflag [#allocation4], 1
    %4252 = vsyncpa %s4251, 1

</llo_original>
